<compile_context>
chip_gen: v7x
topology: tpu7x:2x2x1
jax: 0.10.0
libtpu: 0.0.40
codegen_flags: <defaults>
</compile_context>

<pallas_src>
import math
from functools import partial

import jax
import jax.numpy as jnp
from jax import lax
from jax.experimental import pallas as pl
from jax.experimental.pallas import tpu as pltpu

DIM = 64            # transformer width
NUM_HEADS = 16      # module default
HEAD_DIM = DIM // NUM_HEADS
AUDIO_DIM = 768     # fixed by audio_proj = nn.Linear(768, dim)
LORA_RANK = 4
LN_EPS = 1e-5

# lane offsets (128-aligned) inside the (64, 1280) bf16 weight slab
_COL_QKV = (0, 192)
_COL_OSA = (256, 320)
_COL_Q   = (384, 448)
_COL_K   = (512, 576)
_COL_V   = (640, 704)
_COL_OCA = (768, 832)
_COL_FF1 = (896, 1152)
_COL_DFF = (1152, 1216)
_W64_COLS = 1280


# ---------------------------------------------------------------------------
# in-kernel math helpers (all f32, VPU/EUP only)
# ---------------------------------------------------------------------------
def _erf(z):
    # Abramowitz & Stegun 7.1.26 (abs err ~1.5e-7)
    a1, a2, a3, a4, a5 = 0.254829592, -0.284496736, 1.421413741, -1.453152027, 1.061405429
    p = 0.3275911
    s = jnp.where(z >= 0.0, 1.0, -1.0)
    za = jnp.abs(z)
    t = 1.0 / (1.0 + p * za)
    poly = ((((a5 * t + a4) * t + a3) * t + a2) * t + a1) * t
    return s * (1.0 - poly * jnp.exp(-za * za))


def _gelu_exact(x):
    # matches torch.nn.GELU() (erf formulation)
    return 0.5 * x * (1.0 + _erf(x * (1.0 / math.sqrt(2.0))))


def _layernorm(x, w, b):
    mu = jnp.mean(x, axis=-1, keepdims=True)
    var = jnp.mean(jnp.square(x - mu), axis=-1, keepdims=True)
    return (x - mu) * lax.rsqrt(var + LN_EPS) * w + b


def _bf(t):
    return t.astype(jnp.bfloat16)


def _mm(a, w):
    """bf16 x bf16 matmul with f32 accumulation."""
    return jnp.dot(_bf(a), w, preferred_element_type=jnp.float32)


def _mha_all_heads(q, k, v, head_mask):
    """All-heads attention for one batch element in 2 MXU matmuls.

    q: (Nq, D) f32, 1/sqrt(head_dim) already folded in; k, v: (Nk, D) f32.
    head_mask: (H*Nq, D) f32, head_mask[h*Nq+i, d] = 1 iff d belongs to head h.
    """
    nq = q.shape[0]
    # head-blocked query layout along sublanes: row h*Nq+i holds q[i] masked to head h
    q_bd = jnp.concatenate([q] * NUM_HEADS, axis=0) * head_mask        # (H*Nq, D) f32
    # one matmul -> every head's scores (full 64-lane contraction)
    s = lax.dot_general(_bf(q_bd), _bf(k), (((1,), (1,)), ((), ())),
                        preferred_element_type=jnp.float32)            # (H*Nq, Nk) f32
    s = s - jnp.max(s, axis=-1, keepdims=True)
    p = jnp.exp(s)
    p = p * pl.reciprocal(jnp.sum(p, axis=-1, keepdims=True), approx=True)
    # one matmul for all heads' PV; wrong-head lanes zeroed by the mask
    o_bd = jnp.dot(_bf(p), _bf(v), preferred_element_type=jnp.float32) * head_mask
    # reassemble heads with a log-depth tree add (disjoint lanes -> plain add)
    parts = [o_bd[h * nq:(h + 1) * nq, :] for h in range(NUM_HEADS)]
    while len(parts) > 1:
        nxt = [parts[i] + parts[i + 1] for i in range(0, len(parts) - 1, 2)]
        if len(parts) % 2:
            nxt.append(parts[-1])
        parts = nxt
    return parts[0]


# ---------------------------------------------------------------------------
# fused transformer-block kernel (Bt batch elements per grid step)
# ---------------------------------------------------------------------------
def _make_kernel(bt, n, m):
    D = DIM
    scale = 1.0 / math.sqrt(HEAD_DIM)

    def kernel(x_ref, aud_ref, mask_ref, w64_ref, wtall_ref, bias_ref, o_ref):
        x = x_ref[...]                      # (Bt*N, D) f32
        aud = aud_ref[...]                  # (Bt*M, 768) bf16
        head_mask = mask_ref[...]           # (H*N, D) f32

        # ---- lane-packed bf16 weights (static 128-aligned slices) ----
        w_qkv = w64_ref[:, _COL_QKV[0]:_COL_QKV[1]]   # self-attn in_proj (D, 3D)
        w_osa = w64_ref[:, _COL_OSA[0]:_COL_OSA[1]]   # self-attn out proj
        w_q   = w64_ref[:, _COL_Q[0]:_COL_Q[1]]       # cross q proj (LoRA folded)
        w_k   = w64_ref[:, _COL_K[0]:_COL_K[1]]       # cross k proj (LoRA folded)
        w_v   = w64_ref[:, _COL_V[0]:_COL_V[1]]       # cross v proj (LoRA folded)
        w_oca = w64_ref[:, _COL_OCA[0]:_COL_OCA[1]]   # cross out proj
        w_ff1 = w64_ref[:, _COL_FF1[0]:_COL_FF1[1]]   # ff first linear (D, 4D)
        d_ff  = w64_ref[:, _COL_DFF[0]:_COL_DFF[1]]   # ff LoRA delta A^T B^T / r
        w_aud = wtall_ref[0:768, :]                   # audio proj (768, D)
        w_ff2 = wtall_ref[768:1024, :]                # ff second linear (4D, D)

        # ---- f32 biases / LN params ----
        b_qkv = bias_ref[0:1, 0:192]
        b_osa = bias_ref[1:2, 0:64]
        ln1_w = bias_ref[2:3, 0:64];  ln1_b = bias_ref[3:4, 0:64]
        b_aud = bias_ref[4:5, 0:64]
        b_q   = bias_ref[5:6, 0:64];  b_k = bias_ref[6:7, 0:64];  b_v = bias_ref[7:8, 0:64]
        b_oca = bias_ref[8:9, 0:64]
        lna_w = bias_ref[9:10, 0:64]; lna_b = bias_ref[10:11, 0:64]
        b_ff1 = bias_ref[11:12, 0:256]
        b_ff2 = bias_ref[12:13, 0:64]
        ln2_w = bias_ref[13:14, 0:64]; ln2_b = bias_ref[14:15, 0:64]

        # ------------- self attention (nn.MultiheadAttention, batch_first) -----
        qkv = _mm(x, w_qkv) + b_qkv                   # (Bt*N, 3D), all rows at once
        sa_parts = []
        for b in range(bt):
            r0, r1 = b * n, (b + 1) * n
            qb = qkv[r0:r1, 0:D] * scale
            kb = qkv[r0:r1, D:2 * D]
            vb = qkv[r0:r1, 2 * D:3 * D]
            sa_parts.append(_mha_all_heads(qb, kb, vb, head_mask))
        sa = sa_parts[0] if bt == 1 else jnp.concatenate(sa_parts, axis=0)
        sa = _mm(sa, w_osa) + b_osa
        x = _layernorm(x + sa, ln1_w, ln1_b)

        # ------------- audio cross attention (q/k/v LoRA folded into W/b) ------
        aproj = _mm(aud, w_aud) + b_aud               # (Bt*M, D)
        q_all = (_mm(x, w_q) + b_q) * scale
        k_all = _mm(aproj, w_k) + b_k
        v_all = _mm(aproj, w_v) + b_v
        ca_parts = []
        for b in range(bt):
            qb = q_all[b * n:(b + 1) * n, :]
            kb = k_all[b * m:(b + 1) * m, :]
            vb = v_all[b * m:(b + 1) * m, :]
            ca_parts.append(_mha_all_heads(qb, kb, vb, head_mask))
        ca = ca_parts[0] if bt == 1 else jnp.concatenate(ca_parts, axis=0)
        ca = _mm(ca, w_oca) + b_oca
        x = _layernorm(x + ca, lna_w, lna_b)

        # ------------- feed-forward + folded ff LoRA delta ---------------------
        h1 = _gelu_exact(_mm(x, w_ff1) + b_ff1)
        ff_out = _mm(h1, w_ff2) + b_ff2
        # TODO(synk): the reference ff_lora = MultiTalkLoRALayer(dim, dim*4) shape-errors
        # in PyTorch (adds a (B,N,4*dim) tensor to (B,N,dim)); implemented with
        # out_dim=dim so the residual `x + ff_out + ff_lora_out` is well-defined.
        ff_lora_out = x + _mm(x, d_ff)                # x passes through in exact f32
        x = _layernorm(x + ff_out + ff_lora_out, ln2_w, ln2_b)

        o_ref[...] = x.astype(o_ref.dtype)

    return kernel


# ---------------------------------------------------------------------------
# wrapper: LoRA folding + bf16 lane-packed operands + pallas_call
# ---------------------------------------------------------------------------
def _pack_params(params):
    f32 = lambda a: jnp.asarray(a, jnp.float32)
    t = lambda w: f32(w).T                      # (out,in) -> (in,out)
    row = lambda b: f32(b).reshape(1, -1)       # bias -> (1, out)

    def lora_mat(A, B):
        # LoRA on a linear's OUTPUT y:  y + (y @ A^T @ B^T)/r = y @ (I + A^T B^T / r)
        return jnp.eye(DIM, dtype=jnp.float32) + (f32(A).T @ f32(B).T) * (1.0 / LORA_RANK)

    m_q = lora_mat(params["q_lora_A"], params["q_lora_B"])
    m_k = lora_mat(params["k_lora_A"], params["k_lora_B"])
    m_v = lora_mat(params["v_lora_A"], params["v_lora_B"])
    d_ff = (f32(params["ff_lora_A"]).T @ f32(params["ff_lora_B"]).T) * (1.0 / LORA_RANK)

    pieces = {
        _COL_QKV: t(params["sa_in_proj_w"]),     # (64, 192)
        _COL_OSA: t(params["sa_out_w"]),         # (64, 64)
        _COL_Q:   t(params["q_w"]) @ m_q,        # LoRA folded
        _COL_K:   t(params["k_w"]) @ m_k,
        _COL_V:   t(params["v_w"]) @ m_v,
        _COL_OCA: t(params["oca_w"]),
        _COL_FF1: t(params["ff1_w"]),            # (64, 256)
        _COL_DFF: d_ff,                          # ff LoRA delta (64, 64)
    }
    w64 = jnp.zeros((DIM, _W64_COLS), jnp.float32)
    for (c0, c1), w in pieces.items():
        w64 = w64.at[:, c0:c1].set(w)
    w64 = w64.astype(jnp.bfloat16)                                       # (64, 1280)

    wtall = jnp.concatenate([t(params["aud_w"]), t(params["ff2_w"])],
                            axis=0).astype(jnp.bfloat16)                 # (1024, 64)

    bias_rows = [
        (0, row(params["sa_in_proj_b"])),                 # 192 wide
        (1, row(params["sa_out_b"])),
        (2, row(params["ln1_w"])), (3, row(params["ln1_b"])),
        (4, row(params["aud_b"])),
        (5, row(params["q_b"]) @ m_q),                    # LoRA-folded biases
        (6, row(params["k_b"]) @ m_k),
        (7, row(params["v_b"]) @ m_v),
        (8, row(params["oca_b"])),
        (9, row(params["lna_w"])), (10, row(params["lna_b"])),
        (11, row(params["ff1_b"])),                       # 256 wide
        (12, row(params["ff2_b"])),
        (13, row(params["ln2_w"])), (14, row(params["ln2_b"])),
    ]
    bias = jnp.zeros((16, 256), jnp.float32)
    for r, v in bias_rows:
        bias = bias.at[r, 0:v.shape[1]].set(v[0])
    return w64, wtall, bias


def _build_head_mask(n):
    row_head = (jnp.arange(NUM_HEADS * n) // n)[:, None]
    col_head = (jnp.arange(DIM) // HEAD_DIM)[None, :]
    return (row_head == col_head).astype(jnp.float32)     # (H*N, D)


def _pick_batch_tile(B, N, M):
    """Smallest batch tile giving >=256 MXU rows per step (keeps the grid as
    long as possible for v7x 2-TC sharding); falls back to the whole batch."""
    divisors = [d for d in range(1, B + 1) if B % d == 0]
    ok = lambda d: d == B or ((d * N) % 8 == 0 and (d * M) % 8 == 0)
    cands = [d for d in divisors if ok(d)]
    for d in cands:
        if d * N >= 256:
            return d
    return cands[-1] if cands else B


def multitalk_transformer_block(x, audio_features, params):
    x = jnp.asarray(x, jnp.float32)
    B, N, D = x.shape
    assert D == DIM
    M = audio_features.shape[1]

    w64, wtall, bias = _pack_params(params)
    head_mask = _build_head_mask(N)
    bt = _pick_batch_tile(B, N, M)

    xf = x.reshape(B * N, D)
    # audio is the largest activation operand; it only feeds a bf16 matmul, so
    # ship it as bf16 (halves its HBM->VMEM DMA).
    af = jnp.asarray(audio_features).reshape(B * M, AUDIO_DIM).astype(jnp.bfloat16)

    out = pl.pallas_call(
        _make_kernel(bt, N, M),
        out_shape=jax.ShapeDtypeStruct((B * N, D), jnp.float32),
        grid=(B // bt,),
        in_specs=[
            pl.BlockSpec((bt * N, D), lambda i: (i, 0)),
            pl.BlockSpec((bt * M, AUDIO_DIM), lambda i: (i, 0)),
            pl.BlockSpec(head_mask.shape, lambda i: (0, 0)),   # grid-invariant
            pl.BlockSpec(w64.shape, lambda i: (0, 0)),
            pl.BlockSpec(wtall.shape, lambda i: (0, 0)),
            pl.BlockSpec(bias.shape, lambda i: (0, 0)),
        ],
        out_specs=pl.BlockSpec((bt * N, D), lambda i: (i, 0)),
        compiler_params=pltpu.CompilerParams(
            dimension_semantics=("parallel",),        # batch tiles are independent
            vmem_limit_bytes=32 * 1024 * 1024,        # v5e default (16 MiB) is too low
        ),
    )(xf, af, head_mask, w64, wtall, bias)
    return out.reshape(B, N, D)


# ---------------------------------------------------------------------------
# deterministic synthetic parameters (shapes per the PyTorch __init__)
# ---------------------------------------------------------------------------
def init_params(key, dim=DIM):
    keys = iter(jax.random.split(key, 48))
    nrm = lambda shape, s=0.02: jax.random.normal(next(keys), shape, jnp.float32) * s
    p = {}
    p["sa_in_proj_w"] = nrm((3 * dim, dim)); p["sa_in_proj_b"] = nrm((3 * dim,), 0.01)
    p["sa_out_w"] = nrm((dim, dim));         p["sa_out_b"] = nrm((dim,), 0.01)
    p["ln1_w"] = jnp.ones((dim,), jnp.float32); p["ln1_b"] = jnp.zeros((dim,), jnp.float32)
    p["aud_w"] = nrm((dim, AUDIO_DIM));      p["aud_b"] = nrm((dim,), 0.01)
    for nm in ("q", "k", "v", "oca"):
        p[f"{nm}_w"] = nrm((dim, dim));      p[f"{nm}_b"] = nrm((dim,), 0.01)
    for nm in ("q", "k", "v"):
        p[f"{nm}_lora_A"] = nrm((LORA_RANK, dim), 0.01)
        p[f"{nm}_lora_B"] = nrm((dim, LORA_RANK), 0.01)
    p["lna_w"] = jnp.ones((dim,), jnp.float32); p["lna_b"] = jnp.zeros((dim,), jnp.float32)
    p["ff1_w"] = nrm((4 * dim, dim));        p["ff1_b"] = nrm((4 * dim,), 0.01)
    p["ff2_w"] = nrm((dim, 4 * dim));        p["ff2_b"] = nrm((dim,), 0.01)
    p["ff_lora_A"] = nrm((LORA_RANK, dim), 0.01)
    p["ff_lora_B"] = nrm((dim, LORA_RANK), 0.01)   # out_dim fixed to dim (see TODO above)
    p["ln2_w"] = jnp.ones((dim,), jnp.float32); p["ln2_b"] = jnp.zeros((dim,), jnp.float32)
    return p


# ---------------------------------------------------------------------------
# pure-JAX reference (mirrors the PyTorch forward) for a sanity check
# ---------------------------------------------------------------------------
def reference_block(x, audio, params):
    D = x.shape[-1]; H = NUM_HEADS; hd = D // H
    linear = lambda t, w, b: t @ w.T + b

    def ln(t, w, b):
        mu = t.mean(-1, keepdims=True)
        var = jnp.square(t - mu).mean(-1, keepdims=True)
        return (t - mu) / jnp.sqrt(var + LN_EPS) * w + b

    def heads(t):
        b_, l_, _ = t.shape
        return t.reshape(b_, l_, H, hd).transpose(0, 2, 1, 3)

    def attn(q, k, v):
        s = jnp.einsum("bhqd,bhkd->bhqk", q, k) / math.sqrt(hd)
        p = jax.nn.softmax(s, axis=-1)
        o = jnp.einsum("bhqk,bhkd->bhqd", p, v)
        b_, _, l_, _ = o.shape
        return o.transpose(0, 2, 1, 3).reshape(b_, l_, D)

    lora = lambda t, A, Bm: t + (t @ A.T @ Bm.T) / LORA_RANK

    qkv = linear(x, params["sa_in_proj_w"], params["sa_in_proj_b"])
    q, k, v = jnp.split(qkv, 3, axis=-1)
    sa = linear(attn(heads(q), heads(k), heads(v)), params["sa_out_w"], params["sa_out_b"])
    x = ln(x + sa, params["ln1_w"], params["ln1_b"])

    ap = linear(audio, params["aud_w"], params["aud_b"])
    q = lora(linear(x, params["q_w"], params["q_b"]), params["q_lora_A"], params["q_lora_B"])
    k = lora(linear(ap, params["k_w"], params["k_b"]), params["k_lora_A"], params["k_lora_B"])
    v = lora(linear(ap, params["v_w"], params["v_b"]), params["v_lora_A"], params["v_lora_B"])
    ca = linear(attn(heads(q), heads(k), heads(v)), params["oca_w"], params["oca_b"])
    x = ln(x + ca, params["lna_w"], params["lna_b"])

    ff_in = x
    h1 = jax.nn.gelu(linear(ff_in, params["ff1_w"], params["ff1_b"]), approximate=False)
    ff_out = linear(h1, params["ff2_w"], params["ff2_b"])
    ff_lora_out = lora(ff_in, params["ff_lora_A"], params["ff_lora_B"])
    x = ln(x + ff_out + ff_lora_out, params["ln2_w"], params["ln2_b"])
    return x


if __name__ == "__main__":
    key = jax.random.PRNGKey(0)
    kx, ka, kp = jax.random.split(key, 3)
    B, N, M = 2, 8, 6
    x = jax.random.normal(kx, (B, N, DIM), jnp.float32)
    audio = jax.random.normal(ka, (B, M, AUDIO_DIM), jnp.float32)
    params = init_params(kp)

    out = jax.block_until_ready(multitalk_transformer_block(x, audio, params))

    assert out.shape == (B, N, DIM)
    assert bool(jnp.all(jnp.isfinite(out)))
    ref = reference_block(x, audio, params)
    assert bool(jnp.max(jnp.abs(out - ref)) < 2e-2), "kernel diverges from reference"
    print("KERNEL_OK")
</pallas_src>

<mosaic_0001>
module attributes {stable_mosaic.version = 11 : i64} {
  func.func @kernel(%arg0: i32, %arg1: memref<16x64xf32, #tpu.memory_space<vmem>>, %arg2: memref<12x768xbf16, #tpu.memory_space<vmem>>, %arg3: memref<128x64xf32, #tpu.memory_space<vmem>>, %arg4: memref<64x1280xbf16, #tpu.memory_space<vmem>>, %arg5: memref<1024x64xbf16, #tpu.memory_space<vmem>>, %arg6: memref<16x256xf32, #tpu.memory_space<vmem>>, %arg7: memref<16x64xf32, #tpu.memory_space<vmem>>) attributes {dimension_semantics = [#tpu.dimension_semantics<parallel>], iteration_bounds = array<i64: 1>, scalar_prefetch = 0 : i64, scratch_operands = 0 : i64, tpu.core_type = #tpu.core_type<tc>, window_params = [{transform_indices = @transform_0, window_bounds = array<i64: 16, 64>}, {transform_indices = @transform_1, window_bounds = array<i64: 12, 768>}, {pipeline_mode = #tpu.pipeline_mode<synchronous>, transform_indices = @transform_2, window_bounds = array<i64: 128, 64>}, {pipeline_mode = #tpu.pipeline_mode<synchronous>, transform_indices = @transform_3, window_bounds = array<i64: 64, 1280>}, {pipeline_mode = #tpu.pipeline_mode<synchronous>, transform_indices = @transform_4, window_bounds = array<i64: 1024, 64>}, {pipeline_mode = #tpu.pipeline_mode<synchronous>, transform_indices = @transform_5, window_bounds = array<i64: 16, 256>}, {transform_indices = @transform_6, window_bounds = array<i64: 16, 64>}]} {
    %c0 = arith.constant 0 : index
    %c0_0 = arith.constant 0 : index
    %0 = vector.load %arg1[%c0, %c0_0] : memref<16x64xf32, #tpu.memory_space<vmem>>, vector<16x64xf32>
    %c0_1 = arith.constant 0 : index
    %c0_2 = arith.constant 0 : index
    %1 = vector.load %arg2[%c0_1, %c0_2] : memref<12x768xbf16, #tpu.memory_space<vmem>>, vector<12x768xbf16>
    %c0_3 = arith.constant 0 : index
    %c0_4 = arith.constant 0 : index
    %2 = vector.load %arg3[%c0_3, %c0_4] : memref<128x64xf32, #tpu.memory_space<vmem>>, vector<128x64xf32>
    %c0_5 = arith.constant 0 : index
    %c0_6 = arith.constant 0 : index
    %3 = vector.load %arg4[%c0_5, %c0_6] : memref<64x1280xbf16, #tpu.memory_space<vmem>>, vector<64x192xbf16>
    %c0_7 = arith.constant 0 : index
    %c256 = arith.constant 256 : index
    %4 = vector.load %arg4[%c0_7, %c256] : memref<64x1280xbf16, #tpu.memory_space<vmem>>, vector<64x64xbf16>
    %c0_8 = arith.constant 0 : index
    %c384 = arith.constant 384 : index
    %5 = vector.load %arg4[%c0_8, %c384] : memref<64x1280xbf16, #tpu.memory_space<vmem>>, vector<64x64xbf16>
    %c0_9 = arith.constant 0 : index
    %c512 = arith.constant 512 : index
    %6 = vector.load %arg4[%c0_9, %c512] : memref<64x1280xbf16, #tpu.memory_space<vmem>>, vector<64x64xbf16>
    %c0_10 = arith.constant 0 : index
    %c640 = arith.constant 640 : index
    %7 = vector.load %arg4[%c0_10, %c640] : memref<64x1280xbf16, #tpu.memory_space<vmem>>, vector<64x64xbf16>
    %c0_11 = arith.constant 0 : index
    %c768 = arith.constant 768 : index
    %8 = vector.load %arg4[%c0_11, %c768] : memref<64x1280xbf16, #tpu.memory_space<vmem>>, vector<64x64xbf16>
    %c0_12 = arith.constant 0 : index
    %c896 = arith.constant 896 : index
    %9 = vector.load %arg4[%c0_12, %c896] : memref<64x1280xbf16, #tpu.memory_space<vmem>>, vector<64x256xbf16>
    %c0_13 = arith.constant 0 : index
    %c1152 = arith.constant 1152 : index
    %10 = vector.load %arg4[%c0_13, %c1152] : memref<64x1280xbf16, #tpu.memory_space<vmem>>, vector<64x64xbf16>
    %c0_14 = arith.constant 0 : index
    %c0_15 = arith.constant 0 : index
    %11 = vector.load %arg5[%c0_14, %c0_15] : memref<1024x64xbf16, #tpu.memory_space<vmem>>, vector<768x64xbf16>
    %c768_16 = arith.constant 768 : index
    %c0_17 = arith.constant 0 : index
    %12 = vector.load %arg5[%c768_16, %c0_17] : memref<1024x64xbf16, #tpu.memory_space<vmem>>, vector<256x64xbf16>
    %c0_18 = arith.constant 0 : index
    %c0_19 = arith.constant 0 : index
    %13 = vector.load %arg6[%c0_18, %c0_19] : memref<16x256xf32, #tpu.memory_space<vmem>>, vector<1x192xf32>
    %c1 = arith.constant 1 : index
    %c0_20 = arith.constant 0 : index
    %14 = vector.load %arg6[%c1, %c0_20] : memref<16x256xf32, #tpu.memory_space<vmem>>, vector<1x64xf32>
    %c2 = arith.constant 2 : index
    %c0_21 = arith.constant 0 : index
    %15 = vector.load %arg6[%c2, %c0_21] : memref<16x256xf32, #tpu.memory_space<vmem>>, vector<1x64xf32>
    %c3 = arith.constant 3 : index
    %c0_22 = arith.constant 0 : index
    %16 = vector.load %arg6[%c3, %c0_22] : memref<16x256xf32, #tpu.memory_space<vmem>>, vector<1x64xf32>
    %c4 = arith.constant 4 : index
    %c0_23 = arith.constant 0 : index
    %17 = vector.load %arg6[%c4, %c0_23] : memref<16x256xf32, #tpu.memory_space<vmem>>, vector<1x64xf32>
    %c5 = arith.constant 5 : index
    %c0_24 = arith.constant 0 : index
    %18 = vector.load %arg6[%c5, %c0_24] : memref<16x256xf32, #tpu.memory_space<vmem>>, vector<1x64xf32>
    %c6 = arith.constant 6 : index
    %c0_25 = arith.constant 0 : index
    %19 = vector.load %arg6[%c6, %c0_25] : memref<16x256xf32, #tpu.memory_space<vmem>>, vector<1x64xf32>
    %c7 = arith.constant 7 : index
    %c0_26 = arith.constant 0 : index
    %20 = vector.load %arg6[%c7, %c0_26] : memref<16x256xf32, #tpu.memory_space<vmem>>, vector<1x64xf32>
    %c8 = arith.constant 8 : index
    %c0_27 = arith.constant 0 : index
    %21 = vector.load %arg6[%c8, %c0_27] : memref<16x256xf32, #tpu.memory_space<vmem>>, vector<1x64xf32>
    %c9 = arith.constant 9 : index
    %c0_28 = arith.constant 0 : index
    %22 = vector.load %arg6[%c9, %c0_28] : memref<16x256xf32, #tpu.memory_space<vmem>>, vector<1x64xf32>
    %c10 = arith.constant 10 : index
    %c0_29 = arith.constant 0 : index
    %23 = vector.load %arg6[%c10, %c0_29] : memref<16x256xf32, #tpu.memory_space<vmem>>, vector<1x64xf32>
    %c11 = arith.constant 11 : index
    %c0_30 = arith.constant 0 : index
    %24 = vector.load %arg6[%c11, %c0_30] : memref<16x256xf32, #tpu.memory_space<vmem>>, vector<1x256xf32>
    %c12 = arith.constant 12 : index
    %c0_31 = arith.constant 0 : index
    %25 = vector.load %arg6[%c12, %c0_31] : memref<16x256xf32, #tpu.memory_space<vmem>>, vector<1x64xf32>
    %c13 = arith.constant 13 : index
    %c0_32 = arith.constant 0 : index
    %26 = vector.load %arg6[%c13, %c0_32] : memref<16x256xf32, #tpu.memory_space<vmem>>, vector<1x64xf32>
    %c14 = arith.constant 14 : index
    %c0_33 = arith.constant 0 : index
    %27 = vector.load %arg6[%c14, %c0_33] : memref<16x256xf32, #tpu.memory_space<vmem>>, vector<1x64xf32>
    %28 = arith.truncf %0 : vector<16x64xf32> to vector<16x64xbf16>
    %cst = arith.constant dense<0.000000e+00> : vector<16x192xf32>
    %29 = tpu.matmul %28, %3, %cst {dimension_numbers = #tpu.dot_dimension_numbers<[1], [0], [0], [1], [0, 0, 1, 1], [], []>} : vector<16x64xbf16>, vector<64x192xbf16>, vector<16x192xf32> -> vector<16x192xf32>
    %30 = vector.broadcast %13 : vector<1x192xf32> to vector<16x192xf32>
    %31 = arith.addf %29, %30 : vector<16x192xf32>
    %32 = vector.extract_strided_slice %31 {offsets = [0, 0], sizes = [8, 64], strides = [1, 1]} : vector<16x192xf32> to vector<8x64xf32>
    %cst_34 = arith.constant 5.000000e-01 : f32
    %33 = vector.broadcast %cst_34 : f32 to vector<8x64xf32>
    %34 = arith.mulf %32, %33 : vector<8x64xf32>
    %35 = vector.extract_strided_slice %31 {offsets = [0, 64], sizes = [8, 64], strides = [1, 1]} : vector<16x192xf32> to vector<8x64xf32>
    %36 = vector.extract_strided_slice %31 {offsets = [0, 128], sizes = [8, 64], strides = [1, 1]} : vector<16x192xf32> to vector<8x64xf32>
    %37 = tpu.concatenate %34, %34, %34, %34, %34, %34, %34, %34, %34, %34, %34, %34, %34, %34, %34, %34 in 0 : vector<8x64xf32>, vector<8x64xf32>, vector<8x64xf32>, vector<8x64xf32>, vector<8x64xf32>, vector<8x64xf32>, vector<8x64xf32>, vector<8x64xf32>, vector<8x64xf32>, vector<8x64xf32>, vector<8x64xf32>, vector<8x64xf32>, vector<8x64xf32>, vector<8x64xf32>, vector<8x64xf32>, vector<8x64xf32> -> vector<128x64xf32>
    %38 = arith.mulf %37, %2 : vector<128x64xf32>
    %39 = arith.truncf %38 : vector<128x64xf32> to vector<128x64xbf16>
    %40 = arith.truncf %35 : vector<8x64xf32> to vector<8x64xbf16>
    %cst_35 = arith.constant dense<0.000000e+00> : vector<128x8xf32>
    %41 = tpu.matmul %39, %40, %cst_35 {dimension_numbers = #tpu.dot_dimension_numbers<[1], [1], [0], [0], [0, 0, 1, 0], [], []>} : vector<128x64xbf16>, vector<8x64xbf16>, vector<128x8xf32> -> vector<128x8xf32>
    %cst_36 = arith.constant dense<0xFF800000> : vector<128xf32>
    %42 = vector.multi_reduction <maximumf>, %41, %cst_36 [1] : vector<128x8xf32> to vector<128xf32>
    %43 = vector.shape_cast %42 : vector<128xf32> to vector<128x1xf32>
    %44 = vector.broadcast %43 : vector<128x1xf32> to vector<128x8xf32>
    %45 = arith.subf %41, %44 : vector<128x8xf32>
    %46 = math.exp %45 : vector<128x8xf32>
    %cst_37 = arith.constant dense<0.000000e+00> : vector<128xf32>
    %47 = vector.multi_reduction <add>, %46, %cst_37 [1] : vector<128x8xf32> to vector<128xf32>
    %48 = vector.shape_cast %47 : vector<128xf32> to vector<128x1xf32>
    %49 = tpu.reciprocal %48 {approx = true} : vector<128x1xf32> -> vector<128x1xf32>
    %50 = vector.broadcast %49 : vector<128x1xf32> to vector<128x8xf32>
    %51 = arith.mulf %46, %50 : vector<128x8xf32>
    %52 = arith.truncf %51 : vector<128x8xf32> to vector<128x8xbf16>
    %53 = arith.truncf %36 : vector<8x64xf32> to vector<8x64xbf16>
    %cst_38 = arith.constant dense<0.000000e+00> : vector<128x64xf32>
    %54 = tpu.matmul %52, %53, %cst_38 {dimension_numbers = #tpu.dot_dimension_numbers<[1], [0], [0], [1], [0, 0, 1, 1], [], []>} : vector<128x8xbf16>, vector<8x64xbf16>, vector<128x64xf32> -> vector<128x64xf32>
    %55 = arith.mulf %54, %2 : vector<128x64xf32>
    %56 = vector.extract_strided_slice %55 {offsets = [0, 0], sizes = [8, 64], strides = [1, 1]} : vector<128x64xf32> to vector<8x64xf32>
    %57 = vector.extract_strided_slice %55 {offsets = [8, 0], sizes = [8, 64], strides = [1, 1]} : vector<128x64xf32> to vector<8x64xf32>
    %58 = vector.extract_strided_slice %55 {offsets = [16, 0], sizes = [8, 64], strides = [1, 1]} : vector<128x64xf32> to vector<8x64xf32>
    %59 = vector.extract_strided_slice %55 {offsets = [24, 0], sizes = [8, 64], strides = [1, 1]} : vector<128x64xf32> to vector<8x64xf32>
    %60 = vector.extract_strided_slice %55 {offsets = [32, 0], sizes = [8, 64], strides = [1, 1]} : vector<128x64xf32> to vector<8x64xf32>
    %61 = vector.extract_strided_slice %55 {offsets = [40, 0], sizes = [8, 64], strides = [1, 1]} : vector<128x64xf32> to vector<8x64xf32>
    %62 = vector.extract_strided_slice %55 {offsets = [48, 0], sizes = [8, 64], strides = [1, 1]} : vector<128x64xf32> to vector<8x64xf32>
    %63 = vector.extract_strided_slice %55 {offsets = [56, 0], sizes = [8, 64], strides = [1, 1]} : vector<128x64xf32> to vector<8x64xf32>
    %64 = vector.extract_strided_slice %55 {offsets = [64, 0], sizes = [8, 64], strides = [1, 1]} : vector<128x64xf32> to vector<8x64xf32>
    %65 = vector.extract_strided_slice %55 {offsets = [72, 0], sizes = [8, 64], strides = [1, 1]} : vector<128x64xf32> to vector<8x64xf32>
    %66 = vector.extract_strided_slice %55 {offsets = [80, 0], sizes = [8, 64], strides = [1, 1]} : vector<128x64xf32> to vector<8x64xf32>
    %67 = vector.extract_strided_slice %55 {offsets = [88, 0], sizes = [8, 64], strides = [1, 1]} : vector<128x64xf32> to vector<8x64xf32>
    %68 = vector.extract_strided_slice %55 {offsets = [96, 0], sizes = [8, 64], strides = [1, 1]} : vector<128x64xf32> to vector<8x64xf32>
    %69 = vector.extract_strided_slice %55 {offsets = [104, 0], sizes = [8, 64], strides = [1, 1]} : vector<128x64xf32> to vector<8x64xf32>
    %70 = vector.extract_strided_slice %55 {offsets = [112, 0], sizes = [8, 64], strides = [1, 1]} : vector<128x64xf32> to vector<8x64xf32>
    %71 = vector.extract_strided_slice %55 {offsets = [120, 0], sizes = [8, 64], strides = [1, 1]} : vector<128x64xf32> to vector<8x64xf32>
    %72 = arith.addf %56, %57 : vector<8x64xf32>
    %73 = arith.addf %58, %59 : vector<8x64xf32>
    %74 = arith.addf %60, %61 : vector<8x64xf32>
    %75 = arith.addf %62, %63 : vector<8x64xf32>
    %76 = arith.addf %64, %65 : vector<8x64xf32>
    %77 = arith.addf %66, %67 : vector<8x64xf32>
    %78 = arith.addf %68, %69 : vector<8x64xf32>
    %79 = arith.addf %70, %71 : vector<8x64xf32>
    %80 = arith.addf %72, %73 : vector<8x64xf32>
    %81 = arith.addf %74, %75 : vector<8x64xf32>
    %82 = arith.addf %76, %77 : vector<8x64xf32>
    %83 = arith.addf %78, %79 : vector<8x64xf32>
    %84 = arith.addf %80, %81 : vector<8x64xf32>
    %85 = arith.addf %82, %83 : vector<8x64xf32>
    %86 = arith.addf %84, %85 : vector<8x64xf32>
    %87 = vector.extract_strided_slice %31 {offsets = [8, 0], sizes = [8, 64], strides = [1, 1]} : vector<16x192xf32> to vector<8x64xf32>
    %cst_39 = arith.constant 5.000000e-01 : f32
    %88 = vector.broadcast %cst_39 : f32 to vector<8x64xf32>
    %89 = arith.mulf %87, %88 : vector<8x64xf32>
    %90 = vector.extract_strided_slice %31 {offsets = [8, 64], sizes = [8, 64], strides = [1, 1]} : vector<16x192xf32> to vector<8x64xf32>
    %91 = vector.extract_strided_slice %31 {offsets = [8, 128], sizes = [8, 64], strides = [1, 1]} : vector<16x192xf32> to vector<8x64xf32>
    %92 = tpu.concatenate %89, %89, %89, %89, %89, %89, %89, %89, %89, %89, %89, %89, %89, %89, %89, %89 in 0 : vector<8x64xf32>, vector<8x64xf32>, vector<8x64xf32>, vector<8x64xf32>, vector<8x64xf32>, vector<8x64xf32>, vector<8x64xf32>, vector<8x64xf32>, vector<8x64xf32>, vector<8x64xf32>, vector<8x64xf32>, vector<8x64xf32>, vector<8x64xf32>, vector<8x64xf32>, vector<8x64xf32>, vector<8x64xf32> -> vector<128x64xf32>
    %93 = arith.mulf %92, %2 : vector<128x64xf32>
    %94 = arith.truncf %93 : vector<128x64xf32> to vector<128x64xbf16>
    %95 = arith.truncf %90 : vector<8x64xf32> to vector<8x64xbf16>
    %cst_40 = arith.constant dense<0.000000e+00> : vector<128x8xf32>
    %96 = tpu.matmul %94, %95, %cst_40 {dimension_numbers = #tpu.dot_dimension_numbers<[1], [1], [0], [0], [0, 0, 1, 0], [], []>} : vector<128x64xbf16>, vector<8x64xbf16>, vector<128x8xf32> -> vector<128x8xf32>
    %cst_41 = arith.constant dense<0xFF800000> : vector<128xf32>
    %97 = vector.multi_reduction <maximumf>, %96, %cst_41 [1] : vector<128x8xf32> to vector<128xf32>
    %98 = vector.shape_cast %97 : vector<128xf32> to vector<128x1xf32>
    %99 = vector.broadcast %98 : vector<128x1xf32> to vector<128x8xf32>
    %100 = arith.subf %96, %99 : vector<128x8xf32>
    %101 = math.exp %100 : vector<128x8xf32>
    %cst_42 = arith.constant dense<0.000000e+00> : vector<128xf32>
    %102 = vector.multi_reduction <add>, %101, %cst_42 [1] : vector<128x8xf32> to vector<128xf32>
    %103 = vector.shape_cast %102 : vector<128xf32> to vector<128x1xf32>
    %104 = tpu.reciprocal %103 {approx = true} : vector<128x1xf32> -> vector<128x1xf32>
    %105 = vector.broadcast %104 : vector<128x1xf32> to vector<128x8xf32>
    %106 = arith.mulf %101, %105 : vector<128x8xf32>
    %107 = arith.truncf %106 : vector<128x8xf32> to vector<128x8xbf16>
    %108 = arith.truncf %91 : vector<8x64xf32> to vector<8x64xbf16>
    %cst_43 = arith.constant dense<0.000000e+00> : vector<128x64xf32>
    %109 = tpu.matmul %107, %108, %cst_43 {dimension_numbers = #tpu.dot_dimension_numbers<[1], [0], [0], [1], [0, 0, 1, 1], [], []>} : vector<128x8xbf16>, vector<8x64xbf16>, vector<128x64xf32> -> vector<128x64xf32>
    %110 = arith.mulf %109, %2 : vector<128x64xf32>
    %111 = vector.extract_strided_slice %110 {offsets = [0, 0], sizes = [8, 64], strides = [1, 1]} : vector<128x64xf32> to vector<8x64xf32>
    %112 = vector.extract_strided_slice %110 {offsets = [8, 0], sizes = [8, 64], strides = [1, 1]} : vector<128x64xf32> to vector<8x64xf32>
    %113 = vector.extract_strided_slice %110 {offsets = [16, 0], sizes = [8, 64], strides = [1, 1]} : vector<128x64xf32> to vector<8x64xf32>
    %114 = vector.extract_strided_slice %110 {offsets = [24, 0], sizes = [8, 64], strides = [1, 1]} : vector<128x64xf32> to vector<8x64xf32>
    %115 = vector.extract_strided_slice %110 {offsets = [32, 0], sizes = [8, 64], strides = [1, 1]} : vector<128x64xf32> to vector<8x64xf32>
    %116 = vector.extract_strided_slice %110 {offsets = [40, 0], sizes = [8, 64], strides = [1, 1]} : vector<128x64xf32> to vector<8x64xf32>
    %117 = vector.extract_strided_slice %110 {offsets = [48, 0], sizes = [8, 64], strides = [1, 1]} : vector<128x64xf32> to vector<8x64xf32>
    %118 = vector.extract_strided_slice %110 {offsets = [56, 0], sizes = [8, 64], strides = [1, 1]} : vector<128x64xf32> to vector<8x64xf32>
    %119 = vector.extract_strided_slice %110 {offsets = [64, 0], sizes = [8, 64], strides = [1, 1]} : vector<128x64xf32> to vector<8x64xf32>
    %120 = vector.extract_strided_slice %110 {offsets = [72, 0], sizes = [8, 64], strides = [1, 1]} : vector<128x64xf32> to vector<8x64xf32>
    %121 = vector.extract_strided_slice %110 {offsets = [80, 0], sizes = [8, 64], strides = [1, 1]} : vector<128x64xf32> to vector<8x64xf32>
    %122 = vector.extract_strided_slice %110 {offsets = [88, 0], sizes = [8, 64], strides = [1, 1]} : vector<128x64xf32> to vector<8x64xf32>
    %123 = vector.extract_strided_slice %110 {offsets = [96, 0], sizes = [8, 64], strides = [1, 1]} : vector<128x64xf32> to vector<8x64xf32>
    %124 = vector.extract_strided_slice %110 {offsets = [104, 0], sizes = [8, 64], strides = [1, 1]} : vector<128x64xf32> to vector<8x64xf32>
    %125 = vector.extract_strided_slice %110 {offsets = [112, 0], sizes = [8, 64], strides = [1, 1]} : vector<128x64xf32> to vector<8x64xf32>
    %126 = vector.extract_strided_slice %110 {offsets = [120, 0], sizes = [8, 64], strides = [1, 1]} : vector<128x64xf32> to vector<8x64xf32>
    %127 = arith.addf %111, %112 : vector<8x64xf32>
    %128 = arith.addf %113, %114 : vector<8x64xf32>
    %129 = arith.addf %115, %116 : vector<8x64xf32>
    %130 = arith.addf %117, %118 : vector<8x64xf32>
    %131 = arith.addf %119, %120 : vector<8x64xf32>
    %132 = arith.addf %121, %122 : vector<8x64xf32>
    %133 = arith.addf %123, %124 : vector<8x64xf32>
    %134 = arith.addf %125, %126 : vector<8x64xf32>
    %135 = arith.addf %127, %128 : vector<8x64xf32>
    %136 = arith.addf %129, %130 : vector<8x64xf32>
    %137 = arith.addf %131, %132 : vector<8x64xf32>
    %138 = arith.addf %133, %134 : vector<8x64xf32>
    %139 = arith.addf %135, %136 : vector<8x64xf32>
    %140 = arith.addf %137, %138 : vector<8x64xf32>
    %141 = arith.addf %139, %140 : vector<8x64xf32>
    %142 = tpu.concatenate %86, %141 in 0 : vector<8x64xf32>, vector<8x64xf32> -> vector<16x64xf32>
    %143 = arith.truncf %142 : vector<16x64xf32> to vector<16x64xbf16>
    %cst_44 = arith.constant dense<0.000000e+00> : vector<16x64xf32>
    %144 = tpu.matmul %143, %4, %cst_44 {dimension_numbers = #tpu.dot_dimension_numbers<[1], [0], [0], [1], [0, 0, 1, 1], [], []>} : vector<16x64xbf16>, vector<64x64xbf16>, vector<16x64xf32> -> vector<16x64xf32>
    %145 = vector.broadcast %14 : vector<1x64xf32> to vector<16x64xf32>
    %146 = arith.addf %144, %145 : vector<16x64xf32>
    %147 = arith.addf %0, %146 : vector<16x64xf32>
    %cst_45 = arith.constant dense<0.000000e+00> : vector<16xf32>
    %148 = vector.multi_reduction <add>, %147, %cst_45 [1] : vector<16x64xf32> to vector<16xf32>
    %149 = vector.shape_cast %148 : vector<16xf32> to vector<16x1xf32>
    %cst_46 = arith.constant 6.400000e+01 : f32
    %150 = vector.broadcast %cst_46 : f32 to vector<16x1xf32>
    %151 = arith.divf %149, %150 : vector<16x1xf32>
    %152 = vector.broadcast %151 : vector<16x1xf32> to vector<16x64xf32>
    %153 = arith.subf %147, %152 : vector<16x64xf32>
    %154 = arith.mulf %153, %153 : vector<16x64xf32>
    %cst_47 = arith.constant dense<0.000000e+00> : vector<16xf32>
    %155 = vector.multi_reduction <add>, %154, %cst_47 [1] : vector<16x64xf32> to vector<16xf32>
    %156 = vector.shape_cast %155 : vector<16xf32> to vector<16x1xf32>
    %cst_48 = arith.constant 6.400000e+01 : f32
    %157 = vector.broadcast %cst_48 : f32 to vector<16x1xf32>
    %158 = arith.divf %156, %157 : vector<16x1xf32>
    %159 = vector.broadcast %151 : vector<16x1xf32> to vector<16x64xf32>
    %160 = arith.subf %147, %159 : vector<16x64xf32>
    %cst_49 = arith.constant 9.99999974E-6 : f32
    %161 = vector.broadcast %cst_49 : f32 to vector<16x1xf32>
    %162 = arith.addf %158, %161 : vector<16x1xf32>
    %163 = math.rsqrt %162 : vector<16x1xf32>
    %164 = vector.broadcast %163 : vector<16x1xf32> to vector<16x64xf32>
    %165 = arith.mulf %160, %164 : vector<16x64xf32>
    %166 = vector.broadcast %15 : vector<1x64xf32> to vector<16x64xf32>
    %167 = arith.mulf %165, %166 : vector<16x64xf32>
    %168 = vector.broadcast %16 : vector<1x64xf32> to vector<16x64xf32>
    %169 = arith.addf %167, %168 : vector<16x64xf32>
    %cst_50 = arith.constant dense<0.000000e+00> : vector<12x64xf32>
    %170 = tpu.matmul %1, %11, %cst_50 {dimension_numbers = #tpu.dot_dimension_numbers<[1], [0], [0], [1], [0, 0, 1, 1], [], []>} : vector<12x768xbf16>, vector<768x64xbf16>, vector<12x64xf32> -> vector<12x64xf32>
    %171 = vector.broadcast %17 : vector<1x64xf32> to vector<12x64xf32>
    %172 = arith.addf %170, %171 : vector<12x64xf32>
    %173 = arith.truncf %169 : vector<16x64xf32> to vector<16x64xbf16>
    %cst_51 = arith.constant dense<0.000000e+00> : vector<16x64xf32>
    %174 = tpu.matmul %173, %5, %cst_51 {dimension_numbers = #tpu.dot_dimension_numbers<[1], [0], [0], [1], [0, 0, 1, 1], [], []>} : vector<16x64xbf16>, vector<64x64xbf16>, vector<16x64xf32> -> vector<16x64xf32>
    %175 = vector.broadcast %18 : vector<1x64xf32> to vector<16x64xf32>
    %176 = arith.addf %174, %175 : vector<16x64xf32>
    %cst_52 = arith.constant 5.000000e-01 : f32
    %177 = vector.broadcast %cst_52 : f32 to vector<16x64xf32>
    %178 = arith.mulf %176, %177 : vector<16x64xf32>
    %179 = arith.truncf %172 : vector<12x64xf32> to vector<12x64xbf16>
    %cst_53 = arith.constant dense<0.000000e+00> : vector<12x64xf32>
    %180 = tpu.matmul %179, %6, %cst_53 {dimension_numbers = #tpu.dot_dimension_numbers<[1], [0], [0], [1], [0, 0, 1, 1], [], []>} : vector<12x64xbf16>, vector<64x64xbf16>, vector<12x64xf32> -> vector<12x64xf32>
    %181 = vector.broadcast %19 : vector<1x64xf32> to vector<12x64xf32>
    %182 = arith.addf %180, %181 : vector<12x64xf32>
    %183 = arith.truncf %172 : vector<12x64xf32> to vector<12x64xbf16>
    %cst_54 = arith.constant dense<0.000000e+00> : vector<12x64xf32>
    %184 = tpu.matmul %183, %7, %cst_54 {dimension_numbers = #tpu.dot_dimension_numbers<[1], [0], [0], [1], [0, 0, 1, 1], [], []>} : vector<12x64xbf16>, vector<64x64xbf16>, vector<12x64xf32> -> vector<12x64xf32>
    %185 = vector.broadcast %20 : vector<1x64xf32> to vector<12x64xf32>
    %186 = arith.addf %184, %185 : vector<12x64xf32>
    %187 = vector.extract_strided_slice %178 {offsets = [0, 0], sizes = [8, 64], strides = [1, 1]} : vector<16x64xf32> to vector<8x64xf32>
    %188 = vector.extract_strided_slice %182 {offsets = [0, 0], sizes = [6, 64], strides = [1, 1]} : vector<12x64xf32> to vector<6x64xf32>
    %189 = vector.extract_strided_slice %186 {offsets = [0, 0], sizes = [6, 64], strides = [1, 1]} : vector<12x64xf32> to vector<6x64xf32>
    %190 = tpu.concatenate %187, %187, %187, %187, %187, %187, %187, %187, %187, %187, %187, %187, %187, %187, %187, %187 in 0 : vector<8x64xf32>, vector<8x64xf32>, vector<8x64xf32>, vector<8x64xf32>, vector<8x64xf32>, vector<8x64xf32>, vector<8x64xf32>, vector<8x64xf32>, vector<8x64xf32>, vector<8x64xf32>, vector<8x64xf32>, vector<8x64xf32>, vector<8x64xf32>, vector<8x64xf32>, vector<8x64xf32>, vector<8x64xf32> -> vector<128x64xf32>
    %191 = arith.mulf %190, %2 : vector<128x64xf32>
    %192 = arith.truncf %191 : vector<128x64xf32> to vector<128x64xbf16>
    %193 = arith.truncf %188 : vector<6x64xf32> to vector<6x64xbf16>
    %cst_55 = arith.constant dense<0.000000e+00> : vector<128x6xf32>
    %194 = tpu.matmul %192, %193, %cst_55 {dimension_numbers = #tpu.dot_dimension_numbers<[1], [1], [0], [0], [0, 0, 1, 0], [], []>} : vector<128x64xbf16>, vector<6x64xbf16>, vector<128x6xf32> -> vector<128x6xf32>
    %cst_56 = arith.constant dense<0xFF800000> : vector<128xf32>
    %195 = vector.multi_reduction <maximumf>, %194, %cst_56 [1] : vector<128x6xf32> to vector<128xf32>
    %196 = vector.shape_cast %195 : vector<128xf32> to vector<128x1xf32>
    %197 = vector.broadcast %196 : vector<128x1xf32> to vector<128x6xf32>
    %198 = arith.subf %194, %197 : vector<128x6xf32>
    %199 = math.exp %198 : vector<128x6xf32>
    %cst_57 = arith.constant dense<0.000000e+00> : vector<128xf32>
    %200 = vector.multi_reduction <add>, %199, %cst_57 [1] : vector<128x6xf32> to vector<128xf32>
    %201 = vector.shape_cast %200 : vector<128xf32> to vector<128x1xf32>
    %202 = tpu.reciprocal %201 {approx = true} : vector<128x1xf32> -> vector<128x1xf32>
    %203 = vector.broadcast %202 : vector<128x1xf32> to vector<128x6xf32>
    %204 = arith.mulf %199, %203 : vector<128x6xf32>
    %205 = arith.truncf %204 : vector<128x6xf32> to vector<128x6xbf16>
    %206 = arith.truncf %189 : vector<6x64xf32> to vector<6x64xbf16>
    %cst_58 = arith.constant dense<0.000000e+00> : vector<128x64xf32>
    %207 = tpu.matmul %205, %206, %cst_58 {dimension_numbers = #tpu.dot_dimension_numbers<[1], [0], [0], [1], [0, 0, 1, 1], [], []>} : vector<128x6xbf16>, vector<6x64xbf16>, vector<128x64xf32> -> vector<128x64xf32>
    %208 = arith.mulf %207, %2 : vector<128x64xf32>
    %209 = vector.extract_strided_slice %208 {offsets = [0, 0], sizes = [8, 64], strides = [1, 1]} : vector<128x64xf32> to vector<8x64xf32>
    %210 = vector.extract_strided_slice %208 {offsets = [8, 0], sizes = [8, 64], strides = [1, 1]} : vector<128x64xf32> to vector<8x64xf32>
    %211 = vector.extract_strided_slice %208 {offsets = [16, 0], sizes = [8, 64], strides = [1, 1]} : vector<128x64xf32> to vector<8x64xf32>
    %212 = vector.extract_strided_slice %208 {offsets = [24, 0], sizes = [8, 64], strides = [1, 1]} : vector<128x64xf32> to vector<8x64xf32>
    %213 = vector.extract_strided_slice %208 {offsets = [32, 0], sizes = [8, 64], strides = [1, 1]} : vector<128x64xf32> to vector<8x64xf32>
    %214 = vector.extract_strided_slice %208 {offsets = [40, 0], sizes = [8, 64], strides = [1, 1]} : vector<128x64xf32> to vector<8x64xf32>
    %215 = vector.extract_strided_slice %208 {offsets = [48, 0], sizes = [8, 64], strides = [1, 1]} : vector<128x64xf32> to vector<8x64xf32>
    %216 = vector.extract_strided_slice %208 {offsets = [56, 0], sizes = [8, 64], strides = [1, 1]} : vector<128x64xf32> to vector<8x64xf32>
    %217 = vector.extract_strided_slice %208 {offsets = [64, 0], sizes = [8, 64], strides = [1, 1]} : vector<128x64xf32> to vector<8x64xf32>
    %218 = vector.extract_strided_slice %208 {offsets = [72, 0], sizes = [8, 64], strides = [1, 1]} : vector<128x64xf32> to vector<8x64xf32>
    %219 = vector.extract_strided_slice %208 {offsets = [80, 0], sizes = [8, 64], strides = [1, 1]} : vector<128x64xf32> to vector<8x64xf32>
    %220 = vector.extract_strided_slice %208 {offsets = [88, 0], sizes = [8, 64], strides = [1, 1]} : vector<128x64xf32> to vector<8x64xf32>
    %221 = vector.extract_strided_slice %208 {offsets = [96, 0], sizes = [8, 64], strides = [1, 1]} : vector<128x64xf32> to vector<8x64xf32>
    %222 = vector.extract_strided_slice %208 {offsets = [104, 0], sizes = [8, 64], strides = [1, 1]} : vector<128x64xf32> to vector<8x64xf32>
    %223 = vector.extract_strided_slice %208 {offsets = [112, 0], sizes = [8, 64], strides = [1, 1]} : vector<128x64xf32> to vector<8x64xf32>
    %224 = vector.extract_strided_slice %208 {offsets = [120, 0], sizes = [8, 64], strides = [1, 1]} : vector<128x64xf32> to vector<8x64xf32>
    %225 = arith.addf %209, %210 : vector<8x64xf32>
    %226 = arith.addf %211, %212 : vector<8x64xf32>
    %227 = arith.addf %213, %214 : vector<8x64xf32>
    %228 = arith.addf %215, %216 : vector<8x64xf32>
    %229 = arith.addf %217, %218 : vector<8x64xf32>
    %230 = arith.addf %219, %220 : vector<8x64xf32>
    %231 = arith.addf %221, %222 : vector<8x64xf32>
    %232 = arith.addf %223, %224 : vector<8x64xf32>
    %233 = arith.addf %225, %226 : vector<8x64xf32>
    %234 = arith.addf %227, %228 : vector<8x64xf32>
    %235 = arith.addf %229, %230 : vector<8x64xf32>
    %236 = arith.addf %231, %232 : vector<8x64xf32>
    %237 = arith.addf %233, %234 : vector<8x64xf32>
    %238 = arith.addf %235, %236 : vector<8x64xf32>
    %239 = arith.addf %237, %238 : vector<8x64xf32>
    %240 = vector.extract_strided_slice %178 {offsets = [8, 0], sizes = [8, 64], strides = [1, 1]} : vector<16x64xf32> to vector<8x64xf32>
    %241 = vector.extract_strided_slice %182 {offsets = [6, 0], sizes = [6, 64], strides = [1, 1]} : vector<12x64xf32> to vector<6x64xf32>
    %242 = vector.extract_strided_slice %186 {offsets = [6, 0], sizes = [6, 64], strides = [1, 1]} : vector<12x64xf32> to vector<6x64xf32>
    %243 = tpu.concatenate %240, %240, %240, %240, %240, %240, %240, %240, %240, %240, %240, %240, %240, %240, %240, %240 in 0 : vector<8x64xf32>, vector<8x64xf32>, vector<8x64xf32>, vector<8x64xf32>, vector<8x64xf32>, vector<8x64xf32>, vector<8x64xf32>, vector<8x64xf32>, vector<8x64xf32>, vector<8x64xf32>, vector<8x64xf32>, vector<8x64xf32>, vector<8x64xf32>, vector<8x64xf32>, vector<8x64xf32>, vector<8x64xf32> -> vector<128x64xf32>
    %244 = arith.mulf %243, %2 : vector<128x64xf32>
    %245 = arith.truncf %244 : vector<128x64xf32> to vector<128x64xbf16>
    %246 = arith.truncf %241 : vector<6x64xf32> to vector<6x64xbf16>
    %cst_59 = arith.constant dense<0.000000e+00> : vector<128x6xf32>
    %247 = tpu.matmul %245, %246, %cst_59 {dimension_numbers = #tpu.dot_dimension_numbers<[1], [1], [0], [0], [0, 0, 1, 0], [], []>} : vector<128x64xbf16>, vector<6x64xbf16>, vector<128x6xf32> -> vector<128x6xf32>
    %cst_60 = arith.constant dense<0xFF800000> : vector<128xf32>
    %248 = vector.multi_reduction <maximumf>, %247, %cst_60 [1] : vector<128x6xf32> to vector<128xf32>
    %249 = vector.shape_cast %248 : vector<128xf32> to vector<128x1xf32>
    %250 = vector.broadcast %249 : vector<128x1xf32> to vector<128x6xf32>
    %251 = arith.subf %247, %250 : vector<128x6xf32>
    %252 = math.exp %251 : vector<128x6xf32>
    %cst_61 = arith.constant dense<0.000000e+00> : vector<128xf32>
    %253 = vector.multi_reduction <add>, %252, %cst_61 [1] : vector<128x6xf32> to vector<128xf32>
    %254 = vector.shape_cast %253 : vector<128xf32> to vector<128x1xf32>
    %255 = tpu.reciprocal %254 {approx = true} : vector<128x1xf32> -> vector<128x1xf32>
    %256 = vector.broadcast %255 : vector<128x1xf32> to vector<128x6xf32>
    %257 = arith.mulf %252, %256 : vector<128x6xf32>
    %258 = arith.truncf %257 : vector<128x6xf32> to vector<128x6xbf16>
    %259 = arith.truncf %242 : vector<6x64xf32> to vector<6x64xbf16>
    %cst_62 = arith.constant dense<0.000000e+00> : vector<128x64xf32>
    %260 = tpu.matmul %258, %259, %cst_62 {dimension_numbers = #tpu.dot_dimension_numbers<[1], [0], [0], [1], [0, 0, 1, 1], [], []>} : vector<128x6xbf16>, vector<6x64xbf16>, vector<128x64xf32> -> vector<128x64xf32>
    %261 = arith.mulf %260, %2 : vector<128x64xf32>
    %262 = vector.extract_strided_slice %261 {offsets = [0, 0], sizes = [8, 64], strides = [1, 1]} : vector<128x64xf32> to vector<8x64xf32>
    %263 = vector.extract_strided_slice %261 {offsets = [8, 0], sizes = [8, 64], strides = [1, 1]} : vector<128x64xf32> to vector<8x64xf32>
    %264 = vector.extract_strided_slice %261 {offsets = [16, 0], sizes = [8, 64], strides = [1, 1]} : vector<128x64xf32> to vector<8x64xf32>
    %265 = vector.extract_strided_slice %261 {offsets = [24, 0], sizes = [8, 64], strides = [1, 1]} : vector<128x64xf32> to vector<8x64xf32>
    %266 = vector.extract_strided_slice %261 {offsets = [32, 0], sizes = [8, 64], strides = [1, 1]} : vector<128x64xf32> to vector<8x64xf32>
    %267 = vector.extract_strided_slice %261 {offsets = [40, 0], sizes = [8, 64], strides = [1, 1]} : vector<128x64xf32> to vector<8x64xf32>
    %268 = vector.extract_strided_slice %261 {offsets = [48, 0], sizes = [8, 64], strides = [1, 1]} : vector<128x64xf32> to vector<8x64xf32>
    %269 = vector.extract_strided_slice %261 {offsets = [56, 0], sizes = [8, 64], strides = [1, 1]} : vector<128x64xf32> to vector<8x64xf32>
    %270 = vector.extract_strided_slice %261 {offsets = [64, 0], sizes = [8, 64], strides = [1, 1]} : vector<128x64xf32> to vector<8x64xf32>
    %271 = vector.extract_strided_slice %261 {offsets = [72, 0], sizes = [8, 64], strides = [1, 1]} : vector<128x64xf32> to vector<8x64xf32>
    %272 = vector.extract_strided_slice %261 {offsets = [80, 0], sizes = [8, 64], strides = [1, 1]} : vector<128x64xf32> to vector<8x64xf32>
    %273 = vector.extract_strided_slice %261 {offsets = [88, 0], sizes = [8, 64], strides = [1, 1]} : vector<128x64xf32> to vector<8x64xf32>
    %274 = vector.extract_strided_slice %261 {offsets = [96, 0], sizes = [8, 64], strides = [1, 1]} : vector<128x64xf32> to vector<8x64xf32>
    %275 = vector.extract_strided_slice %261 {offsets = [104, 0], sizes = [8, 64], strides = [1, 1]} : vector<128x64xf32> to vector<8x64xf32>
    %276 = vector.extract_strided_slice %261 {offsets = [112, 0], sizes = [8, 64], strides = [1, 1]} : vector<128x64xf32> to vector<8x64xf32>
    %277 = vector.extract_strided_slice %261 {offsets = [120, 0], sizes = [8, 64], strides = [1, 1]} : vector<128x64xf32> to vector<8x64xf32>
    %278 = arith.addf %262, %263 : vector<8x64xf32>
    %279 = arith.addf %264, %265 : vector<8x64xf32>
    %280 = arith.addf %266, %267 : vector<8x64xf32>
    %281 = arith.addf %268, %269 : vector<8x64xf32>
    %282 = arith.addf %270, %271 : vector<8x64xf32>
    %283 = arith.addf %272, %273 : vector<8x64xf32>
    %284 = arith.addf %274, %275 : vector<8x64xf32>
    %285 = arith.addf %276, %277 : vector<8x64xf32>
    %286 = arith.addf %278, %279 : vector<8x64xf32>
    %287 = arith.addf %280, %281 : vector<8x64xf32>
    %288 = arith.addf %282, %283 : vector<8x64xf32>
    %289 = arith.addf %284, %285 : vector<8x64xf32>
    %290 = arith.addf %286, %287 : vector<8x64xf32>
    %291 = arith.addf %288, %289 : vector<8x64xf32>
    %292 = arith.addf %290, %291 : vector<8x64xf32>
    %293 = tpu.concatenate %239, %292 in 0 : vector<8x64xf32>, vector<8x64xf32> -> vector<16x64xf32>
    %294 = arith.truncf %293 : vector<16x64xf32> to vector<16x64xbf16>
    %cst_63 = arith.constant dense<0.000000e+00> : vector<16x64xf32>
    %295 = tpu.matmul %294, %8, %cst_63 {dimension_numbers = #tpu.dot_dimension_numbers<[1], [0], [0], [1], [0, 0, 1, 1], [], []>} : vector<16x64xbf16>, vector<64x64xbf16>, vector<16x64xf32> -> vector<16x64xf32>
    %296 = vector.broadcast %21 : vector<1x64xf32> to vector<16x64xf32>
    %297 = arith.addf %295, %296 : vector<16x64xf32>
    %298 = arith.addf %169, %297 : vector<16x64xf32>
    %cst_64 = arith.constant dense<0.000000e+00> : vector<16xf32>
    %299 = vector.multi_reduction <add>, %298, %cst_64 [1] : vector<16x64xf32> to vector<16xf32>
    %300 = vector.shape_cast %299 : vector<16xf32> to vector<16x1xf32>
    %cst_65 = arith.constant 6.400000e+01 : f32
    %301 = vector.broadcast %cst_65 : f32 to vector<16x1xf32>
    %302 = arith.divf %300, %301 : vector<16x1xf32>
    %303 = vector.broadcast %302 : vector<16x1xf32> to vector<16x64xf32>
    %304 = arith.subf %298, %303 : vector<16x64xf32>
    %305 = arith.mulf %304, %304 : vector<16x64xf32>
    %cst_66 = arith.constant dense<0.000000e+00> : vector<16xf32>
    %306 = vector.multi_reduction <add>, %305, %cst_66 [1] : vector<16x64xf32> to vector<16xf32>
    %307 = vector.shape_cast %306 : vector<16xf32> to vector<16x1xf32>
    %cst_67 = arith.constant 6.400000e+01 : f32
    %308 = vector.broadcast %cst_67 : f32 to vector<16x1xf32>
    %309 = arith.divf %307, %308 : vector<16x1xf32>
    %310 = vector.broadcast %302 : vector<16x1xf32> to vector<16x64xf32>
    %311 = arith.subf %298, %310 : vector<16x64xf32>
    %cst_68 = arith.constant 9.99999974E-6 : f32
    %312 = vector.broadcast %cst_68 : f32 to vector<16x1xf32>
    %313 = arith.addf %309, %312 : vector<16x1xf32>
    %314 = math.rsqrt %313 : vector<16x1xf32>
    %315 = vector.broadcast %314 : vector<16x1xf32> to vector<16x64xf32>
    %316 = arith.mulf %311, %315 : vector<16x64xf32>
    %317 = vector.broadcast %22 : vector<1x64xf32> to vector<16x64xf32>
    %318 = arith.mulf %316, %317 : vector<16x64xf32>
    %319 = vector.broadcast %23 : vector<1x64xf32> to vector<16x64xf32>
    %320 = arith.addf %318, %319 : vector<16x64xf32>
    %321 = arith.truncf %320 : vector<16x64xf32> to vector<16x64xbf16>
    %cst_69 = arith.constant dense<0.000000e+00> : vector<16x256xf32>
    %322 = tpu.matmul %321, %9, %cst_69 {dimension_numbers = #tpu.dot_dimension_numbers<[1], [0], [0], [1], [0, 0, 1, 1], [], []>} : vector<16x64xbf16>, vector<64x256xbf16>, vector<16x256xf32> -> vector<16x256xf32>
    %323 = vector.broadcast %24 : vector<1x256xf32> to vector<16x256xf32>
    %324 = arith.addf %322, %323 : vector<16x256xf32>
    %cst_70 = arith.constant 5.000000e-01 : f32
    %325 = vector.broadcast %cst_70 : f32 to vector<16x256xf32>
    %326 = arith.mulf %325, %324 : vector<16x256xf32>
    %cst_71 = arith.constant 0.707106769 : f32
    %327 = vector.broadcast %cst_71 : f32 to vector<16x256xf32>
    %328 = arith.mulf %324, %327 : vector<16x256xf32>
    %cst_72 = arith.constant 0.000000e+00 : f32
    %329 = vector.broadcast %cst_72 : f32 to vector<16x256xf32>
    %330 = arith.cmpf oge, %328, %329 : vector<16x256xf32>
    %cst_73 = arith.constant 1.000000e+00 : f32
    %cst_74 = arith.constant -1.000000e+00 : f32
    %331 = vector.broadcast %cst_73 : f32 to vector<16x256xf32>
    %332 = vector.broadcast %cst_74 : f32 to vector<16x256xf32>
    %333 = arith.select %330, %331, %332 : vector<16x256xi1>, vector<16x256xf32>
    %334 = math.absf %328 : vector<16x256xf32>
    %cst_75 = arith.constant 0.327591091 : f32
    %335 = vector.broadcast %cst_75 : f32 to vector<16x256xf32>
    %336 = arith.mulf %335, %334 : vector<16x256xf32>
    %cst_76 = arith.constant 1.000000e+00 : f32
    %337 = vector.broadcast %cst_76 : f32 to vector<16x256xf32>
    %338 = arith.addf %337, %336 : vector<16x256xf32>
    %cst_77 = arith.constant 1.000000e+00 : f32
    %339 = vector.broadcast %cst_77 : f32 to vector<16x256xf32>
    %340 = arith.divf %339, %338 : vector<16x256xf32>
    %cst_78 = arith.constant 1.06140542 : f32
    %341 = vector.broadcast %cst_78 : f32 to vector<16x256xf32>
    %342 = arith.mulf %341, %340 : vector<16x256xf32>
    %cst_79 = arith.constant -1.45315206 : f32
    %343 = vector.broadcast %cst_79 : f32 to vector<16x256xf32>
    %344 = arith.addf %342, %343 : vector<16x256xf32>
    %345 = arith.mulf %344, %340 : vector<16x256xf32>
    %cst_80 = arith.constant 1.42141378 : f32
    %346 = vector.broadcast %cst_80 : f32 to vector<16x256xf32>
    %347 = arith.addf %345, %346 : vector<16x256xf32>
    %348 = arith.mulf %347, %340 : vector<16x256xf32>
    %cst_81 = arith.constant -0.284496725 : f32
    %349 = vector.broadcast %cst_81 : f32 to vector<16x256xf32>
    %350 = arith.addf %348, %349 : vector<16x256xf32>
    %351 = arith.mulf %350, %340 : vector<16x256xf32>
    %cst_82 = arith.constant 0.254829586 : f32
    %352 = vector.broadcast %cst_82 : f32 to vector<16x256xf32>
    %353 = arith.addf %351, %352 : vector<16x256xf32>
    %354 = arith.mulf %353, %340 : vector<16x256xf32>
    %cst_83 = arith.constant 0.000000e+00 : f32
    %355 = vector.broadcast %cst_83 : f32 to vector<16x256xf32>
    %356 = arith.subf %355, %334 : vector<16x256xf32>
    %357 = arith.mulf %356, %334 : vector<16x256xf32>
    %358 = math.exp %357 : vector<16x256xf32>
    %359 = arith.mulf %354, %358 : vector<16x256xf32>
    %cst_84 = arith.constant 1.000000e+00 : f32
    %360 = vector.broadcast %cst_84 : f32 to vector<16x256xf32>
    %361 = arith.subf %360, %359 : vector<16x256xf32>
    %362 = arith.mulf %333, %361 : vector<16x256xf32>
    %cst_85 = arith.constant 1.000000e+00 : f32
    %363 = vector.broadcast %cst_85 : f32 to vector<16x256xf32>
    %364 = arith.addf %363, %362 : vector<16x256xf32>
    %365 = arith.mulf %326, %364 : vector<16x256xf32>
    %366 = arith.truncf %365 : vector<16x256xf32> to vector<16x256xbf16>
    %cst_86 = arith.constant dense<0.000000e+00> : vector<16x64xf32>
    %367 = tpu.matmul %366, %12, %cst_86 {dimension_numbers = #tpu.dot_dimension_numbers<[1], [0], [0], [1], [0, 0, 1, 1], [], []>} : vector<16x256xbf16>, vector<256x64xbf16>, vector<16x64xf32> -> vector<16x64xf32>
    %368 = vector.broadcast %25 : vector<1x64xf32> to vector<16x64xf32>
    %369 = arith.addf %367, %368 : vector<16x64xf32>
    %370 = arith.truncf %320 : vector<16x64xf32> to vector<16x64xbf16>
    %cst_87 = arith.constant dense<0.000000e+00> : vector<16x64xf32>
    %371 = tpu.matmul %370, %10, %cst_87 {dimension_numbers = #tpu.dot_dimension_numbers<[1], [0], [0], [1], [0, 0, 1, 1], [], []>} : vector<16x64xbf16>, vector<64x64xbf16>, vector<16x64xf32> -> vector<16x64xf32>
    %372 = arith.addf %320, %371 : vector<16x64xf32>
    %373 = arith.addf %320, %369 : vector<16x64xf32>
    %374 = arith.addf %373, %372 : vector<16x64xf32>
    %cst_88 = arith.constant dense<0.000000e+00> : vector<16xf32>
    %375 = vector.multi_reduction <add>, %374, %cst_88 [1] : vector<16x64xf32> to vector<16xf32>
    %376 = vector.shape_cast %375 : vector<16xf32> to vector<16x1xf32>
    %cst_89 = arith.constant 6.400000e+01 : f32
    %377 = vector.broadcast %cst_89 : f32 to vector<16x1xf32>
    %378 = arith.divf %376, %377 : vector<16x1xf32>
    %379 = vector.broadcast %378 : vector<16x1xf32> to vector<16x64xf32>
    %380 = arith.subf %374, %379 : vector<16x64xf32>
    %381 = arith.mulf %380, %380 : vector<16x64xf32>
    %cst_90 = arith.constant dense<0.000000e+00> : vector<16xf32>
    %382 = vector.multi_reduction <add>, %381, %cst_90 [1] : vector<16x64xf32> to vector<16xf32>
    %383 = vector.shape_cast %382 : vector<16xf32> to vector<16x1xf32>
    %cst_91 = arith.constant 6.400000e+01 : f32
    %384 = vector.broadcast %cst_91 : f32 to vector<16x1xf32>
    %385 = arith.divf %383, %384 : vector<16x1xf32>
    %386 = vector.broadcast %378 : vector<16x1xf32> to vector<16x64xf32>
    %387 = arith.subf %374, %386 : vector<16x64xf32>
    %cst_92 = arith.constant 9.99999974E-6 : f32
    %388 = vector.broadcast %cst_92 : f32 to vector<16x1xf32>
    %389 = arith.addf %385, %388 : vector<16x1xf32>
    %390 = math.rsqrt %389 : vector<16x1xf32>
    %391 = vector.broadcast %390 : vector<16x1xf32> to vector<16x64xf32>
    %392 = arith.mulf %387, %391 : vector<16x64xf32>
    %393 = vector.broadcast %26 : vector<1x64xf32> to vector<16x64xf32>
    %394 = arith.mulf %392, %393 : vector<16x64xf32>
    %395 = vector.broadcast %27 : vector<1x64xf32> to vector<16x64xf32>
    %396 = arith.addf %394, %395 : vector<16x64xf32>
    %c0_93 = arith.constant 0 : index
    %c0_94 = arith.constant 0 : index
    %397 = vector.load %arg7[%c0_93, %c0_94] : memref<16x64xf32, #tpu.memory_space<vmem>>, vector<16x64xf32>
    tpu.vector_store %arg7[%c0_93, %c0_94], %396 {strides = array<i32>} : memref<16x64xf32, #tpu.memory_space<vmem>>, vector<16x64xf32>,
    return
  }
  func.func @transform_0(%arg0: i32) -> (i32, i32) {
    %c0_i32 = arith.constant 0 : i32
    %c0_i32_0 = arith.constant 0 : i32
    return %arg0, %c0_i32 : i32, i32
  }
  func.func @transform_1(%arg0: i32) -> (i32, i32) {
    %c0_i32 = arith.constant 0 : i32
    %c0_i32_0 = arith.constant 0 : i32
    return %arg0, %c0_i32 : i32, i32
  }
  func.func @transform_2(%arg0: i32) -> (i32, i32) {
    %c0_i32 = arith.constant 0 : i32
    %c0_i32_0 = arith.constant 0 : i32
    %c0_i32_1 = arith.constant 0 : i32
    return %c0_i32, %c0_i32_0 : i32, i32
  }
  func.func @transform_3(%arg0: i32) -> (i32, i32) {
    %c0_i32 = arith.constant 0 : i32
    %c0_i32_0 = arith.constant 0 : i32
    %c0_i32_1 = arith.constant 0 : i32
    return %c0_i32, %c0_i32_0 : i32, i32
  }
  func.func @transform_4(%arg0: i32) -> (i32, i32) {
    %c0_i32 = arith.constant 0 : i32
    %c0_i32_0 = arith.constant 0 : i32
    %c0_i32_1 = arith.constant 0 : i32
    return %c0_i32, %c0_i32_0 : i32, i32
  }
  func.func @transform_5(%arg0: i32) -> (i32, i32) {
    %c0_i32 = arith.constant 0 : i32
    %c0_i32_0 = arith.constant 0 : i32
    %c0_i32_1 = arith.constant 0 : i32
    return %c0_i32, %c0_i32_0 : i32, i32
  }
  func.func @transform_6(%arg0: i32) -> (i32, i32) {
    %c0_i32 = arith.constant 0 : i32
    %c0_i32_0 = arith.constant 0 : i32
    return %arg0, %c0_i32 : i32, i32
  }
}

</mosaic_0001>

<llo_original>
// kernel: tpu_custom_call.1
$region0: #{tpu_custom_call.1}
  #allocation0 [shape = 'u32[]', space=smem, size = 0x4, offset = 0x4, fixed_abs, tag = 'smem constant byte address 0x4 - core index']
  #allocation1 [shape = 'u32[144,128]{1,0:T(1,128)}', space=vmem, size = 0x12000, scoped, tag = 'internal scratch']
  %s0 = inlined_call_operand.vmem [shape: f32[16,64], index: 0, kind: input, shape index: {}]
  %s1 = inlined_call_operand.vmem [shape: bf16[12,768], index: 1, kind: input, shape index: {}]
  %s2 = inlined_call_operand.vmem [shape: f32[128,64], index: 2, kind: input, shape index: {}]
  %s3 = inlined_call_operand.vmem [shape: bf16[64,1280], index: 3, kind: input, shape index: {}]
  %s4 = inlined_call_operand.vmem [shape: bf16[1024,64], index: 4, kind: input, shape index: {}]
  %s5 = inlined_call_operand.vmem [shape: f32[16,256], index: 5, kind: input, shape index: {}]
  %s6 = inlined_call_operand.hbm [shape: f32[16,64], index: 6, kind: output, shape index: {}]
  %s7 = sld [smem:[#allocation0]]
  $region34: #{tpu_custom_call.1} parent=0
    _
  %s9 = ssub.s32 1, %s7
  %s10 = scalar_select 0, %s9, %s7
  $region1: #{tpu_custom_call.1} parent=0
    #allocation2 [shape = 'u8[8192]{0}', space=vmem, size = 0x2000, scoped, tag = 'output window, operand 0, single buffered']
    #allocation3 [shape = 's32[1]{0}', space=sflag, size = 0x4, scoped, tag = 'scoped memory for tpu_custom_call.1']
    %11 = vsyncpa [#allocation3], 0
    // Predicated region
    $region2: #{tpu_custom_call.1} parent=1 // pred_check
      _
    $region3: #{tpu_custom_call.1} parent=1 // pred_check_branch
      %13 = sbr.rel (0) target = $region5
    $region4: #{tpu_custom_call.1} parent=1 // pred_region
      _
    $region5: #{tpu_custom_call.1} parent=1 // pred_fallthru
      _
    // Predicated region
    $region6: #{tpu_custom_call.1} parent=1 // pred_check
      _
    $region7: #{tpu_custom_call.1} parent=1 // pred_check_branch
      %15 = sbr.rel (0) target = $region9
    $region8: #{tpu_custom_call.1} parent=1 // pred_region
      _
    $region9: #{tpu_custom_call.1} parent=1 // pred_fallthru
      _
    // Predicated region
    $region10: #{tpu_custom_call.1} parent=1 // pred_check
      _
    $region11: #{tpu_custom_call.1} parent=1 // pred_check_branch
      %17 = sbr.rel (0) target = $region13
    $region12: #{tpu_custom_call.1} parent=1 // pred_region
      _
    $region13: #{tpu_custom_call.1} parent=1 // pred_fallthru
      _
    // Predicated region
    $region14: #{tpu_custom_call.1} parent=1 // pred_check
      _
    $region15: #{tpu_custom_call.1} parent=1 // pred_check_branch
      %19 = sbr.rel (0) target = $region17
    $region16: #{tpu_custom_call.1} parent=1 // pred_region
      _
    $region17: #{tpu_custom_call.1} parent=1 // pred_fallthru
      _
    // Predicated region
    $region18: #{tpu_custom_call.1} parent=1 // pred_check
      _
    $region19: #{tpu_custom_call.1} parent=1 // pred_check_branch
      %21 = sbr.rel (0) target = $region21
    $region20: #{tpu_custom_call.1} parent=1 // pred_region
      _
    $region21: #{tpu_custom_call.1} parent=1 // pred_fallthru
      _
    // Predicated region
    $region22: #{tpu_custom_call.1} parent=1 // pred_check
      _
    $region23: #{tpu_custom_call.1} parent=1 // pred_check_branch
      %23 = sbr.rel (0) target = $region25
    $region24: #{tpu_custom_call.1} parent=1 // pred_region
      _
    $region25: #{tpu_custom_call.1} parent=1 // pred_fallthru
      _
    %v25 = vld [vmem:[%s0] sm:$0xff]
    %v26 = vld [vmem:[%s0 + $0x8] sm:$0xff]
    %v27 = vld [vmem:[%s1] sm:$0xff]
    %v28 = vld [vmem:[%s1 + $0x8] sm:$0xff]
    %v29 = vld [vmem:[%s1 + $0x10] sm:$0xff]
    %v30 = vld [vmem:[%s1 + $0x18] sm:$0x33]
    %v31 = vld [vmem:[%s1 + $0x20] sm:$0x33]
    %v32 = vld [vmem:[%s1 + $0x28] sm:$0x33]
    %v33 = vld [vmem:[%s2] sm:$0xff]
    %v34 = vld [vmem:[%s2 + $0x8] sm:$0xff]
    %v35 = vld [vmem:[%s2 + $0x10] sm:$0xff]
    %v36 = vld [vmem:[%s2 + $0x18] sm:$0xff]
    %v37 = vld [vmem:[%s2 + $0x20] sm:$0xff]
    %v38 = vld [vmem:[%s2 + $0x28] sm:$0xff]
    %v39 = vld [vmem:[%s2 + $0x30] sm:$0xff]
    %v40 = vld [vmem:[%s2 + $0x38] sm:$0xff]
    %v41 = vld [vmem:[%s2 + $0x40] sm:$0xff]
    %v42 = vld [vmem:[%s2 + $0x48] sm:$0xff]
    %v43 = vld [vmem:[%s2 + $0x50] sm:$0xff]
    %v44 = vld [vmem:[%s2 + $0x58] sm:$0xff]
    %v45 = vld [vmem:[%s2 + $0x60] sm:$0xff]
    %v46 = vld [vmem:[%s2 + $0x68] sm:$0xff]
    %v47 = vld [vmem:[%s2 + $0x70] sm:$0xff]
    %v48 = vld [vmem:[%s2 + $0x78] sm:$0xff]
    %v49 = vld [vmem:[%s3] sm:$0xff]
    %v50 = vld [vmem:[%s3 + $0x28] sm:$0xff]
    %v51 = vld [vmem:[%s3 + $0x50] sm:$0xff]
    %v52 = vld [vmem:[%s3 + $0x78] sm:$0xff]
    %v53 = vld [vmem:[%s3 + $0xa0] sm:$0xff]
    %v54 = vld [vmem:[%s3 + $0xc8] sm:$0xff]
    %v55 = vld [vmem:[%s3 + $0xf0] sm:$0xff]
    %v56 = vld [vmem:[%s3 + $0x118] sm:$0xff]
    %v57 = vld [vmem:[%s3 + $0x8] sm:$0xf]
    %v58 = vld [vmem:[%s3 + $0x30] sm:$0xf]
    %v59 = vld [vmem:[%s3 + $0x58] sm:$0xf]
    %v60 = vld [vmem:[%s3 + $0x80] sm:$0xf]
    %v61 = vld [vmem:[%s3 + $0xa8] sm:$0xf]
    %v62 = vld [vmem:[%s3 + $0xd0] sm:$0xf]
    %v63 = vld [vmem:[%s3 + $0xf8] sm:$0xf]
    %v64 = vld [vmem:[%s3 + $0x120] sm:$0xf]
    %v65 = vld [vmem:[%s3 + $0xc] sm:$0xf]
    %v66 = vld [vmem:[%s3 + $0x34] sm:$0xf]
    %v67 = vld [vmem:[%s3 + $0x5c] sm:$0xf]
    %v68 = vld [vmem:[%s3 + $0x84] sm:$0xf]
    %v69 = vld [vmem:[%s3 + $0xac] sm:$0xf]
    %v70 = vld [vmem:[%s3 + $0xd4] sm:$0xf]
    %v71 = vld [vmem:[%s3 + $0xfc] sm:$0xf]
    %v72 = vld [vmem:[%s3 + $0x124] sm:$0xf]
    %v73 = vld [vmem:[%s3 + $0x10] sm:$0xf]
    %v74 = vld [vmem:[%s3 + $0x38] sm:$0xf]
    %v75 = vld [vmem:[%s3 + $0x60] sm:$0xf]
    %v76 = vld [vmem:[%s3 + $0x88] sm:$0xf]
    %v77 = vld [vmem:[%s3 + $0xb0] sm:$0xf]
    %v78 = vld [vmem:[%s3 + $0xd8] sm:$0xf]
    %v79 = vld [vmem:[%s3 + $0x100] sm:$0xf]
    %v80 = vld [vmem:[%s3 + $0x128] sm:$0xf]
    %v81 = vld [vmem:[%s3 + $0x14] sm:$0xf]
    %v82 = vld [vmem:[%s3 + $0x3c] sm:$0xf]
    %v83 = vld [vmem:[%s3 + $0x64] sm:$0xf]
    %v84 = vld [vmem:[%s3 + $0x8c] sm:$0xf]
    %v85 = vld [vmem:[%s3 + $0xb4] sm:$0xf]
    %v86 = vld [vmem:[%s3 + $0xdc] sm:$0xf]
    %v87 = vld [vmem:[%s3 + $0x104] sm:$0xf]
    %v88 = vld [vmem:[%s3 + $0x12c] sm:$0xf]
    %v89 = vld [vmem:[%s3 + $0x18] sm:$0xf]
    %v90 = vld [vmem:[%s3 + $0x40] sm:$0xf]
    %v91 = vld [vmem:[%s3 + $0x68] sm:$0xf]
    %v92 = vld [vmem:[%s3 + $0x90] sm:$0xf]
    %v93 = vld [vmem:[%s3 + $0xb8] sm:$0xf]
    %v94 = vld [vmem:[%s3 + $0xe0] sm:$0xf]
    %v95 = vld [vmem:[%s3 + $0x108] sm:$0xf]
    %v96 = vld [vmem:[%s3 + $0x130] sm:$0xf]
    %v97 = vld [vmem:[%s3 + $0x1c] sm:$0xff]
    %v98 = vld [vmem:[%s3 + $0x44] sm:$0xff]
    %v99 = vld [vmem:[%s3 + $0x6c] sm:$0xff]
    %v100 = vld [vmem:[%s3 + $0x94] sm:$0xff]
    %v101 = vld [vmem:[%s3 + $0xbc] sm:$0xff]
    %v102 = vld [vmem:[%s3 + $0xe4] sm:$0xff]
    %v103 = vld [vmem:[%s3 + $0x10c] sm:$0xff]
    %v104 = vld [vmem:[%s3 + $0x134] sm:$0xff]
    %v105 = vld [vmem:[%s3 + $0x24] sm:$0xf]
    %v106 = vld [vmem:[%s3 + $0x4c] sm:$0xf]
    %v107 = vld [vmem:[%s3 + $0x74] sm:$0xf]
    %v108 = vld [vmem:[%s3 + $0x9c] sm:$0xf]
    %v109 = vld [vmem:[%s3 + $0xc4] sm:$0xf]
    %v110 = vld [vmem:[%s3 + $0xec] sm:$0xf]
    %v111 = vld [vmem:[%s3 + $0x114] sm:$0xf]
    %v112 = vld [vmem:[%s3 + $0x13c] sm:$0xf]
    %v113 = vld [vmem:[%s4] sm:$0xf]
    %v114 = vld [vmem:[%s4 + $0x4] sm:$0xf]
    %v115 = vld [vmem:[%s4 + $0x8] sm:$0xf]
    %v116 = vld [vmem:[%s4 + $0xc] sm:$0xf]
    %v117 = vld [vmem:[%s4 + $0x10] sm:$0xf]
    %v118 = vld [vmem:[%s4 + $0x14] sm:$0xf]
    %v119 = vld [vmem:[%s4 + $0x18] sm:$0xf]
    %v120 = vld [vmem:[%s4 + $0x1c] sm:$0xf]
    %v121 = vld [vmem:[%s4 + $0x20] sm:$0xf]
    %v122 = vld [vmem:[%s4 + $0x24] sm:$0xf]
    %v123 = vld [vmem:[%s4 + $0x28] sm:$0xf]
    %v124 = vld [vmem:[%s4 + $0x2c] sm:$0xf]
    %v125 = vld [vmem:[%s4 + $0x30] sm:$0xf]
    %v126 = vld [vmem:[%s4 + $0x34] sm:$0xf]
    %v127 = vld [vmem:[%s4 + $0x38] sm:$0xf]
    %v128 = vld [vmem:[%s4 + $0x3c] sm:$0xf]
    %v129 = vld [vmem:[%s4 + $0x40] sm:$0xf]
    %v130 = vld [vmem:[%s4 + $0x44] sm:$0xf]
    %v131 = vld [vmem:[%s4 + $0x48] sm:$0xf]
    %v132 = vld [vmem:[%s4 + $0x4c] sm:$0xf]
    %v133 = vld [vmem:[%s4 + $0x50] sm:$0xf]
    %v134 = vld [vmem:[%s4 + $0x54] sm:$0xf]
    %v135 = vld [vmem:[%s4 + $0x58] sm:$0xf]
    %v136 = vld [vmem:[%s4 + $0x5c] sm:$0xf]
    %v137 = vld [vmem:[%s4 + $0x60] sm:$0xf]
    %v138 = vld [vmem:[%s4 + $0x64] sm:$0xf]
    %v139 = vld [vmem:[%s4 + $0x68] sm:$0xf]
    %v140 = vld [vmem:[%s4 + $0x6c] sm:$0xf]
    %v141 = vld [vmem:[%s4 + $0x70] sm:$0xf]
    %v142 = vld [vmem:[%s4 + $0x74] sm:$0xf]
    %v143 = vld [vmem:[%s4 + $0x78] sm:$0xf]
    %v144 = vld [vmem:[%s4 + $0x7c] sm:$0xf]
    %v145 = vld [vmem:[%s4 + $0x80] sm:$0xf]
    %v146 = vld [vmem:[%s4 + $0x84] sm:$0xf]
    %v147 = vld [vmem:[%s4 + $0x88] sm:$0xf]
    %v148 = vld [vmem:[%s4 + $0x8c] sm:$0xf]
    %v149 = vld [vmem:[%s4 + $0x90] sm:$0xf]
    %v150 = vld [vmem:[%s4 + $0x94] sm:$0xf]
    %v151 = vld [vmem:[%s4 + $0x98] sm:$0xf]
    %v152 = vld [vmem:[%s4 + $0x9c] sm:$0xf]
    %v153 = vld [vmem:[%s4 + $0xa0] sm:$0xf]
    %v154 = vld [vmem:[%s4 + $0xa4] sm:$0xf]
    %v155 = vld [vmem:[%s4 + $0xa8] sm:$0xf]
    %v156 = vld [vmem:[%s4 + $0xac] sm:$0xf]
    %v157 = vld [vmem:[%s4 + $0xb0] sm:$0xf]
    %v158 = vld [vmem:[%s4 + $0xb4] sm:$0xf]
    %v159 = vld [vmem:[%s4 + $0xb8] sm:$0xf]
    %v160 = vld [vmem:[%s4 + $0xbc] sm:$0xf]
    %v161 = vld [vmem:[%s4 + $0xc0] sm:$0xf]
    %v162 = vld [vmem:[%s4 + $0xc4] sm:$0xf]
    %v163 = vld [vmem:[%s4 + $0xc8] sm:$0xf]
    %v164 = vld [vmem:[%s4 + $0xcc] sm:$0xf]
    %v165 = vld [vmem:[%s4 + $0xd0] sm:$0xf]
    %v166 = vld [vmem:[%s4 + $0xd4] sm:$0xf]
    %v167 = vld [vmem:[%s4 + $0xd8] sm:$0xf]
    %v168 = vld [vmem:[%s4 + $0xdc] sm:$0xf]
    %v169 = vld [vmem:[%s4 + $0xe0] sm:$0xf]
    %v170 = vld [vmem:[%s4 + $0xe4] sm:$0xf]
    %v171 = vld [vmem:[%s4 + $0xe8] sm:$0xf]
    %v172 = vld [vmem:[%s4 + $0xec] sm:$0xf]
    %v173 = vld [vmem:[%s4 + $0xf0] sm:$0xf]
    %v174 = vld [vmem:[%s4 + $0xf4] sm:$0xf]
    %v175 = vld [vmem:[%s4 + $0xf8] sm:$0xf]
    %v176 = vld [vmem:[%s4 + $0xfc] sm:$0xf]
    %v177 = vld [vmem:[%s4 + $0x100] sm:$0xf]
    %v178 = vld [vmem:[%s4 + $0x104] sm:$0xf]
    %v179 = vld [vmem:[%s4 + $0x108] sm:$0xf]
    %v180 = vld [vmem:[%s4 + $0x10c] sm:$0xf]
    %v181 = vld [vmem:[%s4 + $0x110] sm:$0xf]
    %v182 = vld [vmem:[%s4 + $0x114] sm:$0xf]
    %v183 = vld [vmem:[%s4 + $0x118] sm:$0xf]
    %v184 = vld [vmem:[%s4 + $0x11c] sm:$0xf]
    %v185 = vld [vmem:[%s4 + $0x120] sm:$0xf]
    %v186 = vld [vmem:[%s4 + $0x124] sm:$0xf]
    %v187 = vld [vmem:[%s4 + $0x128] sm:$0xf]
    %v188 = vld [vmem:[%s4 + $0x12c] sm:$0xf]
    %v189 = vld [vmem:[%s4 + $0x130] sm:$0xf]
    %v190 = vld [vmem:[%s4 + $0x134] sm:$0xf]
    %v191 = vld [vmem:[%s4 + $0x138] sm:$0xf]
    %v192 = vld [vmem:[%s4 + $0x13c] sm:$0xf]
    %v193 = vld [vmem:[%s4 + $0x140] sm:$0xf]
    %v194 = vld [vmem:[%s4 + $0x144] sm:$0xf]
    %v195 = vld [vmem:[%s4 + $0x148] sm:$0xf]
    %v196 = vld [vmem:[%s4 + $0x14c] sm:$0xf]
    %v197 = vld [vmem:[%s4 + $0x150] sm:$0xf]
    %v198 = vld [vmem:[%s4 + $0x154] sm:$0xf]
    %v199 = vld [vmem:[%s4 + $0x158] sm:$0xf]
    %v200 = vld [vmem:[%s4 + $0x15c] sm:$0xf]
    %v201 = vld [vmem:[%s4 + $0x160] sm:$0xf]
    %v202 = vld [vmem:[%s4 + $0x164] sm:$0xf]
    %v203 = vld [vmem:[%s4 + $0x168] sm:$0xf]
    %v204 = vld [vmem:[%s4 + $0x16c] sm:$0xf]
    %v205 = vld [vmem:[%s4 + $0x170] sm:$0xf]
    %v206 = vld [vmem:[%s4 + $0x174] sm:$0xf]
    %v207 = vld [vmem:[%s4 + $0x178] sm:$0xf]
    %v208 = vld [vmem:[%s4 + $0x17c] sm:$0xf]
    %v209 = vld [vmem:[%s4 + $0x180] sm:$0xf]
    %v210 = vld [vmem:[%s4 + $0x184] sm:$0xf]
    %v211 = vld [vmem:[%s4 + $0x188] sm:$0xf]
    %v212 = vld [vmem:[%s4 + $0x18c] sm:$0xf]
    %v213 = vld [vmem:[%s4 + $0x190] sm:$0xf]
    %v214 = vld [vmem:[%s4 + $0x194] sm:$0xf]
    %v215 = vld [vmem:[%s4 + $0x198] sm:$0xf]
    %v216 = vld [vmem:[%s4 + $0x19c] sm:$0xf]
    %v217 = vld [vmem:[%s4 + $0x1a0] sm:$0xf]
    %v218 = vld [vmem:[%s4 + $0x1a4] sm:$0xf]
    %v219 = vld [vmem:[%s4 + $0x1a8] sm:$0xf]
    %v220 = vld [vmem:[%s4 + $0x1ac] sm:$0xf]
    %v221 = vld [vmem:[%s4 + $0x1b0] sm:$0xf]
    %v222 = vld [vmem:[%s4 + $0x1b4] sm:$0xf]
    %v223 = vld [vmem:[%s4 + $0x1b8] sm:$0xf]
    %v224 = vld [vmem:[%s4 + $0x1bc] sm:$0xf]
    %v225 = vld [vmem:[%s4 + $0x1c0] sm:$0xf]
    %v226 = vld [vmem:[%s4 + $0x1c4] sm:$0xf]
    %v227 = vld [vmem:[%s4 + $0x1c8] sm:$0xf]
    %v228 = vld [vmem:[%s4 + $0x1cc] sm:$0xf]
    %v229 = vld [vmem:[%s4 + $0x1d0] sm:$0xf]
    %v230 = vld [vmem:[%s4 + $0x1d4] sm:$0xf]
    %v231 = vld [vmem:[%s4 + $0x1d8] sm:$0xf]
    %v232 = vld [vmem:[%s4 + $0x1dc] sm:$0xf]
    %v233 = vld [vmem:[%s4 + $0x1e0] sm:$0xf]
    %v234 = vld [vmem:[%s4 + $0x1e4] sm:$0xf]
    %v235 = vld [vmem:[%s4 + $0x1e8] sm:$0xf]
    %v236 = vld [vmem:[%s4 + $0x1ec] sm:$0xf]
    %v237 = vld [vmem:[%s4 + $0x1f0] sm:$0xf]
    %v238 = vld [vmem:[%s4 + $0x1f4] sm:$0xf]
    %v239 = vld [vmem:[%s4 + $0x1f8] sm:$0xf]
    %v240 = vld [vmem:[%s4 + $0x1fc] sm:$0xf]
    %v241 = vld [vmem:[%s5] ss:$8 sm:$0x3]
    %v242 = vld [vmem:[%s5 + $0x1] ss:$0 sm:$0xff]
    %v243 = vld [vmem:[%s5 + $0x2] ss:$0 sm:$0xff]
    %v244 = vld [vmem:[%s5 + $0x3] ss:$0 sm:$0xff]
    %v245 = vld [vmem:[%s5 + $0x4] ss:$0 sm:$0xff]
    %v246 = vld [vmem:[%s5 + $0x5] ss:$0 sm:$0xff]
    %v247 = vld [vmem:[%s5 + $0x6] ss:$0 sm:$0xff]
    %v248 = vld [vmem:[%s5 + $0x7] ss:$0 sm:$0xff]
    %v249 = vld [vmem:[%s5 + $0x10] ss:$0 sm:$0xff]
    %v250 = vld [vmem:[%s5 + $0x11] ss:$0 sm:$0xff]
    %v251 = vld [vmem:[%s5 + $0x12] ss:$0 sm:$0xff]
    %s252 = scalar_lea.vmem %s5, 19
    %v253 = vld [vmem:[%s252] ss:$8 sm:$0x3]
    %v254 = vld [vmem:[%s5 + $0x14] ss:$0 sm:$0xff]
    %v255 = vld [vmem:[%s5 + $0x15] ss:$0 sm:$0xff]
    %v256 = vld [vmem:[%s5 + $0x16] ss:$0 sm:$0xff]
    %v257 = vpack.c.bf16 %v26, %v25
    %v259 = vlaneseq
    %v260 = vshrl.u32 %v259, 7
    %v261 = vsub.s32 0, %v260
    %v262 = vrot.slane %v241, %v261
    %v263 = vlaneseq
    %v264 = vshrl.u32 %v263, 7
    %v265 = vsub.s32 1, %v264
    %v266 = vrot.slane %v241, %v265
    %v277 = vunpack.c.l.b16 %v49
    %v278 = vunpack.c.h.b16 %v49
    %v279 = vunpack.c.l.b16 %v50
    %v280 = vunpack.c.h.b16 %v50
    %v281 = vunpack.c.l.b16 %v51
    %v282 = vunpack.c.h.b16 %v51
    %v283 = vunpack.c.l.b16 %v52
    %v284 = vunpack.c.h.b16 %v52
    %v285 = vunpack.c.l.b16 %v53
    %v286 = vunpack.c.h.b16 %v53
    %v287 = vunpack.c.l.b16 %v54
    %v288 = vunpack.c.h.b16 %v54
    %v289 = vunpack.c.l.b16 %v55
    %v290 = vunpack.c.h.b16 %v55
    %v291 = vunpack.c.l.b16 %v56
    %v292 = vunpack.c.h.b16 %v56
    %v293 = vpack.c.b16 %v279, %v277
    %v294 = vpack.c.b16 %v280, %v278
    %v295 = vpack.c.b16 %v283, %v281
    %v296 = vpack.c.b16 %v284, %v282
    %v297 = vpack.c.b16 %v287, %v285
    %v298 = vpack.c.b16 %v288, %v286
    %v299 = vpack.c.b16 %v291, %v289
    %v300 = vpack.c.b16 %v292, %v290
    %vm309 = vcmask 523264
    %v311 = vsel %vm309, %v257, 0
    %313 = vmatprep.subr.bf16.mxu0 %v294
    %314 = vmatpush1.bf16.msra.mxu0 %v293
    %315 = vmatprep.subr.bf16.mxu0 %v296
    %316 = vmatpush1.bf16.msra.mxu0 %v295
    %317 = vmatprep.subr.bf16.mxu0 %v298
    %318 = vmatpush1.bf16.msra.mxu0 %v297
    %319 = vmatprep.subr.bf16.mxu0 %v300
    %320 = vmatpush1.bf16.msra.mxu0 %v299
    %321 = vmatprep.subr.bf16.mxu0 0
    %322 = vmatpush1.bf16.msra.mxu0 0
    %323 = vmatprep.subr.bf16.mxu0 0
    %324 = vmatpush1.bf16.msra.mxu0 0
    %325 = vmatprep.subr.bf16.mxu0 0
    %326 = vmatpush1.bf16.msra.mxu0 0
    %327 = vmatprep.subr.bf16.mxu0 0
    %328 = vmatpush1.bf16.msra.mxu0 0
    %329 = vmatprep.subr.bf16.mxu0 0
    %330 = vmatpush1.bf16.msra.mxu0 0
    %331 = vmatprep.subr.bf16.mxu0 0
    %332 = vmatpush1.bf16.msra.mxu0 0
    %333 = vmatprep.subr.bf16.mxu0 0
    %334 = vmatpush1.bf16.msra.mxu0 0
    %335 = vmatprep.subr.bf16.mxu0 0
    %336 = vmatpush1.bf16.msra.mxu0 0
    %337 = vmatprep.subr.bf16.mxu0 0
    %338 = vmatpush1.bf16.msra.mxu0 0
    %339 = vmatprep.subr.bf16.mxu0 0
    %340 = vmatpush1.bf16.msra.mxu0 0
    %341 = vmatprep.subr.bf16.mxu0 0
    %342 = vmatpush1.bf16.msra.mxu0 0
    %343 = vmatprep.subr.bf16.mxu0 0
    %344 = vmatpush1.bf16.msra.mxu0 0
    %345 = vmatprep.mubr.bf16.mxu0 0
    %346 = vmatmul.mubr.bf16.gmra.mrb[0].mxu0 %v311
    %v347 = vpop.f32.mrb[0].mxu0
    %v348 = vadd.f32 %v262, %v347
    %v349 = vpop.f32.mrb[0].mxu0
    %v350 = vadd.f32 %v266, %v349
    %v351 = vpop.f32.mrb[0].mxu0
    %v352 = vadd.f32 %v262, %v351
    %v353 = vpop.f32.mrb[0].mxu0
    %v354 = vadd.f32 %v266, %v353
    %355 = vdwg.mxu0
    %v356 = vmul.f32 %v348, 0.5
    %v357 = vmul.f32 %v356, %v33
    %v358 = vmul.f32 %v356, %v34
    %v359 = vmul.f32 %v356, %v35
    %v360 = vmul.f32 %v356, %v36
    %v361 = vmul.f32 %v356, %v37
    %v362 = vmul.f32 %v356, %v38
    %v363 = vmul.f32 %v356, %v39
    %v364 = vmul.f32 %v356, %v40
    %v365 = vmul.f32 %v356, %v41
    %v366 = vmul.f32 %v356, %v42
    %v367 = vmul.f32 %v356, %v43
    %v368 = vmul.f32 %v356, %v44
    %v369 = vmul.f32 %v356, %v45
    %v370 = vmul.f32 %v356, %v46
    %v371 = vmul.f32 %v356, %v47
    %v372 = vmul.f32 %v356, %v48
    %v373 = vpack.c.bf16 %v358, %v357
    %v374 = vpack.c.bf16 %v360, %v359
    %v375 = vpack.c.bf16 %v362, %v361
    %v376 = vpack.c.bf16 %v364, %v363
    %v377 = vpack.c.bf16 %v366, %v365
    %v378 = vpack.c.bf16 %v368, %v367
    %v379 = vpack.c.bf16 %v370, %v369
    %v380 = vpack.c.bf16 %v372, %v371
    %v381 = vpack.c.bf16 %v348, %v348
    %383 = vrot.lane.b32.xlu0 %v381, 64
    %v384 = vpop.permute.xlu0 %383
    %v386 = vsel %vm309, %v373, 0
    %v389 = vsel %vm309, %v374, 0
    %v392 = vsel %vm309, %v375, 0
    %v395 = vsel %vm309, %v376, 0
    %v398 = vsel %vm309, %v377, 0
    %v401 = vsel %vm309, %v378, 0
    %v404 = vsel %vm309, %v379, 0
    %v407 = vsel %vm309, %v380, 0
    %v410 = vsel %vm309, %v384, 0
    %412 = vmatprep.subr.bf16.mxu0 0
    %413 = vmatpush1.bf16.xpose.msra.mxu0 %v410
    %414 = vmatprep.subr.bf16.mxu0 0
    %415 = vmatpush1.bf16.xpose.msra.mxu0 0
    %416 = vmatprep.subr.bf16.mxu0 0
    %417 = vmatpush1.bf16.xpose.msra.mxu0 0
    %418 = vmatprep.subr.bf16.mxu0 0
    %419 = vmatpush1.bf16.xpose.msra.mxu0 0
    %420 = vmatprep.subr.bf16.mxu0 0
    %421 = vmatpush1.bf16.xpose.msra.mxu0 0
    %422 = vmatprep.subr.bf16.mxu0 0
    %423 = vmatpush1.bf16.xpose.msra.mxu0 0
    %424 = vmatprep.subr.bf16.mxu0 0
    %425 = vmatpush1.bf16.xpose.msra.mxu0 0
    %426 = vmatprep.subr.bf16.mxu0 0
    %427 = vmatpush1.bf16.xpose.msra.mxu0 0
    %428 = vmatprep.subr.bf16.mxu0 0
    %429 = vmatpush1.bf16.xpose.msra.mxu0 0
    %430 = vmatprep.subr.bf16.mxu0 0
    %431 = vmatpush1.bf16.xpose.msra.mxu0 0
    %432 = vmatprep.subr.bf16.mxu0 0
    %433 = vmatpush1.bf16.xpose.msra.mxu0 0
    %434 = vmatprep.subr.bf16.mxu0 0
    %435 = vmatpush1.bf16.xpose.msra.mxu0 0
    %436 = vmatprep.subr.bf16.mxu0 0
    %437 = vmatpush1.bf16.xpose.msra.mxu0 0
    %438 = vmatprep.subr.bf16.mxu0 0
    %439 = vmatpush1.bf16.xpose.msra.mxu0 0
    %440 = vmatprep.subr.bf16.mxu0 0
    %441 = vmatpush1.bf16.xpose.msra.mxu0 0
    %442 = vmatprep.subr.bf16.mxu0 0
    %443 = vmatpush1.bf16.xpose.msra.mxu0 0
    %444 = vmatprep.mubr.bf16.mxu0 0
    %445 = vmatmul.mubr.bf16.gmra.mrb[0].mxu0 %v386
    %v446 = vpop.f32.mrb[0].mxu0
    %v447 = vadd.f32 0.0, %v446
    %v448 = vpop.f32.mrb[0].mxu0
    %v449 = vpop.f32.mrb[0].mxu0
    %v450 = vadd.f32 0.0, %v449
    %v451 = vpop.f32.mrb[0].mxu0
    %452 = vmatprep.mubr.bf16.mxu0 0
    %453 = vmatmul.mubr.bf16.gmra.mrb[0].mxu0 %v389
    %v454 = vpop.f32.mrb[0].mxu0
    %v455 = vadd.f32 0.0, %v454
    %v456 = vpop.f32.mrb[0].mxu0
    %v457 = vpop.f32.mrb[0].mxu0
    %v458 = vadd.f32 0.0, %v457
    %v459 = vpop.f32.mrb[0].mxu0
    %460 = vmatprep.mubr.bf16.mxu0 0
    %461 = vmatmul.mubr.bf16.gmra.mrb[0].mxu0 %v392
    %v462 = vpop.f32.mrb[0].mxu0
    %v463 = vadd.f32 0.0, %v462
    %v464 = vpop.f32.mrb[0].mxu0
    %v465 = vpop.f32.mrb[0].mxu0
    %v466 = vadd.f32 0.0, %v465
    %v467 = vpop.f32.mrb[0].mxu0
    %468 = vmatprep.mubr.bf16.mxu0 0
    %469 = vmatmul.mubr.bf16.gmra.mrb[0].mxu0 %v395
    %v470 = vpop.f32.mrb[0].mxu0
    %v471 = vadd.f32 0.0, %v470
    %v472 = vpop.f32.mrb[0].mxu0
    %v473 = vpop.f32.mrb[0].mxu0
    %v474 = vadd.f32 0.0, %v473
    %v475 = vpop.f32.mrb[0].mxu0
    %476 = vmatprep.mubr.bf16.mxu0 0
    %477 = vmatmul.mubr.bf16.gmra.mrb[0].mxu0 %v398
    %v478 = vpop.f32.mrb[0].mxu0
    %v479 = vadd.f32 0.0, %v478
    %v480 = vpop.f32.mrb[0].mxu0
    %v481 = vpop.f32.mrb[0].mxu0
    %v482 = vadd.f32 0.0, %v481
    %v483 = vpop.f32.mrb[0].mxu0
    %484 = vmatprep.mubr.bf16.mxu0 0
    %485 = vmatmul.mubr.bf16.gmra.mrb[0].mxu0 %v401
    %v486 = vpop.f32.mrb[0].mxu0
    %v487 = vadd.f32 0.0, %v486
    %v488 = vpop.f32.mrb[0].mxu0
    %v489 = vpop.f32.mrb[0].mxu0
    %v490 = vadd.f32 0.0, %v489
    %v491 = vpop.f32.mrb[0].mxu0
    %492 = vmatprep.mubr.bf16.mxu0 0
    %493 = vmatmul.mubr.bf16.gmra.mrb[0].mxu0 %v404
    %v494 = vpop.f32.mrb[0].mxu0
    %v495 = vadd.f32 0.0, %v494
    %v496 = vpop.f32.mrb[0].mxu0
    %v497 = vpop.f32.mrb[0].mxu0
    %v498 = vadd.f32 0.0, %v497
    %v499 = vpop.f32.mrb[0].mxu0
    %500 = vmatprep.mubr.bf16.mxu0 0
    %501 = vmatmul.mubr.bf16.gmra.mrb[0].mxu0 %v407
    %v502 = vpop.f32.mrb[0].mxu0
    %v503 = vadd.f32 0.0, %v502
    %v504 = vpop.f32.mrb[0].mxu0
    %v505 = vpop.f32.mrb[0].mxu0
    %v506 = vadd.f32 0.0, %v505
    %v507 = vpop.f32.mrb[0].mxu0
    %508 = vdwg.mxu0
    %vm509 = vcmask 64512
    %v510 = vsel %vm509, %v447, -inf
    %511 = vmax.xlane.f32.xlu0 %v510
    %v512 = vpop.xlane.xlu0 %511
    %v513 = vsel %vm509, %v450, -inf
    %514 = vmax.xlane.f32.xlu0 %v513
    %v515 = vpop.xlane.xlu0 %514
    %v516 = vsel %vm509, %v455, -inf
    %517 = vmax.xlane.f32.xlu0 %v516
    %v518 = vpop.xlane.xlu0 %517
    %v519 = vsel %vm509, %v458, -inf
    %520 = vmax.xlane.f32.xlu0 %v519
    %v521 = vpop.xlane.xlu0 %520
    %v522 = vsel %vm509, %v463, -inf
    %523 = vmax.xlane.f32.xlu0 %v522
    %v524 = vpop.xlane.xlu0 %523
    %v525 = vsel %vm509, %v466, -inf
    %526 = vmax.xlane.f32.xlu0 %v525
    %v527 = vpop.xlane.xlu0 %526
    %v528 = vsel %vm509, %v471, -inf
    %529 = vmax.xlane.f32.xlu0 %v528
    %v530 = vpop.xlane.xlu0 %529
    %v531 = vsel %vm509, %v474, -inf
    %532 = vmax.xlane.f32.xlu0 %v531
    %v533 = vpop.xlane.xlu0 %532
    %v534 = vsel %vm509, %v479, -inf
    %535 = vmax.xlane.f32.xlu0 %v534
    %v536 = vpop.xlane.xlu0 %535
    %v537 = vsel %vm509, %v482, -inf
    %538 = vmax.xlane.f32.xlu0 %v537
    %v539 = vpop.xlane.xlu0 %538
    %v540 = vsel %vm509, %v487, -inf
    %541 = vmax.xlane.f32.xlu0 %v540
    %v542 = vpop.xlane.xlu0 %541
    %v543 = vsel %vm509, %v490, -inf
    %544 = vmax.xlane.f32.xlu0 %v543
    %v545 = vpop.xlane.xlu0 %544
    %v546 = vsel %vm509, %v495, -inf
    %547 = vmax.xlane.f32.xlu0 %v546
    %v548 = vpop.xlane.xlu0 %547
    %v549 = vsel %vm509, %v498, -inf
    %550 = vmax.xlane.f32.xlu0 %v549
    %v551 = vpop.xlane.xlu0 %550
    %v552 = vsel %vm509, %v503, -inf
    %553 = vmax.xlane.f32.xlu0 %v552
    %v554 = vpop.xlane.xlu0 %553
    %v555 = vsel %vm509, %v506, -inf
    %556 = vmax.xlane.f32.xlu0 %v555
    %v557 = vpop.xlane.xlu0 %556
    %v558 = vsub.f32 %v447, %v512
    %v559 = vsub.f32 %v450, %v515
    %v560 = vsub.f32 %v455, %v518
    %v561 = vsub.f32 %v458, %v521
    %v562 = vsub.f32 %v463, %v524
    %v563 = vsub.f32 %v466, %v527
    %v564 = vsub.f32 %v471, %v530
    %v565 = vsub.f32 %v474, %v533
    %v566 = vsub.f32 %v479, %v536
    %v567 = vsub.f32 %v482, %v539
    %v568 = vsub.f32 %v487, %v542
    %v569 = vsub.f32 %v490, %v545
    %v570 = vsub.f32 %v495, %v548
    %v571 = vsub.f32 %v498, %v551
    %v572 = vsub.f32 %v503, %v554
    %v573 = vsub.f32 %v506, %v557
    %v574 = vmul.f32 %v558, 1.442695
    %v575 = vpow.pop %v574
    %v576 = vmul.f32 %v559, 1.442695
    %v577 = vpow.pop %v576
    %v578 = vmul.f32 %v560, 1.442695
    %v579 = vpow.pop %v578
    %v580 = vmul.f32 %v561, 1.442695
    %v581 = vpow.pop %v580
    %v582 = vmul.f32 %v562, 1.442695
    %v583 = vpow.pop %v582
    %v584 = vmul.f32 %v563, 1.442695
    %v585 = vpow.pop %v584
    %v586 = vmul.f32 %v564, 1.442695
    %v587 = vpow.pop %v586
    %v588 = vmul.f32 %v565, 1.442695
    %v589 = vpow.pop %v588
    %v590 = vmul.f32 %v566, 1.442695
    %v591 = vpow.pop %v590
    %v592 = vmul.f32 %v567, 1.442695
    %v593 = vpow.pop %v592
    %v594 = vmul.f32 %v568, 1.442695
    %v595 = vpow.pop %v594
    %v596 = vmul.f32 %v569, 1.442695
    %v597 = vpow.pop %v596
    %v598 = vmul.f32 %v570, 1.442695
    %v599 = vpow.pop %v598
    %v600 = vmul.f32 %v571, 1.442695
    %v601 = vpow.pop %v600
    %v602 = vmul.f32 %v572, 1.442695
    %v603 = vpow.pop %v602
    %v604 = vmul.f32 %v573, 1.442695
    %v605 = vpow.pop %v604
    %v606 = vsel %vm509, %v575, 0.0
    %607 = vadd.xlane.f32.xlu0 %v606
    %v608 = vpop.xlane.xlu0 %607
    %v609 = vsel %vm509, %v577, 0.0
    %610 = vadd.xlane.f32.xlu0 %v609
    %v611 = vpop.xlane.xlu0 %610
    %v612 = vsel %vm509, %v579, 0.0
    %613 = vadd.xlane.f32.xlu0 %v612
    %v614 = vpop.xlane.xlu0 %613
    %v615 = vsel %vm509, %v581, 0.0
    %616 = vadd.xlane.f32.xlu0 %v615
    %v617 = vpop.xlane.xlu0 %616
    %v618 = vsel %vm509, %v583, 0.0
    %619 = vadd.xlane.f32.xlu0 %v618
    %v620 = vpop.xlane.xlu0 %619
    %v621 = vsel %vm509, %v585, 0.0
    %622 = vadd.xlane.f32.xlu0 %v621
    %v623 = vpop.xlane.xlu0 %622
    %v624 = vsel %vm509, %v587, 0.0
    %625 = vadd.xlane.f32.xlu0 %v624
    %v626 = vpop.xlane.xlu0 %625
    %v627 = vsel %vm509, %v589, 0.0
    %628 = vadd.xlane.f32.xlu0 %v627
    %v629 = vpop.xlane.xlu0 %628
    %v630 = vsel %vm509, %v591, 0.0
    %631 = vadd.xlane.f32.xlu0 %v630
    %v632 = vpop.xlane.xlu0 %631
    %v633 = vsel %vm509, %v593, 0.0
    %634 = vadd.xlane.f32.xlu0 %v633
    %v635 = vpop.xlane.xlu0 %634
    %v636 = vsel %vm509, %v595, 0.0
    %637 = vadd.xlane.f32.xlu0 %v636
    %v638 = vpop.xlane.xlu0 %637
    %v639 = vsel %vm509, %v597, 0.0
    %640 = vadd.xlane.f32.xlu0 %v639
    %v641 = vpop.xlane.xlu0 %640
    %v642 = vsel %vm509, %v599, 0.0
    %643 = vadd.xlane.f32.xlu0 %v642
    %v644 = vpop.xlane.xlu0 %643
    %v645 = vsel %vm509, %v601, 0.0
    %646 = vadd.xlane.f32.xlu0 %v645
    %v647 = vpop.xlane.xlu0 %646
    %v648 = vsel %vm509, %v603, 0.0
    %649 = vadd.xlane.f32.xlu0 %v648
    %v650 = vpop.xlane.xlu0 %649
    %v651 = vsel %vm509, %v605, 0.0
    %652 = vadd.xlane.f32.xlu0 %v651
    %v653 = vpop.xlane.xlu0 %652
    %v654 = vrcp.pop %v608
    %v655 = vrcp.pop %v611
    %v656 = vrcp.pop %v614
    %v657 = vrcp.pop %v617
    %v658 = vrcp.pop %v620
    %v659 = vrcp.pop %v623
    %v660 = vrcp.pop %v626
    %v661 = vrcp.pop %v629
    %v662 = vrcp.pop %v632
    %v663 = vrcp.pop %v635
    %v664 = vrcp.pop %v638
    %v665 = vrcp.pop %v641
    %v666 = vrcp.pop %v644
    %v667 = vrcp.pop %v647
    %v668 = vrcp.pop %v650
    %v669 = vrcp.pop %v653
    %v670 = vmul.f32 %v575, %v654
    %v671 = vmul.f32 %v577, %v655
    %v672 = vmul.f32 %v579, %v656
    %v673 = vmul.f32 %v581, %v657
    %v674 = vmul.f32 %v583, %v658
    %v675 = vmul.f32 %v585, %v659
    %v676 = vmul.f32 %v587, %v660
    %v677 = vmul.f32 %v589, %v661
    %v678 = vmul.f32 %v591, %v662
    %v679 = vmul.f32 %v593, %v663
    %v680 = vmul.f32 %v595, %v664
    %v681 = vmul.f32 %v597, %v665
    %v682 = vmul.f32 %v599, %v666
    %v683 = vmul.f32 %v601, %v667
    %v684 = vmul.f32 %v603, %v668
    %v685 = vmul.f32 %v605, %v669
    %v686 = vpack.c.bf16 %v671, %v670
    %v687 = vpack.c.bf16 %v673, %v672
    %v688 = vpack.c.bf16 %v675, %v674
    %v689 = vpack.c.bf16 %v677, %v676
    %v690 = vpack.c.bf16 %v679, %v678
    %v691 = vpack.c.bf16 %v681, %v680
    %v692 = vpack.c.bf16 %v683, %v682
    %v693 = vpack.c.bf16 %v685, %v684
    %v694 = vpack.c.bf16 %v350, %v350
    %v696 = vsel %vm509, %v686, 0
    %v699 = vsel %vm509, %v687, 0
    %v702 = vsel %vm509, %v688, 0
    %v705 = vsel %vm509, %v689, 0
    %v708 = vsel %vm509, %v690, 0
    %v711 = vsel %vm509, %v691, 0
    %v714 = vsel %vm509, %v692, 0
    %v717 = vsel %vm509, %v693, 0
    %vm719 = vcmask 1043456
    %v721 = vsel %vm719, %v694, 0
    %723 = vmatprep.subr.bf16.mxu0 0
    %724 = vmatpush1.bf16.msra.mxu0 %v721
    %725 = vmatprep.subr.bf16.mxu0 0
    %726 = vmatpush1.bf16.msra.mxu0 0
    %727 = vmatprep.subr.bf16.mxu0 0
    %728 = vmatpush1.bf16.msra.mxu0 0
    %729 = vmatprep.subr.bf16.mxu0 0
    %730 = vmatpush1.bf16.msra.mxu0 0
    %731 = vmatprep.subr.bf16.mxu0 0
    %732 = vmatpush1.bf16.msra.mxu0 0
    %733 = vmatprep.subr.bf16.mxu0 0
    %734 = vmatpush1.bf16.msra.mxu0 0
    %735 = vmatprep.subr.bf16.mxu0 0
    %736 = vmatpush1.bf16.msra.mxu0 0
    %737 = vmatprep.subr.bf16.mxu0 0
    %738 = vmatpush1.bf16.msra.mxu0 0
    %739 = vmatprep.subr.bf16.mxu0 0
    %740 = vmatpush1.bf16.msra.mxu0 0
    %741 = vmatprep.subr.bf16.mxu0 0
    %742 = vmatpush1.bf16.msra.mxu0 0
    %743 = vmatprep.subr.bf16.mxu0 0
    %744 = vmatpush1.bf16.msra.mxu0 0
    %745 = vmatprep.subr.bf16.mxu0 0
    %746 = vmatpush1.bf16.msra.mxu0 0
    %747 = vmatprep.subr.bf16.mxu0 0
    %748 = vmatpush1.bf16.msra.mxu0 0
    %749 = vmatprep.subr.bf16.mxu0 0
    %750 = vmatpush1.bf16.msra.mxu0 0
    %751 = vmatprep.subr.bf16.mxu0 0
    %752 = vmatpush1.bf16.msra.mxu0 0
    %753 = vmatprep.subr.bf16.mxu0 0
    %754 = vmatpush1.bf16.msra.mxu0 0
    %755 = vmatprep.mubr.bf16.mxu0 0
    %756 = vmatmul.mubr.bf16.gmra.mrb[0].mxu0 %v696
    %v757 = vpop.f32.mrb[0].mxu0
    %v758 = vadd.f32 0.0, %v757
    %v759 = vpop.f32.mrb[0].mxu0
    %v760 = vpop.f32.mrb[0].mxu0
    %v761 = vadd.f32 0.0, %v760
    %v762 = vpop.f32.mrb[0].mxu0
    %763 = vmatprep.mubr.bf16.mxu0 0
    %764 = vmatmul.mubr.bf16.gmra.mrb[0].mxu0 %v699
    %v765 = vpop.f32.mrb[0].mxu0
    %v766 = vadd.f32 0.0, %v765
    %v767 = vpop.f32.mrb[0].mxu0
    %v768 = vpop.f32.mrb[0].mxu0
    %v769 = vadd.f32 0.0, %v768
    %v770 = vpop.f32.mrb[0].mxu0
    %771 = vmatprep.mubr.bf16.mxu0 0
    %772 = vmatmul.mubr.bf16.gmra.mrb[0].mxu0 %v702
    %v773 = vpop.f32.mrb[0].mxu0
    %v774 = vadd.f32 0.0, %v773
    %v775 = vpop.f32.mrb[0].mxu0
    %v776 = vpop.f32.mrb[0].mxu0
    %v777 = vadd.f32 0.0, %v776
    %v778 = vpop.f32.mrb[0].mxu0
    %779 = vmatprep.mubr.bf16.mxu0 0
    %780 = vmatmul.mubr.bf16.gmra.mrb[0].mxu0 %v705
    %v781 = vpop.f32.mrb[0].mxu0
    %v782 = vadd.f32 0.0, %v781
    %v783 = vpop.f32.mrb[0].mxu0
    %v784 = vpop.f32.mrb[0].mxu0
    %v785 = vadd.f32 0.0, %v784
    %v786 = vpop.f32.mrb[0].mxu0
    %787 = vmatprep.mubr.bf16.mxu0 0
    %788 = vmatmul.mubr.bf16.gmra.mrb[0].mxu0 %v708
    %v789 = vpop.f32.mrb[0].mxu0
    %v790 = vadd.f32 0.0, %v789
    %v791 = vpop.f32.mrb[0].mxu0
    %v792 = vpop.f32.mrb[0].mxu0
    %v793 = vadd.f32 0.0, %v792
    %v794 = vpop.f32.mrb[0].mxu0
    %795 = vmatprep.mubr.bf16.mxu0 0
    %796 = vmatmul.mubr.bf16.gmra.mrb[0].mxu0 %v711
    %v797 = vpop.f32.mrb[0].mxu0
    %v798 = vadd.f32 0.0, %v797
    %v799 = vpop.f32.mrb[0].mxu0
    %v800 = vpop.f32.mrb[0].mxu0
    %v801 = vadd.f32 0.0, %v800
    %v802 = vpop.f32.mrb[0].mxu0
    %803 = vmatprep.mubr.bf16.mxu0 0
    %804 = vmatmul.mubr.bf16.gmra.mrb[0].mxu0 %v714
    %v805 = vpop.f32.mrb[0].mxu0
    %v806 = vadd.f32 0.0, %v805
    %v807 = vpop.f32.mrb[0].mxu0
    %v808 = vpop.f32.mrb[0].mxu0
    %v809 = vadd.f32 0.0, %v808
    %v810 = vpop.f32.mrb[0].mxu0
    %811 = vmatprep.mubr.bf16.mxu0 0
    %812 = vmatmul.mubr.bf16.gmra.mrb[0].mxu0 %v717
    %v813 = vpop.f32.mrb[0].mxu0
    %v814 = vadd.f32 0.0, %v813
    %v815 = vpop.f32.mrb[0].mxu0
    %v816 = vpop.f32.mrb[0].mxu0
    %v817 = vadd.f32 0.0, %v816
    %v818 = vpop.f32.mrb[0].mxu0
    %819 = vdwg.mxu0
    %v820 = vmul.f32 %v758, %v33
    %v821 = vmul.f32 %v761, %v34
    %v822 = vmul.f32 %v766, %v35
    %v823 = vmul.f32 %v769, %v36
    %v824 = vmul.f32 %v774, %v37
    %v825 = vmul.f32 %v777, %v38
    %v826 = vmul.f32 %v782, %v39
    %v827 = vmul.f32 %v785, %v40
    %v828 = vmul.f32 %v790, %v41
    %v829 = vmul.f32 %v793, %v42
    %v830 = vmul.f32 %v798, %v43
    %v831 = vmul.f32 %v801, %v44
    %v832 = vmul.f32 %v806, %v45
    %v833 = vmul.f32 %v809, %v46
    %v834 = vmul.f32 %v814, %v47
    %v835 = vmul.f32 %v817, %v48
    %v836 = vadd.f32 %v820, %v821
    %v837 = vadd.f32 %v822, %v823
    %v838 = vadd.f32 %v824, %v825
    %v839 = vadd.f32 %v826, %v827
    %v840 = vadd.f32 %v828, %v829
    %v841 = vadd.f32 %v830, %v831
    %v842 = vadd.f32 %v832, %v833
    %v843 = vadd.f32 %v834, %v835
    %v844 = vadd.f32 %v836, %v837
    %v845 = vadd.f32 %v838, %v839
    %v846 = vadd.f32 %v840, %v841
    %v847 = vadd.f32 %v842, %v843
    %v848 = vadd.f32 %v844, %v845
    %v849 = vadd.f32 %v846, %v847
    %v850 = vadd.f32 %v848, %v849
    %v851 = vmul.f32 %v352, 0.5
    %v852 = vmul.f32 %v851, %v33
    %v853 = vmul.f32 %v851, %v34
    %v854 = vmul.f32 %v851, %v35
    %v855 = vmul.f32 %v851, %v36
    %v856 = vmul.f32 %v851, %v37
    %v857 = vmul.f32 %v851, %v38
    %v858 = vmul.f32 %v851, %v39
    %v859 = vmul.f32 %v851, %v40
    %v860 = vmul.f32 %v851, %v41
    %v861 = vmul.f32 %v851, %v42
    %v862 = vmul.f32 %v851, %v43
    %v863 = vmul.f32 %v851, %v44
    %v864 = vmul.f32 %v851, %v45
    %v865 = vmul.f32 %v851, %v46
    %v866 = vmul.f32 %v851, %v47
    %v867 = vmul.f32 %v851, %v48
    %v868 = vpack.c.bf16 %v853, %v852
    %v869 = vpack.c.bf16 %v855, %v854
    %v870 = vpack.c.bf16 %v857, %v856
    %v871 = vpack.c.bf16 %v859, %v858
    %v872 = vpack.c.bf16 %v861, %v860
    %v873 = vpack.c.bf16 %v863, %v862
    %v874 = vpack.c.bf16 %v865, %v864
    %v875 = vpack.c.bf16 %v867, %v866
    %v876 = vpack.c.bf16 %v352, %v352
    %878 = vrot.lane.b32.xlu0 %v876, 64
    %v879 = vpop.permute.xlu0 %878
    %v881 = vsel %vm309, %v868, 0
    %v884 = vsel %vm309, %v869, 0
    %v887 = vsel %vm309, %v870, 0
    %v890 = vsel %vm309, %v871, 0
    %v893 = vsel %vm309, %v872, 0
    %v896 = vsel %vm309, %v873, 0
    %v899 = vsel %vm309, %v874, 0
    %v902 = vsel %vm309, %v875, 0
    %v905 = vsel %vm309, %v879, 0
    %907 = vmatprep.subr.bf16.mxu0 0
    %908 = vmatpush1.bf16.xpose.msra.mxu0 %v905
    %909 = vmatprep.subr.bf16.mxu0 0
    %910 = vmatpush1.bf16.xpose.msra.mxu0 0
    %911 = vmatprep.subr.bf16.mxu0 0
    %912 = vmatpush1.bf16.xpose.msra.mxu0 0
    %913 = vmatprep.subr.bf16.mxu0 0
    %914 = vmatpush1.bf16.xpose.msra.mxu0 0
    %915 = vmatprep.subr.bf16.mxu0 0
    %916 = vmatpush1.bf16.xpose.msra.mxu0 0
    %917 = vmatprep.subr.bf16.mxu0 0
    %918 = vmatpush1.bf16.xpose.msra.mxu0 0
    %919 = vmatprep.subr.bf16.mxu0 0
    %920 = vmatpush1.bf16.xpose.msra.mxu0 0
    %921 = vmatprep.subr.bf16.mxu0 0
    %922 = vmatpush1.bf16.xpose.msra.mxu0 0
    %923 = vmatprep.subr.bf16.mxu0 0
    %924 = vmatpush1.bf16.xpose.msra.mxu0 0
    %925 = vmatprep.subr.bf16.mxu0 0
    %926 = vmatpush1.bf16.xpose.msra.mxu0 0
    %927 = vmatprep.subr.bf16.mxu0 0
    %928 = vmatpush1.bf16.xpose.msra.mxu0 0
    %929 = vmatprep.subr.bf16.mxu0 0
    %930 = vmatpush1.bf16.xpose.msra.mxu0 0
    %931 = vmatprep.subr.bf16.mxu0 0
    %932 = vmatpush1.bf16.xpose.msra.mxu0 0
    %933 = vmatprep.subr.bf16.mxu0 0
    %934 = vmatpush1.bf16.xpose.msra.mxu0 0
    %935 = vmatprep.subr.bf16.mxu0 0
    %936 = vmatpush1.bf16.xpose.msra.mxu0 0
    %937 = vmatprep.subr.bf16.mxu0 0
    %938 = vmatpush1.bf16.xpose.msra.mxu0 0
    %939 = vmatprep.mubr.bf16.mxu0 0
    %940 = vmatmul.mubr.bf16.gmra.mrb[0].mxu0 %v881
    %v941 = vpop.f32.mrb[0].mxu0
    %v942 = vadd.f32 0.0, %v941
    %v943 = vpop.f32.mrb[0].mxu0
    %v944 = vpop.f32.mrb[0].mxu0
    %v945 = vadd.f32 0.0, %v944
    %v946 = vpop.f32.mrb[0].mxu0
    %947 = vmatprep.mubr.bf16.mxu0 0
    %948 = vmatmul.mubr.bf16.gmra.mrb[0].mxu0 %v884
    %v949 = vpop.f32.mrb[0].mxu0
    %v950 = vadd.f32 0.0, %v949
    %v951 = vpop.f32.mrb[0].mxu0
    %v952 = vpop.f32.mrb[0].mxu0
    %v953 = vadd.f32 0.0, %v952
    %v954 = vpop.f32.mrb[0].mxu0
    %955 = vmatprep.mubr.bf16.mxu0 0
    %956 = vmatmul.mubr.bf16.gmra.mrb[0].mxu0 %v887
    %v957 = vpop.f32.mrb[0].mxu0
    %v958 = vadd.f32 0.0, %v957
    %v959 = vpop.f32.mrb[0].mxu0
    %v960 = vpop.f32.mrb[0].mxu0
    %v961 = vadd.f32 0.0, %v960
    %v962 = vpop.f32.mrb[0].mxu0
    %963 = vmatprep.mubr.bf16.mxu0 0
    %964 = vmatmul.mubr.bf16.gmra.mrb[0].mxu0 %v890
    %v965 = vpop.f32.mrb[0].mxu0
    %v966 = vadd.f32 0.0, %v965
    %v967 = vpop.f32.mrb[0].mxu0
    %v968 = vpop.f32.mrb[0].mxu0
    %v969 = vadd.f32 0.0, %v968
    %v970 = vpop.f32.mrb[0].mxu0
    %971 = vmatprep.mubr.bf16.mxu0 0
    %972 = vmatmul.mubr.bf16.gmra.mrb[0].mxu0 %v893
    %v973 = vpop.f32.mrb[0].mxu0
    %v974 = vadd.f32 0.0, %v973
    %v975 = vpop.f32.mrb[0].mxu0
    %v976 = vpop.f32.mrb[0].mxu0
    %v977 = vadd.f32 0.0, %v976
    %v978 = vpop.f32.mrb[0].mxu0
    %979 = vmatprep.mubr.bf16.mxu0 0
    %980 = vmatmul.mubr.bf16.gmra.mrb[0].mxu0 %v896
    %v981 = vpop.f32.mrb[0].mxu0
    %v982 = vadd.f32 0.0, %v981
    %v983 = vpop.f32.mrb[0].mxu0
    %v984 = vpop.f32.mrb[0].mxu0
    %v985 = vadd.f32 0.0, %v984
    %v986 = vpop.f32.mrb[0].mxu0
    %987 = vmatprep.mubr.bf16.mxu0 0
    %988 = vmatmul.mubr.bf16.gmra.mrb[0].mxu0 %v899
    %v989 = vpop.f32.mrb[0].mxu0
    %v990 = vadd.f32 0.0, %v989
    %v991 = vpop.f32.mrb[0].mxu0
    %v992 = vpop.f32.mrb[0].mxu0
    %v993 = vadd.f32 0.0, %v992
    %v994 = vpop.f32.mrb[0].mxu0
    %995 = vmatprep.mubr.bf16.mxu0 0
    %996 = vmatmul.mubr.bf16.gmra.mrb[0].mxu0 %v902
    %v997 = vpop.f32.mrb[0].mxu0
    %v998 = vadd.f32 0.0, %v997
    %v999 = vpop.f32.mrb[0].mxu0
    %v1000 = vpop.f32.mrb[0].mxu0
    %v1001 = vadd.f32 0.0, %v1000
    %v1002 = vpop.f32.mrb[0].mxu0
    %1003 = vdwg.mxu0
    %v1004 = vsel %vm509, %v942, -inf
    %1005 = vmax.xlane.f32.xlu0 %v1004
    %v1006 = vpop.xlane.xlu0 %1005
    %v1007 = vsel %vm509, %v945, -inf
    %1008 = vmax.xlane.f32.xlu0 %v1007
    %v1009 = vpop.xlane.xlu0 %1008
    %v1010 = vsel %vm509, %v950, -inf
    %1011 = vmax.xlane.f32.xlu0 %v1010
    %v1012 = vpop.xlane.xlu0 %1011
    %v1013 = vsel %vm509, %v953, -inf
    %1014 = vmax.xlane.f32.xlu0 %v1013
    %v1015 = vpop.xlane.xlu0 %1014
    %v1016 = vsel %vm509, %v958, -inf
    %1017 = vmax.xlane.f32.xlu0 %v1016
    %v1018 = vpop.xlane.xlu0 %1017
    %v1019 = vsel %vm509, %v961, -inf
    %1020 = vmax.xlane.f32.xlu0 %v1019
    %v1021 = vpop.xlane.xlu0 %1020
    %v1022 = vsel %vm509, %v966, -inf
    %1023 = vmax.xlane.f32.xlu0 %v1022
    %v1024 = vpop.xlane.xlu0 %1023
    %v1025 = vsel %vm509, %v969, -inf
    %1026 = vmax.xlane.f32.xlu0 %v1025
    %v1027 = vpop.xlane.xlu0 %1026
    %v1028 = vsel %vm509, %v974, -inf
    %1029 = vmax.xlane.f32.xlu0 %v1028
    %v1030 = vpop.xlane.xlu0 %1029
    %v1031 = vsel %vm509, %v977, -inf
    %1032 = vmax.xlane.f32.xlu0 %v1031
    %v1033 = vpop.xlane.xlu0 %1032
    %v1034 = vsel %vm509, %v982, -inf
    %1035 = vmax.xlane.f32.xlu0 %v1034
    %v1036 = vpop.xlane.xlu0 %1035
    %v1037 = vsel %vm509, %v985, -inf
    %1038 = vmax.xlane.f32.xlu0 %v1037
    %v1039 = vpop.xlane.xlu0 %1038
    %v1040 = vsel %vm509, %v990, -inf
    %1041 = vmax.xlane.f32.xlu0 %v1040
    %v1042 = vpop.xlane.xlu0 %1041
    %v1043 = vsel %vm509, %v993, -inf
    %1044 = vmax.xlane.f32.xlu0 %v1043
    %v1045 = vpop.xlane.xlu0 %1044
    %v1046 = vsel %vm509, %v998, -inf
    %1047 = vmax.xlane.f32.xlu0 %v1046
    %v1048 = vpop.xlane.xlu0 %1047
    %v1049 = vsel %vm509, %v1001, -inf
    %1050 = vmax.xlane.f32.xlu0 %v1049
    %v1051 = vpop.xlane.xlu0 %1050
    %v1052 = vsub.f32 %v942, %v1006
    %v1053 = vsub.f32 %v945, %v1009
    %v1054 = vsub.f32 %v950, %v1012
    %v1055 = vsub.f32 %v953, %v1015
    %v1056 = vsub.f32 %v958, %v1018
    %v1057 = vsub.f32 %v961, %v1021
    %v1058 = vsub.f32 %v966, %v1024
    %v1059 = vsub.f32 %v969, %v1027
    %v1060 = vsub.f32 %v974, %v1030
    %v1061 = vsub.f32 %v977, %v1033
    %v1062 = vsub.f32 %v982, %v1036
    %v1063 = vsub.f32 %v985, %v1039
    %v1064 = vsub.f32 %v990, %v1042
    %v1065 = vsub.f32 %v993, %v1045
    %v1066 = vsub.f32 %v998, %v1048
    %v1067 = vsub.f32 %v1001, %v1051
    %v1068 = vmul.f32 %v1052, 1.442695
    %v1069 = vpow.pop %v1068
    %v1070 = vmul.f32 %v1053, 1.442695
    %v1071 = vpow.pop %v1070
    %v1072 = vmul.f32 %v1054, 1.442695
    %v1073 = vpow.pop %v1072
    %v1074 = vmul.f32 %v1055, 1.442695
    %v1075 = vpow.pop %v1074
    %v1076 = vmul.f32 %v1056, 1.442695
    %v1077 = vpow.pop %v1076
    %v1078 = vmul.f32 %v1057, 1.442695
    %v1079 = vpow.pop %v1078
    %v1080 = vmul.f32 %v1058, 1.442695
    %v1081 = vpow.pop %v1080
    %v1082 = vmul.f32 %v1059, 1.442695
    %v1083 = vpow.pop %v1082
    %v1084 = vmul.f32 %v1060, 1.442695
    %v1085 = vpow.pop %v1084
    %v1086 = vmul.f32 %v1061, 1.442695
    %v1087 = vpow.pop %v1086
    %v1088 = vmul.f32 %v1062, 1.442695
    %v1089 = vpow.pop %v1088
    %v1090 = vmul.f32 %v1063, 1.442695
    %v1091 = vpow.pop %v1090
    %v1092 = vmul.f32 %v1064, 1.442695
    %v1093 = vpow.pop %v1092
    %v1094 = vmul.f32 %v1065, 1.442695
    %v1095 = vpow.pop %v1094
    %v1096 = vmul.f32 %v1066, 1.442695
    %v1097 = vpow.pop %v1096
    %v1098 = vmul.f32 %v1067, 1.442695
    %v1099 = vpow.pop %v1098
    %v1100 = vsel %vm509, %v1069, 0.0
    %1101 = vadd.xlane.f32.xlu0 %v1100
    %v1102 = vpop.xlane.xlu0 %1101
    %v1103 = vsel %vm509, %v1071, 0.0
    %1104 = vadd.xlane.f32.xlu0 %v1103
    %v1105 = vpop.xlane.xlu0 %1104
    %v1106 = vsel %vm509, %v1073, 0.0
    %1107 = vadd.xlane.f32.xlu0 %v1106
    %v1108 = vpop.xlane.xlu0 %1107
    %v1109 = vsel %vm509, %v1075, 0.0
    %1110 = vadd.xlane.f32.xlu0 %v1109
    %v1111 = vpop.xlane.xlu0 %1110
    %v1112 = vsel %vm509, %v1077, 0.0
    %1113 = vadd.xlane.f32.xlu0 %v1112
    %v1114 = vpop.xlane.xlu0 %1113
    %v1115 = vsel %vm509, %v1079, 0.0
    %1116 = vadd.xlane.f32.xlu0 %v1115
    %v1117 = vpop.xlane.xlu0 %1116
    %v1118 = vsel %vm509, %v1081, 0.0
    %1119 = vadd.xlane.f32.xlu0 %v1118
    %v1120 = vpop.xlane.xlu0 %1119
    %v1121 = vsel %vm509, %v1083, 0.0
    %1122 = vadd.xlane.f32.xlu0 %v1121
    %v1123 = vpop.xlane.xlu0 %1122
    %v1124 = vsel %vm509, %v1085, 0.0
    %1125 = vadd.xlane.f32.xlu0 %v1124
    %v1126 = vpop.xlane.xlu0 %1125
    %v1127 = vsel %vm509, %v1087, 0.0
    %1128 = vadd.xlane.f32.xlu0 %v1127
    %v1129 = vpop.xlane.xlu0 %1128
    %v1130 = vsel %vm509, %v1089, 0.0
    %1131 = vadd.xlane.f32.xlu0 %v1130
    %v1132 = vpop.xlane.xlu0 %1131
    %v1133 = vsel %vm509, %v1091, 0.0
    %1134 = vadd.xlane.f32.xlu0 %v1133
    %v1135 = vpop.xlane.xlu0 %1134
    %v1136 = vsel %vm509, %v1093, 0.0
    %1137 = vadd.xlane.f32.xlu0 %v1136
    %v1138 = vpop.xlane.xlu0 %1137
    %v1139 = vsel %vm509, %v1095, 0.0
    %1140 = vadd.xlane.f32.xlu0 %v1139
    %v1141 = vpop.xlane.xlu0 %1140
    %v1142 = vsel %vm509, %v1097, 0.0
    %1143 = vadd.xlane.f32.xlu0 %v1142
    %v1144 = vpop.xlane.xlu0 %1143
    %v1145 = vsel %vm509, %v1099, 0.0
    %1146 = vadd.xlane.f32.xlu0 %v1145
    %v1147 = vpop.xlane.xlu0 %1146
    %v1148 = vrcp.pop %v1102
    %v1149 = vrcp.pop %v1105
    %v1150 = vrcp.pop %v1108
    %v1151 = vrcp.pop %v1111
    %v1152 = vrcp.pop %v1114
    %v1153 = vrcp.pop %v1117
    %v1154 = vrcp.pop %v1120
    %v1155 = vrcp.pop %v1123
    %v1156 = vrcp.pop %v1126
    %v1157 = vrcp.pop %v1129
    %v1158 = vrcp.pop %v1132
    %v1159 = vrcp.pop %v1135
    %v1160 = vrcp.pop %v1138
    %v1161 = vrcp.pop %v1141
    %v1162 = vrcp.pop %v1144
    %v1163 = vrcp.pop %v1147
    %v1164 = vmul.f32 %v1069, %v1148
    %v1165 = vmul.f32 %v1071, %v1149
    %v1166 = vmul.f32 %v1073, %v1150
    %v1167 = vmul.f32 %v1075, %v1151
    %v1168 = vmul.f32 %v1077, %v1152
    %v1169 = vmul.f32 %v1079, %v1153
    %v1170 = vmul.f32 %v1081, %v1154
    %v1171 = vmul.f32 %v1083, %v1155
    %v1172 = vmul.f32 %v1085, %v1156
    %v1173 = vmul.f32 %v1087, %v1157
    %v1174 = vmul.f32 %v1089, %v1158
    %v1175 = vmul.f32 %v1091, %v1159
    %v1176 = vmul.f32 %v1093, %v1160
    %v1177 = vmul.f32 %v1095, %v1161
    %v1178 = vmul.f32 %v1097, %v1162
    %v1179 = vmul.f32 %v1099, %v1163
    %v1180 = vpack.c.bf16 %v1165, %v1164
    %v1181 = vpack.c.bf16 %v1167, %v1166
    %v1182 = vpack.c.bf16 %v1169, %v1168
    %v1183 = vpack.c.bf16 %v1171, %v1170
    %v1184 = vpack.c.bf16 %v1173, %v1172
    %v1185 = vpack.c.bf16 %v1175, %v1174
    %v1186 = vpack.c.bf16 %v1177, %v1176
    %v1187 = vpack.c.bf16 %v1179, %v1178
    %v1188 = vpack.c.bf16 %v354, %v354
    %v1190 = vsel %vm509, %v1180, 0
    %v1193 = vsel %vm509, %v1181, 0
    %v1196 = vsel %vm509, %v1182, 0
    %v1199 = vsel %vm509, %v1183, 0
    %v1202 = vsel %vm509, %v1184, 0
    %v1205 = vsel %vm509, %v1185, 0
    %v1208 = vsel %vm509, %v1186, 0
    %v1211 = vsel %vm509, %v1187, 0
    %v1214 = vsel %vm719, %v1188, 0
    %1216 = vmatprep.subr.bf16.mxu0 0
    %1217 = vmatpush1.bf16.msra.mxu0 %v1214
    %1218 = vmatprep.subr.bf16.mxu0 0
    %1219 = vmatpush1.bf16.msra.mxu0 0
    %1220 = vmatprep.subr.bf16.mxu0 0
    %1221 = vmatpush1.bf16.msra.mxu0 0
    %1222 = vmatprep.subr.bf16.mxu0 0
    %1223 = vmatpush1.bf16.msra.mxu0 0
    %1224 = vmatprep.subr.bf16.mxu0 0
    %1225 = vmatpush1.bf16.msra.mxu0 0
    %1226 = vmatprep.subr.bf16.mxu0 0
    %1227 = vmatpush1.bf16.msra.mxu0 0
    %1228 = vmatprep.subr.bf16.mxu0 0
    %1229 = vmatpush1.bf16.msra.mxu0 0
    %1230 = vmatprep.subr.bf16.mxu0 0
    %1231 = vmatpush1.bf16.msra.mxu0 0
    %1232 = vmatprep.subr.bf16.mxu0 0
    %1233 = vmatpush1.bf16.msra.mxu0 0
    %1234 = vmatprep.subr.bf16.mxu0 0
    %1235 = vmatpush1.bf16.msra.mxu0 0
    %1236 = vmatprep.subr.bf16.mxu0 0
    %1237 = vmatpush1.bf16.msra.mxu0 0
    %1238 = vmatprep.subr.bf16.mxu0 0
    %1239 = vmatpush1.bf16.msra.mxu0 0
    %1240 = vmatprep.subr.bf16.mxu0 0
    %1241 = vmatpush1.bf16.msra.mxu0 0
    %1242 = vmatprep.subr.bf16.mxu0 0
    %1243 = vmatpush1.bf16.msra.mxu0 0
    %1244 = vmatprep.subr.bf16.mxu0 0
    %1245 = vmatpush1.bf16.msra.mxu0 0
    %1246 = vmatprep.subr.bf16.mxu0 0
    %1247 = vmatpush1.bf16.msra.mxu0 0
    %1248 = vmatprep.mubr.bf16.mxu0 0
    %1249 = vmatmul.mubr.bf16.gmra.mrb[0].mxu0 %v1190
    %v1250 = vpop.f32.mrb[0].mxu0
    %v1251 = vadd.f32 0.0, %v1250
    %v1252 = vpop.f32.mrb[0].mxu0
    %v1253 = vpop.f32.mrb[0].mxu0
    %v1254 = vadd.f32 0.0, %v1253
    %v1255 = vpop.f32.mrb[0].mxu0
    %1256 = vmatprep.mubr.bf16.mxu0 0
    %1257 = vmatmul.mubr.bf16.gmra.mrb[0].mxu0 %v1193
    %v1258 = vpop.f32.mrb[0].mxu0
    %v1259 = vadd.f32 0.0, %v1258
    %v1260 = vpop.f32.mrb[0].mxu0
    %v1261 = vpop.f32.mrb[0].mxu0
    %v1262 = vadd.f32 0.0, %v1261
    %v1263 = vpop.f32.mrb[0].mxu0
    %1264 = vmatprep.mubr.bf16.mxu0 0
    %1265 = vmatmul.mubr.bf16.gmra.mrb[0].mxu0 %v1196
    %v1266 = vpop.f32.mrb[0].mxu0
    %v1267 = vadd.f32 0.0, %v1266
    %v1268 = vpop.f32.mrb[0].mxu0
    %v1269 = vpop.f32.mrb[0].mxu0
    %v1270 = vadd.f32 0.0, %v1269
    %v1271 = vpop.f32.mrb[0].mxu0
    %1272 = vmatprep.mubr.bf16.mxu0 0
    %1273 = vmatmul.mubr.bf16.gmra.mrb[0].mxu0 %v1199
    %v1274 = vpop.f32.mrb[0].mxu0
    %v1275 = vadd.f32 0.0, %v1274
    %v1276 = vpop.f32.mrb[0].mxu0
    %v1277 = vpop.f32.mrb[0].mxu0
    %v1278 = vadd.f32 0.0, %v1277
    %v1279 = vpop.f32.mrb[0].mxu0
    %1280 = vmatprep.mubr.bf16.mxu0 0
    %1281 = vmatmul.mubr.bf16.gmra.mrb[0].mxu0 %v1202
    %v1282 = vpop.f32.mrb[0].mxu0
    %v1283 = vadd.f32 0.0, %v1282
    %v1284 = vpop.f32.mrb[0].mxu0
    %v1285 = vpop.f32.mrb[0].mxu0
    %v1286 = vadd.f32 0.0, %v1285
    %v1287 = vpop.f32.mrb[0].mxu0
    %1288 = vmatprep.mubr.bf16.mxu0 0
    %1289 = vmatmul.mubr.bf16.gmra.mrb[0].mxu0 %v1205
    %v1290 = vpop.f32.mrb[0].mxu0
    %v1291 = vadd.f32 0.0, %v1290
    %v1292 = vpop.f32.mrb[0].mxu0
    %v1293 = vpop.f32.mrb[0].mxu0
    %v1294 = vadd.f32 0.0, %v1293
    %v1295 = vpop.f32.mrb[0].mxu0
    %1296 = vmatprep.mubr.bf16.mxu0 0
    %1297 = vmatmul.mubr.bf16.gmra.mrb[0].mxu0 %v1208
    %v1298 = vpop.f32.mrb[0].mxu0
    %v1299 = vadd.f32 0.0, %v1298
    %v1300 = vpop.f32.mrb[0].mxu0
    %v1301 = vpop.f32.mrb[0].mxu0
    %v1302 = vadd.f32 0.0, %v1301
    %v1303 = vpop.f32.mrb[0].mxu0
    %1304 = vmatprep.mubr.bf16.mxu0 0
    %1305 = vmatmul.mubr.bf16.gmra.mrb[0].mxu0 %v1211
    %v1306 = vpop.f32.mrb[0].mxu0
    %v1307 = vadd.f32 0.0, %v1306
    %v1308 = vpop.f32.mrb[0].mxu0
    %v1309 = vpop.f32.mrb[0].mxu0
    %v1310 = vadd.f32 0.0, %v1309
    %v1311 = vpop.f32.mrb[0].mxu0
    %1312 = vdwg.mxu0
    %v1313 = vmul.f32 %v1251, %v33
    %v1314 = vmul.f32 %v1254, %v34
    %v1315 = vmul.f32 %v1259, %v35
    %v1316 = vmul.f32 %v1262, %v36
    %v1317 = vmul.f32 %v1267, %v37
    %v1318 = vmul.f32 %v1270, %v38
    %v1319 = vmul.f32 %v1275, %v39
    %v1320 = vmul.f32 %v1278, %v40
    %v1321 = vmul.f32 %v1283, %v41
    %v1322 = vmul.f32 %v1286, %v42
    %v1323 = vmul.f32 %v1291, %v43
    %v1324 = vmul.f32 %v1294, %v44
    %v1325 = vmul.f32 %v1299, %v45
    %v1326 = vmul.f32 %v1302, %v46
    %v1327 = vmul.f32 %v1307, %v47
    %v1328 = vmul.f32 %v1310, %v48
    %v1329 = vadd.f32 %v1313, %v1314
    %v1330 = vadd.f32 %v1315, %v1316
    %v1331 = vadd.f32 %v1317, %v1318
    %v1332 = vadd.f32 %v1319, %v1320
    %v1333 = vadd.f32 %v1321, %v1322
    %v1334 = vadd.f32 %v1323, %v1324
    %v1335 = vadd.f32 %v1325, %v1326
    %v1336 = vadd.f32 %v1327, %v1328
    %v1337 = vadd.f32 %v1329, %v1330
    %v1338 = vadd.f32 %v1331, %v1332
    %v1339 = vadd.f32 %v1333, %v1334
    %v1340 = vadd.f32 %v1335, %v1336
    %v1341 = vadd.f32 %v1337, %v1338
    %v1342 = vadd.f32 %v1339, %v1340
    %v1343 = vadd.f32 %v1341, %v1342
    %v1344 = vpack.c.bf16 %v1343, %v850
    %v1353 = vunpack.c.l.b16 %v57
    %v1354 = vunpack.c.l.b16 %v58
    %v1355 = vunpack.c.l.b16 %v59
    %v1356 = vunpack.c.l.b16 %v60
    %v1357 = vunpack.c.l.b16 %v61
    %v1358 = vunpack.c.l.b16 %v62
    %v1359 = vunpack.c.l.b16 %v63
    %v1360 = vunpack.c.l.b16 %v64
    %v1361 = vpack.c.b16 %v1354, %v1353
    %v1362 = vpack.c.b16 %v1356, %v1355
    %v1363 = vpack.c.b16 %v1358, %v1357
    %v1364 = vpack.c.b16 %v1360, %v1359
    %v1370 = vsel %vm309, %v1344, 0
    %1372 = vmatprep.subr.bf16.mxu0 0
    %1373 = vmatpush1.bf16.msra.mxu0 %v1361
    %1374 = vmatprep.subr.bf16.mxu0 0
    %1375 = vmatpush1.bf16.msra.mxu0 %v1362
    %1376 = vmatprep.subr.bf16.mxu0 0
    %1377 = vmatpush1.bf16.msra.mxu0 %v1363
    %1378 = vmatprep.subr.bf16.mxu0 0
    %1379 = vmatpush1.bf16.msra.mxu0 %v1364
    %1380 = vmatprep.subr.bf16.mxu0 0
    %1381 = vmatpush1.bf16.msra.mxu0 0
    %1382 = vmatprep.subr.bf16.mxu0 0
    %1383 = vmatpush1.bf16.msra.mxu0 0
    %1384 = vmatprep.subr.bf16.mxu0 0
    %1385 = vmatpush1.bf16.msra.mxu0 0
    %1386 = vmatprep.subr.bf16.mxu0 0
    %1387 = vmatpush1.bf16.msra.mxu0 0
    %1388 = vmatprep.subr.bf16.mxu0 0
    %1389 = vmatpush1.bf16.msra.mxu0 0
    %1390 = vmatprep.subr.bf16.mxu0 0
    %1391 = vmatpush1.bf16.msra.mxu0 0
    %1392 = vmatprep.subr.bf16.mxu0 0
    %1393 = vmatpush1.bf16.msra.mxu0 0
    %1394 = vmatprep.subr.bf16.mxu0 0
    %1395 = vmatpush1.bf16.msra.mxu0 0
    %1396 = vmatprep.subr.bf16.mxu0 0
    %1397 = vmatpush1.bf16.msra.mxu0 0
    %1398 = vmatprep.subr.bf16.mxu0 0
    %1399 = vmatpush1.bf16.msra.mxu0 0
    %1400 = vmatprep.subr.bf16.mxu0 0
    %1401 = vmatpush1.bf16.msra.mxu0 0
    %1402 = vmatprep.subr.bf16.mxu0 0
    %1403 = vmatpush1.bf16.msra.mxu0 0
    %1404 = vmatprep.mubr.bf16.mxu0 0
    %1405 = vmatmul.mubr.bf16.gmra.mrb[0].mxu0 %v1370
    %v1406 = vpop.f32.mrb[0].mxu0
    %v1407 = vadd.f32 %v242, %v1406
    %v1408 = vpop.f32.mrb[0].mxu0
    %v1409 = vpop.f32.mrb[0].mxu0
    %v1410 = vadd.f32 %v242, %v1409
    %v1411 = vpop.f32.mrb[0].mxu0
    %1412 = vdwg.mxu0
    %v1413 = vadd.f32 %v25, %v1407
    %v1414 = vadd.f32 %v26, %v1410
    %v1415 = vsel %vm309, %v1413, 0.0
    %1416 = vadd.xlane.f32.xlu0 %v1415
    %v1417 = vpop.xlane.xlu0 %1416
    %v1418 = vsel %vm309, %v1414, 0.0
    %1419 = vadd.xlane.f32.xlu0 %v1418
    %v1420 = vpop.xlane.xlu0 %1419
    %v1421 = vrcp.pop 64.0
    %v1422 = vmul.f32 %v1417, %v1421
    %v1423 = vmul.f32 %v1420, %v1421
    %v1424 = vsub.f32 %v1413, %v1422
    %v1425 = vsub.f32 %v1414, %v1423
    %v1426 = vmul.f32 %v1424, %v1424
    %v1427 = vmul.f32 %v1425, %v1425
    %v1428 = vsel %vm309, %v1426, 0.0
    %1429 = vadd.xlane.f32.xlu0 %v1428
    %v1430 = vpop.xlane.xlu0 %1429
    %v1431 = vsel %vm309, %v1427, 0.0
    %1432 = vadd.xlane.f32.xlu0 %v1431
    %v1433 = vpop.xlane.xlu0 %1432
    %v1434 = vmul.f32 %v1430, %v1421
    %v1435 = vmul.f32 %v1433, %v1421
    %v1436 = vadd.f32 %v1434, 1e-05
    %v1437 = vadd.f32 %v1435, 1e-05
    %v1438 = vrsqrt.pop %v1436
    %v1439 = vrsqrt.pop %v1437
    %v1440 = vmul.f32 %v1424, %v1438
    %v1441 = vmul.f32 %v1425, %v1439
    %v1442 = vmul.f32 %v1440, %v243
    %v1443 = vmul.f32 %v1441, %v243
    %v1444 = vadd.f32 %v1442, %v244
    %v1445 = vadd.f32 %v1443, %v244
    %v1452 = vunpack.c.l.b16 %v27
    %v1453 = vunpack.c.h.b16 %v27
    %v1454 = vunpack.c.l.b16 %v28
    %v1455 = vunpack.c.h.b16 %v28
    %v1456 = vunpack.c.l.b16 %v29
    %v1457 = vunpack.c.h.b16 %v29
    %v1458 = vunpack.c.l.b16 %v30
    %v1459 = vunpack.c.h.b16 %v30
    %v1460 = vunpack.c.l.b16 %v31
    %v1461 = vunpack.c.h.b16 %v31
    %v1462 = vunpack.c.l.b16 %v32
    %v1463 = vunpack.c.h.b16 %v32
    %v1464 = vpack.c.b16 %v1458, %v1452
    %v1465 = vpack.c.b16 %v1459, %v1453
    %v1466 = vpack.c.b16 %v1460, %v1454
    %v1467 = vpack.c.b16 %v1461, %v1455
    %v1468 = vpack.c.b16 %v1462, %v1456
    %v1469 = vpack.c.b16 %v1463, %v1457
    %v1572 = vunpack.c.l.b16 %v113
    %v1573 = vunpack.c.l.b16 %v114
    %v1574 = vunpack.c.l.b16 %v115
    %v1575 = vunpack.c.l.b16 %v116
    %v1576 = vunpack.c.l.b16 %v117
    %v1577 = vunpack.c.l.b16 %v118
    %v1578 = vunpack.c.l.b16 %v119
    %v1579 = vunpack.c.l.b16 %v120
    %v1580 = vunpack.c.l.b16 %v121
    %v1581 = vunpack.c.l.b16 %v122
    %v1582 = vunpack.c.l.b16 %v123
    %v1583 = vunpack.c.l.b16 %v124
    %v1584 = vunpack.c.l.b16 %v125
    %v1585 = vunpack.c.l.b16 %v126
    %v1586 = vunpack.c.l.b16 %v127
    %v1587 = vunpack.c.l.b16 %v128
    %v1588 = vunpack.c.l.b16 %v129
    %v1589 = vunpack.c.l.b16 %v130
    %v1590 = vunpack.c.l.b16 %v131
    %v1591 = vunpack.c.l.b16 %v132
    %v1592 = vunpack.c.l.b16 %v133
    %v1593 = vunpack.c.l.b16 %v134
    %v1594 = vunpack.c.l.b16 %v135
    %v1595 = vunpack.c.l.b16 %v136
    %v1596 = vunpack.c.l.b16 %v137
    %v1597 = vunpack.c.l.b16 %v138
    %v1598 = vunpack.c.l.b16 %v139
    %v1599 = vunpack.c.l.b16 %v140
    %v1600 = vunpack.c.l.b16 %v141
    %v1601 = vunpack.c.l.b16 %v142
    %v1602 = vunpack.c.l.b16 %v143
    %v1603 = vunpack.c.l.b16 %v144
    %v1604 = vunpack.c.l.b16 %v145
    %v1605 = vunpack.c.l.b16 %v146
    %v1606 = vunpack.c.l.b16 %v147
    %v1607 = vunpack.c.l.b16 %v148
    %v1608 = vunpack.c.l.b16 %v149
    %v1609 = vunpack.c.l.b16 %v150
    %v1610 = vunpack.c.l.b16 %v151
    %v1611 = vunpack.c.l.b16 %v152
    %v1612 = vunpack.c.l.b16 %v153
    %v1613 = vunpack.c.l.b16 %v154
    %v1614 = vunpack.c.l.b16 %v155
    %v1615 = vunpack.c.l.b16 %v156
    %v1616 = vunpack.c.l.b16 %v157
    %v1617 = vunpack.c.l.b16 %v158
    %v1618 = vunpack.c.l.b16 %v159
    %v1619 = vunpack.c.l.b16 %v160
    %v1620 = vunpack.c.l.b16 %v161
    %v1621 = vunpack.c.l.b16 %v162
    %v1622 = vunpack.c.l.b16 %v163
    %v1623 = vunpack.c.l.b16 %v164
    %v1624 = vunpack.c.l.b16 %v165
    %v1625 = vunpack.c.l.b16 %v166
    %v1626 = vunpack.c.l.b16 %v167
    %v1627 = vunpack.c.l.b16 %v168
    %v1628 = vunpack.c.l.b16 %v169
    %v1629 = vunpack.c.l.b16 %v170
    %v1630 = vunpack.c.l.b16 %v171
    %v1631 = vunpack.c.l.b16 %v172
    %v1632 = vunpack.c.l.b16 %v173
    %v1633 = vunpack.c.l.b16 %v174
    %v1634 = vunpack.c.l.b16 %v175
    %v1635 = vunpack.c.l.b16 %v176
    %v1636 = vunpack.c.l.b16 %v177
    %v1637 = vunpack.c.l.b16 %v178
    %v1638 = vunpack.c.l.b16 %v179
    %v1639 = vunpack.c.l.b16 %v180
    %v1640 = vunpack.c.l.b16 %v181
    %v1641 = vunpack.c.l.b16 %v182
    %v1642 = vunpack.c.l.b16 %v183
    %v1643 = vunpack.c.l.b16 %v184
    %v1644 = vunpack.c.l.b16 %v185
    %v1645 = vunpack.c.l.b16 %v186
    %v1646 = vunpack.c.l.b16 %v187
    %v1647 = vunpack.c.l.b16 %v188
    %v1648 = vunpack.c.l.b16 %v189
    %v1649 = vunpack.c.l.b16 %v190
    %v1650 = vunpack.c.l.b16 %v191
    %v1651 = vunpack.c.l.b16 %v192
    %v1652 = vunpack.c.l.b16 %v193
    %v1653 = vunpack.c.l.b16 %v194
    %v1654 = vunpack.c.l.b16 %v195
    %v1655 = vunpack.c.l.b16 %v196
    %v1656 = vunpack.c.l.b16 %v197
    %v1657 = vunpack.c.l.b16 %v198
    %v1658 = vunpack.c.l.b16 %v199
    %v1659 = vunpack.c.l.b16 %v200
    %v1660 = vunpack.c.l.b16 %v201
    %v1661 = vunpack.c.l.b16 %v202
    %v1662 = vunpack.c.l.b16 %v203
    %v1663 = vunpack.c.l.b16 %v204
    %v1664 = vunpack.c.l.b16 %v205
    %v1665 = vunpack.c.l.b16 %v206
    %v1666 = vunpack.c.l.b16 %v207
    %v1667 = vunpack.c.l.b16 %v208
    %v1668 = vpack.c.b16 %v1573, %v1572
    %v1669 = vpack.c.b16 %v1575, %v1574
    %v1670 = vpack.c.b16 %v1577, %v1576
    %v1671 = vpack.c.b16 %v1579, %v1578
    %v1672 = vpack.c.b16 %v1581, %v1580
    %v1673 = vpack.c.b16 %v1583, %v1582
    %v1674 = vpack.c.b16 %v1585, %v1584
    %v1675 = vpack.c.b16 %v1587, %v1586
    %v1676 = vpack.c.b16 %v1589, %v1588
    %v1677 = vpack.c.b16 %v1591, %v1590
    %v1678 = vpack.c.b16 %v1593, %v1592
    %v1679 = vpack.c.b16 %v1595, %v1594
    %v1680 = vpack.c.b16 %v1597, %v1596
    %v1681 = vpack.c.b16 %v1599, %v1598
    %v1682 = vpack.c.b16 %v1601, %v1600
    %v1683 = vpack.c.b16 %v1603, %v1602
    %v1684 = vpack.c.b16 %v1605, %v1604
    %v1685 = vpack.c.b16 %v1607, %v1606
    %v1686 = vpack.c.b16 %v1609, %v1608
    %v1687 = vpack.c.b16 %v1611, %v1610
    %v1688 = vpack.c.b16 %v1613, %v1612
    %v1689 = vpack.c.b16 %v1615, %v1614
    %v1690 = vpack.c.b16 %v1617, %v1616
    %v1691 = vpack.c.b16 %v1619, %v1618
    %v1692 = vpack.c.b16 %v1621, %v1620
    %v1693 = vpack.c.b16 %v1623, %v1622
    %v1694 = vpack.c.b16 %v1625, %v1624
    %v1695 = vpack.c.b16 %v1627, %v1626
    %v1696 = vpack.c.b16 %v1629, %v1628
    %v1697 = vpack.c.b16 %v1631, %v1630
    %v1698 = vpack.c.b16 %v1633, %v1632
    %v1699 = vpack.c.b16 %v1635, %v1634
    %v1700 = vpack.c.b16 %v1637, %v1636
    %v1701 = vpack.c.b16 %v1639, %v1638
    %v1702 = vpack.c.b16 %v1641, %v1640
    %v1703 = vpack.c.b16 %v1643, %v1642
    %v1704 = vpack.c.b16 %v1645, %v1644
    %v1705 = vpack.c.b16 %v1647, %v1646
    %v1706 = vpack.c.b16 %v1649, %v1648
    %v1707 = vpack.c.b16 %v1651, %v1650
    %v1708 = vpack.c.b16 %v1653, %v1652
    %v1709 = vpack.c.b16 %v1655, %v1654
    %v1710 = vpack.c.b16 %v1657, %v1656
    %v1711 = vpack.c.b16 %v1659, %v1658
    %v1712 = vpack.c.b16 %v1661, %v1660
    %v1713 = vpack.c.b16 %v1663, %v1662
    %v1714 = vpack.c.b16 %v1665, %v1664
    %v1715 = vpack.c.b16 %v1667, %v1666
    %1764 = vmatprep.subr.bf16.mxu0 0
    %1765 = vmatpush1.bf16.msra.mxu0 %v1668
    %1766 = vmatprep.subr.bf16.mxu0 0
    %1767 = vmatpush1.bf16.msra.mxu0 %v1669
    %1768 = vmatprep.subr.bf16.mxu0 0
    %1769 = vmatpush1.bf16.msra.mxu0 %v1670
    %1770 = vmatprep.subr.bf16.mxu0 0
    %1771 = vmatpush1.bf16.msra.mxu0 %v1671
    %1772 = vmatprep.subr.bf16.mxu0 0
    %1773 = vmatpush1.bf16.msra.mxu0 %v1672
    %1774 = vmatprep.subr.bf16.mxu0 0
    %1775 = vmatpush1.bf16.msra.mxu0 %v1673
    %1776 = vmatprep.subr.bf16.mxu0 0
    %1777 = vmatpush1.bf16.msra.mxu0 %v1674
    %1778 = vmatprep.subr.bf16.mxu0 0
    %1779 = vmatpush1.bf16.msra.mxu0 %v1675
    %1780 = vmatprep.subr.bf16.mxu0 0
    %1781 = vmatpush1.bf16.msra.mxu0 %v1676
    %1782 = vmatprep.subr.bf16.mxu0 0
    %1783 = vmatpush1.bf16.msra.mxu0 %v1677
    %1784 = vmatprep.subr.bf16.mxu0 0
    %1785 = vmatpush1.bf16.msra.mxu0 %v1678
    %1786 = vmatprep.subr.bf16.mxu0 0
    %1787 = vmatpush1.bf16.msra.mxu0 %v1679
    %1788 = vmatprep.subr.bf16.mxu0 0
    %1789 = vmatpush1.bf16.msra.mxu0 %v1680
    %1790 = vmatprep.subr.bf16.mxu0 0
    %1791 = vmatpush1.bf16.msra.mxu0 %v1681
    %1792 = vmatprep.subr.bf16.mxu0 0
    %1793 = vmatpush1.bf16.msra.mxu0 %v1682
    %1794 = vmatprep.subr.bf16.mxu0 0
    %1795 = vmatpush1.bf16.msra.mxu0 %v1683
    %1796 = vmatprep.mubr.bf16.mxu0 %v1465
    %1797 = vmatmul.mubr.bf16.gmra.mrb[0].mxu0 %v1464
    %v1798 = vpop.f32.mrb[0].mxu0
    %v1799 = vadd.f32 %v245, %v1798
    %v1800 = vpop.f32.mrb[0].mxu0
    %v1801 = vpop.f32.mrb[0].mxu0
    %v1802 = vadd.f32 %v245, %v1801
    %v1803 = vpop.f32.mrb[0].mxu0
    %1804 = vdwg.mxu0
    %1805 = vmatprep.subr.bf16.mxu0 0
    %1806 = vmatpush1.bf16.msra.mxu0 %v1684
    %1807 = vmatprep.subr.bf16.mxu0 0
    %1808 = vmatpush1.bf16.msra.mxu0 %v1685
    %1809 = vmatprep.subr.bf16.mxu0 0
    %1810 = vmatpush1.bf16.msra.mxu0 %v1686
    %1811 = vmatprep.subr.bf16.mxu0 0
    %1812 = vmatpush1.bf16.msra.mxu0 %v1687
    %1813 = vmatprep.subr.bf16.mxu0 0
    %1814 = vmatpush1.bf16.msra.mxu0 %v1688
    %1815 = vmatprep.subr.bf16.mxu0 0
    %1816 = vmatpush1.bf16.msra.mxu0 %v1689
    %1817 = vmatprep.subr.bf16.mxu0 0
    %1818 = vmatpush1.bf16.msra.mxu0 %v1690
    %1819 = vmatprep.subr.bf16.mxu0 0
    %1820 = vmatpush1.bf16.msra.mxu0 %v1691
    %1821 = vmatprep.subr.bf16.mxu0 0
    %1822 = vmatpush1.bf16.msra.mxu0 %v1692
    %1823 = vmatprep.subr.bf16.mxu0 0
    %1824 = vmatpush1.bf16.msra.mxu0 %v1693
    %1825 = vmatprep.subr.bf16.mxu0 0
    %1826 = vmatpush1.bf16.msra.mxu0 %v1694
    %1827 = vmatprep.subr.bf16.mxu0 0
    %1828 = vmatpush1.bf16.msra.mxu0 %v1695
    %1829 = vmatprep.subr.bf16.mxu0 0
    %1830 = vmatpush1.bf16.msra.mxu0 %v1696
    %1831 = vmatprep.subr.bf16.mxu0 0
    %1832 = vmatpush1.bf16.msra.mxu0 %v1697
    %1833 = vmatprep.subr.bf16.mxu0 0
    %1834 = vmatpush1.bf16.msra.mxu0 %v1698
    %1835 = vmatprep.subr.bf16.mxu0 0
    %1836 = vmatpush1.bf16.msra.mxu0 %v1699
    %1837 = vmatprep.mubr.bf16.mxu0 %v1467
    %1838 = vmatmul.mubr.bf16.gmra.mrb[0].mxu0 %v1466
    %v1839 = vpop.f32.mrb[0].mxu0
    %v1840 = vadd.f32 %v1799, %v1839
    %v1841 = vpop.f32.mrb[0].mxu0
    %v1842 = vpop.f32.mrb[0].mxu0
    %v1843 = vadd.f32 %v1802, %v1842
    %v1844 = vpop.f32.mrb[0].mxu0
    %1845 = vdwg.mxu0
    %1846 = vmatprep.subr.bf16.mxu0 0
    %1847 = vmatpush1.bf16.msra.mxu0 %v1700
    %1848 = vmatprep.subr.bf16.mxu0 0
    %1849 = vmatpush1.bf16.msra.mxu0 %v1701
    %1850 = vmatprep.subr.bf16.mxu0 0
    %1851 = vmatpush1.bf16.msra.mxu0 %v1702
    %1852 = vmatprep.subr.bf16.mxu0 0
    %1853 = vmatpush1.bf16.msra.mxu0 %v1703
    %1854 = vmatprep.subr.bf16.mxu0 0
    %1855 = vmatpush1.bf16.msra.mxu0 %v1704
    %1856 = vmatprep.subr.bf16.mxu0 0
    %1857 = vmatpush1.bf16.msra.mxu0 %v1705
    %1858 = vmatprep.subr.bf16.mxu0 0
    %1859 = vmatpush1.bf16.msra.mxu0 %v1706
    %1860 = vmatprep.subr.bf16.mxu0 0
    %1861 = vmatpush1.bf16.msra.mxu0 %v1707
    %1862 = vmatprep.subr.bf16.mxu0 0
    %1863 = vmatpush1.bf16.msra.mxu0 %v1708
    %1864 = vmatprep.subr.bf16.mxu0 0
    %1865 = vmatpush1.bf16.msra.mxu0 %v1709
    %1866 = vmatprep.subr.bf16.mxu0 0
    %1867 = vmatpush1.bf16.msra.mxu0 %v1710
    %1868 = vmatprep.subr.bf16.mxu0 0
    %1869 = vmatpush1.bf16.msra.mxu0 %v1711
    %1870 = vmatprep.subr.bf16.mxu0 0
    %1871 = vmatpush1.bf16.msra.mxu0 %v1712
    %1872 = vmatprep.subr.bf16.mxu0 0
    %1873 = vmatpush1.bf16.msra.mxu0 %v1713
    %1874 = vmatprep.subr.bf16.mxu0 0
    %1875 = vmatpush1.bf16.msra.mxu0 %v1714
    %1876 = vmatprep.subr.bf16.mxu0 0
    %1877 = vmatpush1.bf16.msra.mxu0 %v1715
    %1878 = vmatprep.mubr.bf16.mxu0 %v1469
    %1879 = vmatmul.mubr.bf16.gmra.mrb[0].mxu0 %v1468
    %v1880 = vpop.f32.mrb[0].mxu0
    %v1881 = vadd.f32 %v1840, %v1880
    %v1882 = vpop.f32.mrb[0].mxu0
    %v1883 = vpop.f32.mrb[0].mxu0
    %v1884 = vadd.f32 %v1843, %v1883
    %v1885 = vpop.f32.mrb[0].mxu0
    %1886 = vdwg.mxu0
    %v1887 = vpack.c.bf16 %v1445, %v1444
    %v1896 = vunpack.c.l.b16 %v65
    %v1897 = vunpack.c.l.b16 %v66
    %v1898 = vunpack.c.l.b16 %v67
    %v1899 = vunpack.c.l.b16 %v68
    %v1900 = vunpack.c.l.b16 %v69
    %v1901 = vunpack.c.l.b16 %v70
    %v1902 = vunpack.c.l.b16 %v71
    %v1903 = vunpack.c.l.b16 %v72
    %v1904 = vpack.c.b16 %v1897, %v1896
    %v1905 = vpack.c.b16 %v1899, %v1898
    %v1906 = vpack.c.b16 %v1901, %v1900
    %v1907 = vpack.c.b16 %v1903, %v1902
    %v1913 = vsel %vm309, %v1887, 0
    %1915 = vmatprep.subr.bf16.mxu0 0
    %1916 = vmatpush1.bf16.msra.mxu0 %v1904
    %1917 = vmatprep.subr.bf16.mxu0 0
    %1918 = vmatpush1.bf16.msra.mxu0 %v1905
    %1919 = vmatprep.subr.bf16.mxu0 0
    %1920 = vmatpush1.bf16.msra.mxu0 %v1906
    %1921 = vmatprep.subr.bf16.mxu0 0
    %1922 = vmatpush1.bf16.msra.mxu0 %v1907
    %1923 = vmatprep.subr.bf16.mxu0 0
    %1924 = vmatpush1.bf16.msra.mxu0 0
    %1925 = vmatprep.subr.bf16.mxu0 0
    %1926 = vmatpush1.bf16.msra.mxu0 0
    %1927 = vmatprep.subr.bf16.mxu0 0
    %1928 = vmatpush1.bf16.msra.mxu0 0
    %1929 = vmatprep.subr.bf16.mxu0 0
    %1930 = vmatpush1.bf16.msra.mxu0 0
    %1931 = vmatprep.subr.bf16.mxu0 0
    %1932 = vmatpush1.bf16.msra.mxu0 0
    %1933 = vmatprep.subr.bf16.mxu0 0
    %1934 = vmatpush1.bf16.msra.mxu0 0
    %1935 = vmatprep.subr.bf16.mxu0 0
    %1936 = vmatpush1.bf16.msra.mxu0 0
    %1937 = vmatprep.subr.bf16.mxu0 0
    %1938 = vmatpush1.bf16.msra.mxu0 0
    %1939 = vmatprep.subr.bf16.mxu0 0
    %1940 = vmatpush1.bf16.msra.mxu0 0
    %1941 = vmatprep.subr.bf16.mxu0 0
    %1942 = vmatpush1.bf16.msra.mxu0 0
    %1943 = vmatprep.subr.bf16.mxu0 0
    %1944 = vmatpush1.bf16.msra.mxu0 0
    %1945 = vmatprep.subr.bf16.mxu0 0
    %1946 = vmatpush1.bf16.msra.mxu0 0
    %1947 = vmatprep.mubr.bf16.mxu0 0
    %1948 = vmatmul.mubr.bf16.gmra.mrb[0].mxu0 %v1913
    %v1949 = vpop.f32.mrb[0].mxu0
    %v1950 = vadd.f32 %v246, %v1949
    %v1951 = vpop.f32.mrb[0].mxu0
    %v1952 = vpop.f32.mrb[0].mxu0
    %v1953 = vadd.f32 %v246, %v1952
    %v1954 = vpop.f32.mrb[0].mxu0
    %1955 = vdwg.mxu0
    %v1956 = vmul.f32 %v1950, 0.5
    %v1957 = vmul.f32 %v1953, 0.5
    %v1958 = vpack.c.bf16 %v1884, %v1881
    %v1967 = vunpack.c.l.b16 %v73
    %v1968 = vunpack.c.l.b16 %v74
    %v1969 = vunpack.c.l.b16 %v75
    %v1970 = vunpack.c.l.b16 %v76
    %v1971 = vunpack.c.l.b16 %v77
    %v1972 = vunpack.c.l.b16 %v78
    %v1973 = vunpack.c.l.b16 %v79
    %v1974 = vunpack.c.l.b16 %v80
    %v1975 = vpack.c.b16 %v1968, %v1967
    %v1976 = vpack.c.b16 %v1970, %v1969
    %v1977 = vpack.c.b16 %v1972, %v1971
    %v1978 = vpack.c.b16 %v1974, %v1973
    %v1984 = vsel %vm309, %v1958, 0
    %1986 = vmatprep.subr.bf16.mxu0 0
    %1987 = vmatpush1.bf16.msra.mxu0 %v1975
    %1988 = vmatprep.subr.bf16.mxu0 0
    %1989 = vmatpush1.bf16.msra.mxu0 %v1976
    %1990 = vmatprep.subr.bf16.mxu0 0
    %1991 = vmatpush1.bf16.msra.mxu0 %v1977
    %1992 = vmatprep.subr.bf16.mxu0 0
    %1993 = vmatpush1.bf16.msra.mxu0 %v1978
    %1994 = vmatprep.subr.bf16.mxu0 0
    %1995 = vmatpush1.bf16.msra.mxu0 0
    %1996 = vmatprep.subr.bf16.mxu0 0
    %1997 = vmatpush1.bf16.msra.mxu0 0
    %1998 = vmatprep.subr.bf16.mxu0 0
    %1999 = vmatpush1.bf16.msra.mxu0 0
    %2000 = vmatprep.subr.bf16.mxu0 0
    %2001 = vmatpush1.bf16.msra.mxu0 0
    %2002 = vmatprep.subr.bf16.mxu0 0
    %2003 = vmatpush1.bf16.msra.mxu0 0
    %2004 = vmatprep.subr.bf16.mxu0 0
    %2005 = vmatpush1.bf16.msra.mxu0 0
    %2006 = vmatprep.subr.bf16.mxu0 0
    %2007 = vmatpush1.bf16.msra.mxu0 0
    %2008 = vmatprep.subr.bf16.mxu0 0
    %2009 = vmatpush1.bf16.msra.mxu0 0
    %2010 = vmatprep.subr.bf16.mxu0 0
    %2011 = vmatpush1.bf16.msra.mxu0 0
    %2012 = vmatprep.subr.bf16.mxu0 0
    %2013 = vmatpush1.bf16.msra.mxu0 0
    %2014 = vmatprep.subr.bf16.mxu0 0
    %2015 = vmatpush1.bf16.msra.mxu0 0
    %2016 = vmatprep.subr.bf16.mxu0 0
    %2017 = vmatpush1.bf16.msra.mxu0 0
    %2018 = vmatprep.mubr.bf16.mxu0 0
    %2019 = vmatmul.mubr.bf16.gmra.mrb[0].mxu0 %v1984
    %v2020 = vpop.f32.mrb[0].mxu0
    %v2021 = vadd.f32 %v247, %v2020
    %v2022 = vpop.f32.mrb[0].mxu0
    %v2023 = vpop.f32.mrb[0].mxu0
    %v2024 = vadd.f32 %v247, %v2023
    %v2025 = vpop.f32.mrb[0].mxu0
    %2026 = vdwg.mxu0
    %v2035 = vunpack.c.l.b16 %v81
    %v2036 = vunpack.c.l.b16 %v82
    %v2037 = vunpack.c.l.b16 %v83
    %v2038 = vunpack.c.l.b16 %v84
    %v2039 = vunpack.c.l.b16 %v85
    %v2040 = vunpack.c.l.b16 %v86
    %v2041 = vunpack.c.l.b16 %v87
    %v2042 = vunpack.c.l.b16 %v88
    %v2043 = vpack.c.b16 %v2036, %v2035
    %v2044 = vpack.c.b16 %v2038, %v2037
    %v2045 = vpack.c.b16 %v2040, %v2039
    %v2046 = vpack.c.b16 %v2042, %v2041
    %2051 = vmatprep.subr.bf16.mxu0 0
    %2052 = vmatpush1.bf16.msra.mxu0 %v2043
    %2053 = vmatprep.subr.bf16.mxu0 0
    %2054 = vmatpush1.bf16.msra.mxu0 %v2044
    %2055 = vmatprep.subr.bf16.mxu0 0
    %2056 = vmatpush1.bf16.msra.mxu0 %v2045
    %2057 = vmatprep.subr.bf16.mxu0 0
    %2058 = vmatpush1.bf16.msra.mxu0 %v2046
    %2059 = vmatprep.subr.bf16.mxu0 0
    %2060 = vmatpush1.bf16.msra.mxu0 0
    %2061 = vmatprep.subr.bf16.mxu0 0
    %2062 = vmatpush1.bf16.msra.mxu0 0
    %2063 = vmatprep.subr.bf16.mxu0 0
    %2064 = vmatpush1.bf16.msra.mxu0 0
    %2065 = vmatprep.subr.bf16.mxu0 0
    %2066 = vmatpush1.bf16.msra.mxu0 0
    %2067 = vmatprep.subr.bf16.mxu0 0
    %2068 = vmatpush1.bf16.msra.mxu0 0
    %2069 = vmatprep.subr.bf16.mxu0 0
    %2070 = vmatpush1.bf16.msra.mxu0 0
    %2071 = vmatprep.subr.bf16.mxu0 0
    %2072 = vmatpush1.bf16.msra.mxu0 0
    %2073 = vmatprep.subr.bf16.mxu0 0
    %2074 = vmatpush1.bf16.msra.mxu0 0
    %2075 = vmatprep.subr.bf16.mxu0 0
    %2076 = vmatpush1.bf16.msra.mxu0 0
    %2077 = vmatprep.subr.bf16.mxu0 0
    %2078 = vmatpush1.bf16.msra.mxu0 0
    %2079 = vmatprep.subr.bf16.mxu0 0
    %2080 = vmatpush1.bf16.msra.mxu0 0
    %2081 = vmatprep.subr.bf16.mxu0 0
    %2082 = vmatpush1.bf16.msra.mxu0 0
    %2083 = vmatprep.mubr.bf16.mxu0 0
    %2084 = vmatmul.mubr.bf16.gmra.mrb[0].mxu0 %v1984
    %v2085 = vpop.f32.mrb[0].mxu0
    %v2086 = vadd.f32 %v248, %v2085
    %v2087 = vpop.f32.mrb[0].mxu0
    %v2088 = vpop.f32.mrb[0].mxu0
    %v2089 = vadd.f32 %v248, %v2088
    %v2090 = vpop.f32.mrb[0].mxu0
    %2091 = vdwg.mxu0
    %v2092 = vmul.f32 %v1956, %v33
    %v2093 = vmul.f32 %v1956, %v34
    %v2094 = vmul.f32 %v1956, %v35
    %v2095 = vmul.f32 %v1956, %v36
    %v2096 = vmul.f32 %v1956, %v37
    %v2097 = vmul.f32 %v1956, %v38
    %v2098 = vmul.f32 %v1956, %v39
    %v2099 = vmul.f32 %v1956, %v40
    %v2100 = vmul.f32 %v1956, %v41
    %v2101 = vmul.f32 %v1956, %v42
    %v2102 = vmul.f32 %v1956, %v43
    %v2103 = vmul.f32 %v1956, %v44
    %v2104 = vmul.f32 %v1956, %v45
    %v2105 = vmul.f32 %v1956, %v46
    %v2106 = vmul.f32 %v1956, %v47
    %v2107 = vmul.f32 %v1956, %v48
    %v2108 = vpack.c.bf16 %v2093, %v2092
    %v2109 = vpack.c.bf16 %v2095, %v2094
    %v2110 = vpack.c.bf16 %v2097, %v2096
    %v2111 = vpack.c.bf16 %v2099, %v2098
    %v2112 = vpack.c.bf16 %v2101, %v2100
    %v2113 = vpack.c.bf16 %v2103, %v2102
    %v2114 = vpack.c.bf16 %v2105, %v2104
    %v2115 = vpack.c.bf16 %v2107, %v2106
    %v2116 = vpack.c.bf16 %v2021, %v2021
    %v2118 = vsel %vm309, %v2108, 0
    %v2121 = vsel %vm309, %v2109, 0
    %v2124 = vsel %vm309, %v2110, 0
    %v2127 = vsel %vm309, %v2111, 0
    %v2130 = vsel %vm309, %v2112, 0
    %v2133 = vsel %vm309, %v2113, 0
    %v2136 = vsel %vm309, %v2114, 0
    %v2139 = vsel %vm309, %v2115, 0
    %v2142 = vsel %vm309, %v2116, 0
    %2144 = vmatprep.subr.bf16.mxu0 0
    %2145 = vmatpush1.bf16.xpose.msra.mxu0 %v2142
    %2146 = vmatprep.subr.bf16.mxu0 0
    %2147 = vmatpush1.bf16.xpose.msra.mxu0 0
    %2148 = vmatprep.subr.bf16.mxu0 0
    %2149 = vmatpush1.bf16.xpose.msra.mxu0 0
    %2150 = vmatprep.subr.bf16.mxu0 0
    %2151 = vmatpush1.bf16.xpose.msra.mxu0 0
    %2152 = vmatprep.subr.bf16.mxu0 0
    %2153 = vmatpush1.bf16.xpose.msra.mxu0 0
    %2154 = vmatprep.subr.bf16.mxu0 0
    %2155 = vmatpush1.bf16.xpose.msra.mxu0 0
    %2156 = vmatprep.subr.bf16.mxu0 0
    %2157 = vmatpush1.bf16.xpose.msra.mxu0 0
    %2158 = vmatprep.subr.bf16.mxu0 0
    %2159 = vmatpush1.bf16.xpose.msra.mxu0 0
    %2160 = vmatprep.subr.bf16.mxu0 0
    %2161 = vmatpush1.bf16.xpose.msra.mxu0 0
    %2162 = vmatprep.subr.bf16.mxu0 0
    %2163 = vmatpush1.bf16.xpose.msra.mxu0 0
    %2164 = vmatprep.subr.bf16.mxu0 0
    %2165 = vmatpush1.bf16.xpose.msra.mxu0 0
    %2166 = vmatprep.subr.bf16.mxu0 0
    %2167 = vmatpush1.bf16.xpose.msra.mxu0 0
    %2168 = vmatprep.subr.bf16.mxu0 0
    %2169 = vmatpush1.bf16.xpose.msra.mxu0 0
    %2170 = vmatprep.subr.bf16.mxu0 0
    %2171 = vmatpush1.bf16.xpose.msra.mxu0 0
    %2172 = vmatprep.subr.bf16.mxu0 0
    %2173 = vmatpush1.bf16.xpose.msra.mxu0 0
    %2174 = vmatprep.subr.bf16.mxu0 0
    %2175 = vmatpush1.bf16.xpose.msra.mxu0 0
    %2176 = vmatprep.mubr.bf16.mxu0 0
    %2177 = vmatmul.mubr.bf16.gmra.mrb[0].mxu0 %v2118
    %v2178 = vpop.f32.mrb[0].mxu0
    %v2179 = vadd.f32 0.0, %v2178
    %v2180 = vpop.f32.mrb[0].mxu0
    %v2181 = vpop.f32.mrb[0].mxu0
    %v2182 = vadd.f32 0.0, %v2181
    %v2183 = vpop.f32.mrb[0].mxu0
    %2184 = vmatprep.mubr.bf16.mxu0 0
    %2185 = vmatmul.mubr.bf16.gmra.mrb[0].mxu0 %v2121
    %v2186 = vpop.f32.mrb[0].mxu0
    %v2187 = vadd.f32 0.0, %v2186
    %v2188 = vpop.f32.mrb[0].mxu0
    %v2189 = vpop.f32.mrb[0].mxu0
    %v2190 = vadd.f32 0.0, %v2189
    %v2191 = vpop.f32.mrb[0].mxu0
    %2192 = vmatprep.mubr.bf16.mxu0 0
    %2193 = vmatmul.mubr.bf16.gmra.mrb[0].mxu0 %v2124
    %v2194 = vpop.f32.mrb[0].mxu0
    %v2195 = vadd.f32 0.0, %v2194
    %v2196 = vpop.f32.mrb[0].mxu0
    %v2197 = vpop.f32.mrb[0].mxu0
    %v2198 = vadd.f32 0.0, %v2197
    %v2199 = vpop.f32.mrb[0].mxu0
    %2200 = vmatprep.mubr.bf16.mxu0 0
    %2201 = vmatmul.mubr.bf16.gmra.mrb[0].mxu0 %v2127
    %v2202 = vpop.f32.mrb[0].mxu0
    %v2203 = vadd.f32 0.0, %v2202
    %v2204 = vpop.f32.mrb[0].mxu0
    %v2205 = vpop.f32.mrb[0].mxu0
    %v2206 = vadd.f32 0.0, %v2205
    %v2207 = vpop.f32.mrb[0].mxu0
    %2208 = vmatprep.mubr.bf16.mxu0 0
    %2209 = vmatmul.mubr.bf16.gmra.mrb[0].mxu0 %v2130
    %v2210 = vpop.f32.mrb[0].mxu0
    %v2211 = vadd.f32 0.0, %v2210
    %v2212 = vpop.f32.mrb[0].mxu0
    %v2213 = vpop.f32.mrb[0].mxu0
    %v2214 = vadd.f32 0.0, %v2213
    %v2215 = vpop.f32.mrb[0].mxu0
    %2216 = vmatprep.mubr.bf16.mxu0 0
    %2217 = vmatmul.mubr.bf16.gmra.mrb[0].mxu0 %v2133
    %v2218 = vpop.f32.mrb[0].mxu0
    %v2219 = vadd.f32 0.0, %v2218
    %v2220 = vpop.f32.mrb[0].mxu0
    %v2221 = vpop.f32.mrb[0].mxu0
    %v2222 = vadd.f32 0.0, %v2221
    %v2223 = vpop.f32.mrb[0].mxu0
    %2224 = vmatprep.mubr.bf16.mxu0 0
    %2225 = vmatmul.mubr.bf16.gmra.mrb[0].mxu0 %v2136
    %v2226 = vpop.f32.mrb[0].mxu0
    %v2227 = vadd.f32 0.0, %v2226
    %v2228 = vpop.f32.mrb[0].mxu0
    %v2229 = vpop.f32.mrb[0].mxu0
    %v2230 = vadd.f32 0.0, %v2229
    %v2231 = vpop.f32.mrb[0].mxu0
    %2232 = vmatprep.mubr.bf16.mxu0 0
    %2233 = vmatmul.mubr.bf16.gmra.mrb[0].mxu0 %v2139
    %v2234 = vpop.f32.mrb[0].mxu0
    %v2235 = vadd.f32 0.0, %v2234
    %v2236 = vpop.f32.mrb[0].mxu0
    %v2237 = vpop.f32.mrb[0].mxu0
    %v2238 = vadd.f32 0.0, %v2237
    %v2239 = vpop.f32.mrb[0].mxu0
    %2240 = vdwg.mxu0
    %vm2241 = vcmask 48128
    %v2242 = vsel %vm2241, %v2179, -inf
    %2243 = vmax.xlane.f32.xlu0 %v2242
    %v2244 = vpop.xlane.xlu0 %2243
    %v2245 = vsel %vm2241, %v2182, -inf
    %2246 = vmax.xlane.f32.xlu0 %v2245
    %v2247 = vpop.xlane.xlu0 %2246
    %v2248 = vsel %vm2241, %v2187, -inf
    %2249 = vmax.xlane.f32.xlu0 %v2248
    %v2250 = vpop.xlane.xlu0 %2249
    %v2251 = vsel %vm2241, %v2190, -inf
    %2252 = vmax.xlane.f32.xlu0 %v2251
    %v2253 = vpop.xlane.xlu0 %2252
    %v2254 = vsel %vm2241, %v2195, -inf
    %2255 = vmax.xlane.f32.xlu0 %v2254
    %v2256 = vpop.xlane.xlu0 %2255
    %v2257 = vsel %vm2241, %v2198, -inf
    %2258 = vmax.xlane.f32.xlu0 %v2257
    %v2259 = vpop.xlane.xlu0 %2258
    %v2260 = vsel %vm2241, %v2203, -inf
    %2261 = vmax.xlane.f32.xlu0 %v2260
    %v2262 = vpop.xlane.xlu0 %2261
    %v2263 = vsel %vm2241, %v2206, -inf
    %2264 = vmax.xlane.f32.xlu0 %v2263
    %v2265 = vpop.xlane.xlu0 %2264
    %v2266 = vsel %vm2241, %v2211, -inf
    %2267 = vmax.xlane.f32.xlu0 %v2266
    %v2268 = vpop.xlane.xlu0 %2267
    %v2269 = vsel %vm2241, %v2214, -inf
    %2270 = vmax.xlane.f32.xlu0 %v2269
    %v2271 = vpop.xlane.xlu0 %2270
    %v2272 = vsel %vm2241, %v2219, -inf
    %2273 = vmax.xlane.f32.xlu0 %v2272
    %v2274 = vpop.xlane.xlu0 %2273
    %v2275 = vsel %vm2241, %v2222, -inf
    %2276 = vmax.xlane.f32.xlu0 %v2275
    %v2277 = vpop.xlane.xlu0 %2276
    %v2278 = vsel %vm2241, %v2227, -inf
    %2279 = vmax.xlane.f32.xlu0 %v2278
    %v2280 = vpop.xlane.xlu0 %2279
    %v2281 = vsel %vm2241, %v2230, -inf
    %2282 = vmax.xlane.f32.xlu0 %v2281
    %v2283 = vpop.xlane.xlu0 %2282
    %v2284 = vsel %vm2241, %v2235, -inf
    %2285 = vmax.xlane.f32.xlu0 %v2284
    %v2286 = vpop.xlane.xlu0 %2285
    %v2287 = vsel %vm2241, %v2238, -inf
    %2288 = vmax.xlane.f32.xlu0 %v2287
    %v2289 = vpop.xlane.xlu0 %2288
    %v2290 = vsub.f32 %v2179, %v2244
    %v2291 = vsub.f32 %v2182, %v2247
    %v2292 = vsub.f32 %v2187, %v2250
    %v2293 = vsub.f32 %v2190, %v2253
    %v2294 = vsub.f32 %v2195, %v2256
    %v2295 = vsub.f32 %v2198, %v2259
    %v2296 = vsub.f32 %v2203, %v2262
    %v2297 = vsub.f32 %v2206, %v2265
    %v2298 = vsub.f32 %v2211, %v2268
    %v2299 = vsub.f32 %v2214, %v2271
    %v2300 = vsub.f32 %v2219, %v2274
    %v2301 = vsub.f32 %v2222, %v2277
    %v2302 = vsub.f32 %v2227, %v2280
    %v2303 = vsub.f32 %v2230, %v2283
    %v2304 = vsub.f32 %v2235, %v2286
    %v2305 = vsub.f32 %v2238, %v2289
    %v2306 = vmul.f32 %v2290, 1.442695
    %v2307 = vpow.pop %v2306
    %v2308 = vmul.f32 %v2291, 1.442695
    %v2309 = vpow.pop %v2308
    %v2310 = vmul.f32 %v2292, 1.442695
    %v2311 = vpow.pop %v2310
    %v2312 = vmul.f32 %v2293, 1.442695
    %v2313 = vpow.pop %v2312
    %v2314 = vmul.f32 %v2294, 1.442695
    %v2315 = vpow.pop %v2314
    %v2316 = vmul.f32 %v2295, 1.442695
    %v2317 = vpow.pop %v2316
    %v2318 = vmul.f32 %v2296, 1.442695
    %v2319 = vpow.pop %v2318
    %v2320 = vmul.f32 %v2297, 1.442695
    %v2321 = vpow.pop %v2320
    %v2322 = vmul.f32 %v2298, 1.442695
    %v2323 = vpow.pop %v2322
    %v2324 = vmul.f32 %v2299, 1.442695
    %v2325 = vpow.pop %v2324
    %v2326 = vmul.f32 %v2300, 1.442695
    %v2327 = vpow.pop %v2326
    %v2328 = vmul.f32 %v2301, 1.442695
    %v2329 = vpow.pop %v2328
    %v2330 = vmul.f32 %v2302, 1.442695
    %v2331 = vpow.pop %v2330
    %v2332 = vmul.f32 %v2303, 1.442695
    %v2333 = vpow.pop %v2332
    %v2334 = vmul.f32 %v2304, 1.442695
    %v2335 = vpow.pop %v2334
    %v2336 = vmul.f32 %v2305, 1.442695
    %v2337 = vpow.pop %v2336
    %v2338 = vsel %vm2241, %v2307, 0.0
    %2339 = vadd.xlane.f32.xlu0 %v2338
    %v2340 = vpop.xlane.xlu0 %2339
    %v2341 = vsel %vm2241, %v2309, 0.0
    %2342 = vadd.xlane.f32.xlu0 %v2341
    %v2343 = vpop.xlane.xlu0 %2342
    %v2344 = vsel %vm2241, %v2311, 0.0
    %2345 = vadd.xlane.f32.xlu0 %v2344
    %v2346 = vpop.xlane.xlu0 %2345
    %v2347 = vsel %vm2241, %v2313, 0.0
    %2348 = vadd.xlane.f32.xlu0 %v2347
    %v2349 = vpop.xlane.xlu0 %2348
    %v2350 = vsel %vm2241, %v2315, 0.0
    %2351 = vadd.xlane.f32.xlu0 %v2350
    %v2352 = vpop.xlane.xlu0 %2351
    %v2353 = vsel %vm2241, %v2317, 0.0
    %2354 = vadd.xlane.f32.xlu0 %v2353
    %v2355 = vpop.xlane.xlu0 %2354
    %v2356 = vsel %vm2241, %v2319, 0.0
    %2357 = vadd.xlane.f32.xlu0 %v2356
    %v2358 = vpop.xlane.xlu0 %2357
    %v2359 = vsel %vm2241, %v2321, 0.0
    %2360 = vadd.xlane.f32.xlu0 %v2359
    %v2361 = vpop.xlane.xlu0 %2360
    %v2362 = vsel %vm2241, %v2323, 0.0
    %2363 = vadd.xlane.f32.xlu0 %v2362
    %v2364 = vpop.xlane.xlu0 %2363
    %v2365 = vsel %vm2241, %v2325, 0.0
    %2366 = vadd.xlane.f32.xlu0 %v2365
    %v2367 = vpop.xlane.xlu0 %2366
    %v2368 = vsel %vm2241, %v2327, 0.0
    %2369 = vadd.xlane.f32.xlu0 %v2368
    %v2370 = vpop.xlane.xlu0 %2369
    %v2371 = vsel %vm2241, %v2329, 0.0
    %2372 = vadd.xlane.f32.xlu0 %v2371
    %v2373 = vpop.xlane.xlu0 %2372
    %v2374 = vsel %vm2241, %v2331, 0.0
    %2375 = vadd.xlane.f32.xlu0 %v2374
    %v2376 = vpop.xlane.xlu0 %2375
    %v2377 = vsel %vm2241, %v2333, 0.0
    %2378 = vadd.xlane.f32.xlu0 %v2377
    %v2379 = vpop.xlane.xlu0 %2378
    %v2380 = vsel %vm2241, %v2335, 0.0
    %2381 = vadd.xlane.f32.xlu0 %v2380
    %v2382 = vpop.xlane.xlu0 %2381
    %v2383 = vsel %vm2241, %v2337, 0.0
    %2384 = vadd.xlane.f32.xlu0 %v2383
    %v2385 = vpop.xlane.xlu0 %2384
    %v2386 = vrcp.pop %v2340
    %v2387 = vrcp.pop %v2343
    %v2388 = vrcp.pop %v2346
    %v2389 = vrcp.pop %v2349
    %v2390 = vrcp.pop %v2352
    %v2391 = vrcp.pop %v2355
    %v2392 = vrcp.pop %v2358
    %v2393 = vrcp.pop %v2361
    %v2394 = vrcp.pop %v2364
    %v2395 = vrcp.pop %v2367
    %v2396 = vrcp.pop %v2370
    %v2397 = vrcp.pop %v2373
    %v2398 = vrcp.pop %v2376
    %v2399 = vrcp.pop %v2379
    %v2400 = vrcp.pop %v2382
    %v2401 = vrcp.pop %v2385
    %v2402 = vmul.f32 %v2307, %v2386
    %v2403 = vmul.f32 %v2309, %v2387
    %v2404 = vmul.f32 %v2311, %v2388
    %v2405 = vmul.f32 %v2313, %v2389
    %v2406 = vmul.f32 %v2315, %v2390
    %v2407 = vmul.f32 %v2317, %v2391
    %v2408 = vmul.f32 %v2319, %v2392
    %v2409 = vmul.f32 %v2321, %v2393
    %v2410 = vmul.f32 %v2323, %v2394
    %v2411 = vmul.f32 %v2325, %v2395
    %v2412 = vmul.f32 %v2327, %v2396
    %v2413 = vmul.f32 %v2329, %v2397
    %v2414 = vmul.f32 %v2331, %v2398
    %v2415 = vmul.f32 %v2333, %v2399
    %v2416 = vmul.f32 %v2335, %v2400
    %v2417 = vmul.f32 %v2337, %v2401
    %v2418 = vpack.c.bf16 %v2403, %v2402
    %v2419 = vpack.c.bf16 %v2405, %v2404
    %v2420 = vpack.c.bf16 %v2407, %v2406
    %v2421 = vpack.c.bf16 %v2409, %v2408
    %v2422 = vpack.c.bf16 %v2411, %v2410
    %v2423 = vpack.c.bf16 %v2413, %v2412
    %v2424 = vpack.c.bf16 %v2415, %v2414
    %v2425 = vpack.c.bf16 %v2417, %v2416
    %v2426 = vpack.c.bf16 %v2086, %v2086
    %v2428 = vsel %vm2241, %v2418, 0
    %v2431 = vsel %vm2241, %v2419, 0
    %v2434 = vsel %vm2241, %v2420, 0
    %v2437 = vsel %vm2241, %v2421, 0
    %v2440 = vsel %vm2241, %v2422, 0
    %v2443 = vsel %vm2241, %v2423, 0
    %v2446 = vsel %vm2241, %v2424, 0
    %v2449 = vsel %vm2241, %v2425, 0
    %vm2451 = vcmask 1042432
    %v2453 = vsel %vm2451, %v2426, 0
    %2455 = vmatprep.subr.bf16.mxu0 0
    %2456 = vmatpush1.bf16.msra.mxu0 %v2453
    %2457 = vmatprep.subr.bf16.mxu0 0
    %2458 = vmatpush1.bf16.msra.mxu0 0
    %2459 = vmatprep.subr.bf16.mxu0 0
    %2460 = vmatpush1.bf16.msra.mxu0 0
    %2461 = vmatprep.subr.bf16.mxu0 0
    %2462 = vmatpush1.bf16.msra.mxu0 0
    %2463 = vmatprep.subr.bf16.mxu0 0
    %2464 = vmatpush1.bf16.msra.mxu0 0
    %2465 = vmatprep.subr.bf16.mxu0 0
    %2466 = vmatpush1.bf16.msra.mxu0 0
    %2467 = vmatprep.subr.bf16.mxu0 0
    %2468 = vmatpush1.bf16.msra.mxu0 0
    %2469 = vmatprep.subr.bf16.mxu0 0
    %2470 = vmatpush1.bf16.msra.mxu0 0
    %2471 = vmatprep.subr.bf16.mxu0 0
    %2472 = vmatpush1.bf16.msra.mxu0 0
    %2473 = vmatprep.subr.bf16.mxu0 0
    %2474 = vmatpush1.bf16.msra.mxu0 0
    %2475 = vmatprep.subr.bf16.mxu0 0
    %2476 = vmatpush1.bf16.msra.mxu0 0
    %2477 = vmatprep.subr.bf16.mxu0 0
    %2478 = vmatpush1.bf16.msra.mxu0 0
    %2479 = vmatprep.subr.bf16.mxu0 0
    %2480 = vmatpush1.bf16.msra.mxu0 0
    %2481 = vmatprep.subr.bf16.mxu0 0
    %2482 = vmatpush1.bf16.msra.mxu0 0
    %2483 = vmatprep.subr.bf16.mxu0 0
    %2484 = vmatpush1.bf16.msra.mxu0 0
    %2485 = vmatprep.subr.bf16.mxu0 0
    %2486 = vmatpush1.bf16.msra.mxu0 0
    %2487 = vmatprep.mubr.bf16.mxu0 0
    %2488 = vmatmul.mubr.bf16.gmra.mrb[0].mxu0 %v2428
    %v2489 = vpop.f32.mrb[0].mxu0
    %v2490 = vadd.f32 0.0, %v2489
    %v2491 = vpop.f32.mrb[0].mxu0
    %v2492 = vpop.f32.mrb[0].mxu0
    %v2493 = vadd.f32 0.0, %v2492
    %v2494 = vpop.f32.mrb[0].mxu0
    %2495 = vmatprep.mubr.bf16.mxu0 0
    %2496 = vmatmul.mubr.bf16.gmra.mrb[0].mxu0 %v2431
    %v2497 = vpop.f32.mrb[0].mxu0
    %v2498 = vadd.f32 0.0, %v2497
    %v2499 = vpop.f32.mrb[0].mxu0
    %v2500 = vpop.f32.mrb[0].mxu0
    %v2501 = vadd.f32 0.0, %v2500
    %v2502 = vpop.f32.mrb[0].mxu0
    %2503 = vmatprep.mubr.bf16.mxu0 0
    %2504 = vmatmul.mubr.bf16.gmra.mrb[0].mxu0 %v2434
    %v2505 = vpop.f32.mrb[0].mxu0
    %v2506 = vadd.f32 0.0, %v2505
    %v2507 = vpop.f32.mrb[0].mxu0
    %v2508 = vpop.f32.mrb[0].mxu0
    %v2509 = vadd.f32 0.0, %v2508
    %v2510 = vpop.f32.mrb[0].mxu0
    %2511 = vmatprep.mubr.bf16.mxu0 0
    %2512 = vmatmul.mubr.bf16.gmra.mrb[0].mxu0 %v2437
    %v2513 = vpop.f32.mrb[0].mxu0
    %v2514 = vadd.f32 0.0, %v2513
    %v2515 = vpop.f32.mrb[0].mxu0
    %v2516 = vpop.f32.mrb[0].mxu0
    %v2517 = vadd.f32 0.0, %v2516
    %v2518 = vpop.f32.mrb[0].mxu0
    %2519 = vmatprep.mubr.bf16.mxu0 0
    %2520 = vmatmul.mubr.bf16.gmra.mrb[0].mxu0 %v2440
    %v2521 = vpop.f32.mrb[0].mxu0
    %v2522 = vadd.f32 0.0, %v2521
    %v2523 = vpop.f32.mrb[0].mxu0
    %v2524 = vpop.f32.mrb[0].mxu0
    %v2525 = vadd.f32 0.0, %v2524
    %v2526 = vpop.f32.mrb[0].mxu0
    %2527 = vmatprep.mubr.bf16.mxu0 0
    %2528 = vmatmul.mubr.bf16.gmra.mrb[0].mxu0 %v2443
    %v2529 = vpop.f32.mrb[0].mxu0
    %v2530 = vadd.f32 0.0, %v2529
    %v2531 = vpop.f32.mrb[0].mxu0
    %v2532 = vpop.f32.mrb[0].mxu0
    %v2533 = vadd.f32 0.0, %v2532
    %v2534 = vpop.f32.mrb[0].mxu0
    %2535 = vmatprep.mubr.bf16.mxu0 0
    %2536 = vmatmul.mubr.bf16.gmra.mrb[0].mxu0 %v2446
    %v2537 = vpop.f32.mrb[0].mxu0
    %v2538 = vadd.f32 0.0, %v2537
    %v2539 = vpop.f32.mrb[0].mxu0
    %v2540 = vpop.f32.mrb[0].mxu0
    %v2541 = vadd.f32 0.0, %v2540
    %v2542 = vpop.f32.mrb[0].mxu0
    %2543 = vmatprep.mubr.bf16.mxu0 0
    %2544 = vmatmul.mubr.bf16.gmra.mrb[0].mxu0 %v2449
    %v2545 = vpop.f32.mrb[0].mxu0
    %v2546 = vadd.f32 0.0, %v2545
    %v2547 = vpop.f32.mrb[0].mxu0
    %v2548 = vpop.f32.mrb[0].mxu0
    %v2549 = vadd.f32 0.0, %v2548
    %v2550 = vpop.f32.mrb[0].mxu0
    %2551 = vdwg.mxu0
    %v2552 = vmul.f32 %v2490, %v33
    %v2553 = vmul.f32 %v2493, %v34
    %v2554 = vmul.f32 %v2498, %v35
    %v2555 = vmul.f32 %v2501, %v36
    %v2556 = vmul.f32 %v2506, %v37
    %v2557 = vmul.f32 %v2509, %v38
    %v2558 = vmul.f32 %v2514, %v39
    %v2559 = vmul.f32 %v2517, %v40
    %v2560 = vmul.f32 %v2522, %v41
    %v2561 = vmul.f32 %v2525, %v42
    %v2562 = vmul.f32 %v2530, %v43
    %v2563 = vmul.f32 %v2533, %v44
    %v2564 = vmul.f32 %v2538, %v45
    %v2565 = vmul.f32 %v2541, %v46
    %v2566 = vmul.f32 %v2546, %v47
    %v2567 = vmul.f32 %v2549, %v48
    %v2568 = vadd.f32 %v2552, %v2553
    %v2569 = vadd.f32 %v2554, %v2555
    %v2570 = vadd.f32 %v2556, %v2557
    %v2571 = vadd.f32 %v2558, %v2559
    %v2572 = vadd.f32 %v2560, %v2561
    %v2573 = vadd.f32 %v2562, %v2563
    %v2574 = vadd.f32 %v2564, %v2565
    %v2575 = vadd.f32 %v2566, %v2567
    %v2576 = vadd.f32 %v2568, %v2569
    %v2577 = vadd.f32 %v2570, %v2571
    %v2578 = vadd.f32 %v2572, %v2573
    %v2579 = vadd.f32 %v2574, %v2575
    %v2580 = vadd.f32 %v2576, %v2577
    %v2581 = vadd.f32 %v2578, %v2579
    %v2582 = vadd.f32 %v2580, %v2581
    %v2583 = vmul.f32 %v1957, %v33
    %v2584 = vmul.f32 %v1957, %v34
    %v2585 = vmul.f32 %v1957, %v35
    %v2586 = vmul.f32 %v1957, %v36
    %v2587 = vmul.f32 %v1957, %v37
    %v2588 = vmul.f32 %v1957, %v38
    %v2589 = vmul.f32 %v1957, %v39
    %v2590 = vmul.f32 %v1957, %v40
    %v2591 = vmul.f32 %v1957, %v41
    %v2592 = vmul.f32 %v1957, %v42
    %v2593 = vmul.f32 %v1957, %v43
    %v2594 = vmul.f32 %v1957, %v44
    %v2595 = vmul.f32 %v1957, %v45
    %v2596 = vmul.f32 %v1957, %v46
    %v2597 = vmul.f32 %v1957, %v47
    %v2598 = vmul.f32 %v1957, %v48
    %v2599 = vpack.c.bf16 %v2584, %v2583
    %v2600 = vpack.c.bf16 %v2586, %v2585
    %v2601 = vpack.c.bf16 %v2588, %v2587
    %v2602 = vpack.c.bf16 %v2590, %v2589
    %v2603 = vpack.c.bf16 %v2592, %v2591
    %v2604 = vpack.c.bf16 %v2594, %v2593
    %v2605 = vpack.c.bf16 %v2596, %v2595
    %v2606 = vpack.c.bf16 %v2598, %v2597
    %v2607 = vpack.c.bf16 %v2024, %v2021
    %v2609 = vrot.slane %v2607, 3
    %v2611 = vsel %vm309, %v2599, 0
    %v2614 = vsel %vm309, %v2600, 0
    %v2617 = vsel %vm309, %v2601, 0
    %v2620 = vsel %vm309, %v2602, 0
    %v2623 = vsel %vm309, %v2603, 0
    %v2626 = vsel %vm309, %v2604, 0
    %v2629 = vsel %vm309, %v2605, 0
    %v2632 = vsel %vm309, %v2606, 0
    %v2635 = vsel %vm309, %v2609, 0
    %2637 = vmatprep.subr.bf16.mxu0 0
    %2638 = vmatpush1.bf16.xpose.msra.mxu0 %v2635
    %2639 = vmatprep.subr.bf16.mxu0 0
    %2640 = vmatpush1.bf16.xpose.msra.mxu0 0
    %2641 = vmatprep.subr.bf16.mxu0 0
    %2642 = vmatpush1.bf16.xpose.msra.mxu0 0
    %2643 = vmatprep.subr.bf16.mxu0 0
    %2644 = vmatpush1.bf16.xpose.msra.mxu0 0
    %2645 = vmatprep.subr.bf16.mxu0 0
    %2646 = vmatpush1.bf16.xpose.msra.mxu0 0
    %2647 = vmatprep.subr.bf16.mxu0 0
    %2648 = vmatpush1.bf16.xpose.msra.mxu0 0
    %2649 = vmatprep.subr.bf16.mxu0 0
    %2650 = vmatpush1.bf16.xpose.msra.mxu0 0
    %2651 = vmatprep.subr.bf16.mxu0 0
    %2652 = vmatpush1.bf16.xpose.msra.mxu0 0
    %2653 = vmatprep.subr.bf16.mxu0 0
    %2654 = vmatpush1.bf16.xpose.msra.mxu0 0
    %2655 = vmatprep.subr.bf16.mxu0 0
    %2656 = vmatpush1.bf16.xpose.msra.mxu0 0
    %2657 = vmatprep.subr.bf16.mxu0 0
    %2658 = vmatpush1.bf16.xpose.msra.mxu0 0
    %2659 = vmatprep.subr.bf16.mxu0 0
    %2660 = vmatpush1.bf16.xpose.msra.mxu0 0
    %2661 = vmatprep.subr.bf16.mxu0 0
    %2662 = vmatpush1.bf16.xpose.msra.mxu0 0
    %2663 = vmatprep.subr.bf16.mxu0 0
    %2664 = vmatpush1.bf16.xpose.msra.mxu0 0
    %2665 = vmatprep.subr.bf16.mxu0 0
    %2666 = vmatpush1.bf16.xpose.msra.mxu0 0
    %2667 = vmatprep.subr.bf16.mxu0 0
    %2668 = vmatpush1.bf16.xpose.msra.mxu0 0
    %2669 = vmatprep.mubr.bf16.mxu0 0
    %2670 = vmatmul.mubr.bf16.gmra.mrb[0].mxu0 %v2611
    %v2671 = vpop.f32.mrb[0].mxu0
    %v2672 = vadd.f32 0.0, %v2671
    %v2673 = vpop.f32.mrb[0].mxu0
    %v2674 = vpop.f32.mrb[0].mxu0
    %v2675 = vadd.f32 0.0, %v2674
    %v2676 = vpop.f32.mrb[0].mxu0
    %2677 = vmatprep.mubr.bf16.mxu0 0
    %2678 = vmatmul.mubr.bf16.gmra.mrb[0].mxu0 %v2614
    %v2679 = vpop.f32.mrb[0].mxu0
    %v2680 = vadd.f32 0.0, %v2679
    %v2681 = vpop.f32.mrb[0].mxu0
    %v2682 = vpop.f32.mrb[0].mxu0
    %v2683 = vadd.f32 0.0, %v2682
    %v2684 = vpop.f32.mrb[0].mxu0
    %2685 = vmatprep.mubr.bf16.mxu0 0
    %2686 = vmatmul.mubr.bf16.gmra.mrb[0].mxu0 %v2617
    %v2687 = vpop.f32.mrb[0].mxu0
    %v2688 = vadd.f32 0.0, %v2687
    %v2689 = vpop.f32.mrb[0].mxu0
    %v2690 = vpop.f32.mrb[0].mxu0
    %v2691 = vadd.f32 0.0, %v2690
    %v2692 = vpop.f32.mrb[0].mxu0
    %2693 = vmatprep.mubr.bf16.mxu0 0
    %2694 = vmatmul.mubr.bf16.gmra.mrb[0].mxu0 %v2620
    %v2695 = vpop.f32.mrb[0].mxu0
    %v2696 = vadd.f32 0.0, %v2695
    %v2697 = vpop.f32.mrb[0].mxu0
    %v2698 = vpop.f32.mrb[0].mxu0
    %v2699 = vadd.f32 0.0, %v2698
    %v2700 = vpop.f32.mrb[0].mxu0
    %2701 = vmatprep.mubr.bf16.mxu0 0
    %2702 = vmatmul.mubr.bf16.gmra.mrb[0].mxu0 %v2623
    %v2703 = vpop.f32.mrb[0].mxu0
    %v2704 = vadd.f32 0.0, %v2703
    %v2705 = vpop.f32.mrb[0].mxu0
    %v2706 = vpop.f32.mrb[0].mxu0
    %v2707 = vadd.f32 0.0, %v2706
    %v2708 = vpop.f32.mrb[0].mxu0
    %2709 = vmatprep.mubr.bf16.mxu0 0
    %2710 = vmatmul.mubr.bf16.gmra.mrb[0].mxu0 %v2626
    %v2711 = vpop.f32.mrb[0].mxu0
    %v2712 = vadd.f32 0.0, %v2711
    %v2713 = vpop.f32.mrb[0].mxu0
    %v2714 = vpop.f32.mrb[0].mxu0
    %v2715 = vadd.f32 0.0, %v2714
    %v2716 = vpop.f32.mrb[0].mxu0
    %2717 = vmatprep.mubr.bf16.mxu0 0
    %2718 = vmatmul.mubr.bf16.gmra.mrb[0].mxu0 %v2629
    %v2719 = vpop.f32.mrb[0].mxu0
    %v2720 = vadd.f32 0.0, %v2719
    %v2721 = vpop.f32.mrb[0].mxu0
    %v2722 = vpop.f32.mrb[0].mxu0
    %v2723 = vadd.f32 0.0, %v2722
    %v2724 = vpop.f32.mrb[0].mxu0
    %2725 = vmatprep.mubr.bf16.mxu0 0
    %2726 = vmatmul.mubr.bf16.gmra.mrb[0].mxu0 %v2632
    %v2727 = vpop.f32.mrb[0].mxu0
    %v2728 = vadd.f32 0.0, %v2727
    %v2729 = vpop.f32.mrb[0].mxu0
    %v2730 = vpop.f32.mrb[0].mxu0
    %v2731 = vadd.f32 0.0, %v2730
    %v2732 = vpop.f32.mrb[0].mxu0
    %2733 = vdwg.mxu0
    %v2734 = vsel %vm2241, %v2672, -inf
    %2735 = vmax.xlane.f32.xlu0 %v2734
    %v2736 = vpop.xlane.xlu0 %2735
    %v2737 = vsel %vm2241, %v2675, -inf
    %2738 = vmax.xlane.f32.xlu0 %v2737
    %v2739 = vpop.xlane.xlu0 %2738
    %v2740 = vsel %vm2241, %v2680, -inf
    %2741 = vmax.xlane.f32.xlu0 %v2740
    %v2742 = vpop.xlane.xlu0 %2741
    %v2743 = vsel %vm2241, %v2683, -inf
    %2744 = vmax.xlane.f32.xlu0 %v2743
    %v2745 = vpop.xlane.xlu0 %2744
    %v2746 = vsel %vm2241, %v2688, -inf
    %2747 = vmax.xlane.f32.xlu0 %v2746
    %v2748 = vpop.xlane.xlu0 %2747
    %v2749 = vsel %vm2241, %v2691, -inf
    %2750 = vmax.xlane.f32.xlu0 %v2749
    %v2751 = vpop.xlane.xlu0 %2750
    %v2752 = vsel %vm2241, %v2696, -inf
    %2753 = vmax.xlane.f32.xlu0 %v2752
    %v2754 = vpop.xlane.xlu0 %2753
    %v2755 = vsel %vm2241, %v2699, -inf
    %2756 = vmax.xlane.f32.xlu0 %v2755
    %v2757 = vpop.xlane.xlu0 %2756
    %v2758 = vsel %vm2241, %v2704, -inf
    %2759 = vmax.xlane.f32.xlu0 %v2758
    %v2760 = vpop.xlane.xlu0 %2759
    %v2761 = vsel %vm2241, %v2707, -inf
    %2762 = vmax.xlane.f32.xlu0 %v2761
    %v2763 = vpop.xlane.xlu0 %2762
    %v2764 = vsel %vm2241, %v2712, -inf
    %2765 = vmax.xlane.f32.xlu0 %v2764
    %v2766 = vpop.xlane.xlu0 %2765
    %v2767 = vsel %vm2241, %v2715, -inf
    %2768 = vmax.xlane.f32.xlu0 %v2767
    %v2769 = vpop.xlane.xlu0 %2768
    %v2770 = vsel %vm2241, %v2720, -inf
    %2771 = vmax.xlane.f32.xlu0 %v2770
    %v2772 = vpop.xlane.xlu0 %2771
    %v2773 = vsel %vm2241, %v2723, -inf
    %2774 = vmax.xlane.f32.xlu0 %v2773
    %v2775 = vpop.xlane.xlu0 %2774
    %v2776 = vsel %vm2241, %v2728, -inf
    %2777 = vmax.xlane.f32.xlu0 %v2776
    %v2778 = vpop.xlane.xlu0 %2777
    %v2779 = vsel %vm2241, %v2731, -inf
    %2780 = vmax.xlane.f32.xlu0 %v2779
    %v2781 = vpop.xlane.xlu0 %2780
    %v2782 = vsub.f32 %v2672, %v2736
    %v2783 = vsub.f32 %v2675, %v2739
    %v2784 = vsub.f32 %v2680, %v2742
    %v2785 = vsub.f32 %v2683, %v2745
    %v2786 = vsub.f32 %v2688, %v2748
    %v2787 = vsub.f32 %v2691, %v2751
    %v2788 = vsub.f32 %v2696, %v2754
    %v2789 = vsub.f32 %v2699, %v2757
    %v2790 = vsub.f32 %v2704, %v2760
    %v2791 = vsub.f32 %v2707, %v2763
    %v2792 = vsub.f32 %v2712, %v2766
    %v2793 = vsub.f32 %v2715, %v2769
    %v2794 = vsub.f32 %v2720, %v2772
    %v2795 = vsub.f32 %v2723, %v2775
    %v2796 = vsub.f32 %v2728, %v2778
    %v2797 = vsub.f32 %v2731, %v2781
    %v2798 = vmul.f32 %v2782, 1.442695
    %v2799 = vpow.pop %v2798
    %v2800 = vmul.f32 %v2783, 1.442695
    %v2801 = vpow.pop %v2800
    %v2802 = vmul.f32 %v2784, 1.442695
    %v2803 = vpow.pop %v2802
    %v2804 = vmul.f32 %v2785, 1.442695
    %v2805 = vpow.pop %v2804
    %v2806 = vmul.f32 %v2786, 1.442695
    %v2807 = vpow.pop %v2806
    %v2808 = vmul.f32 %v2787, 1.442695
    %v2809 = vpow.pop %v2808
    %v2810 = vmul.f32 %v2788, 1.442695
    %v2811 = vpow.pop %v2810
    %v2812 = vmul.f32 %v2789, 1.442695
    %v2813 = vpow.pop %v2812
    %v2814 = vmul.f32 %v2790, 1.442695
    %v2815 = vpow.pop %v2814
    %v2816 = vmul.f32 %v2791, 1.442695
    %v2817 = vpow.pop %v2816
    %v2818 = vmul.f32 %v2792, 1.442695
    %v2819 = vpow.pop %v2818
    %v2820 = vmul.f32 %v2793, 1.442695
    %v2821 = vpow.pop %v2820
    %v2822 = vmul.f32 %v2794, 1.442695
    %v2823 = vpow.pop %v2822
    %v2824 = vmul.f32 %v2795, 1.442695
    %v2825 = vpow.pop %v2824
    %v2826 = vmul.f32 %v2796, 1.442695
    %v2827 = vpow.pop %v2826
    %v2828 = vmul.f32 %v2797, 1.442695
    %v2829 = vpow.pop %v2828
    %v2830 = vsel %vm2241, %v2799, 0.0
    %2831 = vadd.xlane.f32.xlu0 %v2830
    %v2832 = vpop.xlane.xlu0 %2831
    %v2833 = vsel %vm2241, %v2801, 0.0
    %2834 = vadd.xlane.f32.xlu0 %v2833
    %v2835 = vpop.xlane.xlu0 %2834
    %v2836 = vsel %vm2241, %v2803, 0.0
    %2837 = vadd.xlane.f32.xlu0 %v2836
    %v2838 = vpop.xlane.xlu0 %2837
    %v2839 = vsel %vm2241, %v2805, 0.0
    %2840 = vadd.xlane.f32.xlu0 %v2839
    %v2841 = vpop.xlane.xlu0 %2840
    %v2842 = vsel %vm2241, %v2807, 0.0
    %2843 = vadd.xlane.f32.xlu0 %v2842
    %v2844 = vpop.xlane.xlu0 %2843
    %v2845 = vsel %vm2241, %v2809, 0.0
    %2846 = vadd.xlane.f32.xlu0 %v2845
    %v2847 = vpop.xlane.xlu0 %2846
    %v2848 = vsel %vm2241, %v2811, 0.0
    %2849 = vadd.xlane.f32.xlu0 %v2848
    %v2850 = vpop.xlane.xlu0 %2849
    %v2851 = vsel %vm2241, %v2813, 0.0
    %2852 = vadd.xlane.f32.xlu0 %v2851
    %v2853 = vpop.xlane.xlu0 %2852
    %v2854 = vsel %vm2241, %v2815, 0.0
    %2855 = vadd.xlane.f32.xlu0 %v2854
    %v2856 = vpop.xlane.xlu0 %2855
    %v2857 = vsel %vm2241, %v2817, 0.0
    %2858 = vadd.xlane.f32.xlu0 %v2857
    %v2859 = vpop.xlane.xlu0 %2858
    %v2860 = vsel %vm2241, %v2819, 0.0
    %2861 = vadd.xlane.f32.xlu0 %v2860
    %v2862 = vpop.xlane.xlu0 %2861
    %v2863 = vsel %vm2241, %v2821, 0.0
    %2864 = vadd.xlane.f32.xlu0 %v2863
    %v2865 = vpop.xlane.xlu0 %2864
    %v2866 = vsel %vm2241, %v2823, 0.0
    %2867 = vadd.xlane.f32.xlu0 %v2866
    %v2868 = vpop.xlane.xlu0 %2867
    %v2869 = vsel %vm2241, %v2825, 0.0
    %2870 = vadd.xlane.f32.xlu0 %v2869
    %v2871 = vpop.xlane.xlu0 %2870
    %v2872 = vsel %vm2241, %v2827, 0.0
    %2873 = vadd.xlane.f32.xlu0 %v2872
    %v2874 = vpop.xlane.xlu0 %2873
    %v2875 = vsel %vm2241, %v2829, 0.0
    %2876 = vadd.xlane.f32.xlu0 %v2875
    %v2877 = vpop.xlane.xlu0 %2876
    %v2878 = vrcp.pop %v2832
    %v2879 = vrcp.pop %v2835
    %v2880 = vrcp.pop %v2838
    %v2881 = vrcp.pop %v2841
    %v2882 = vrcp.pop %v2844
    %v2883 = vrcp.pop %v2847
    %v2884 = vrcp.pop %v2850
    %v2885 = vrcp.pop %v2853
    %v2886 = vrcp.pop %v2856
    %v2887 = vrcp.pop %v2859
    %v2888 = vrcp.pop %v2862
    %v2889 = vrcp.pop %v2865
    %v2890 = vrcp.pop %v2868
    %v2891 = vrcp.pop %v2871
    %v2892 = vrcp.pop %v2874
    %v2893 = vrcp.pop %v2877
    %v2894 = vmul.f32 %v2799, %v2878
    %v2895 = vmul.f32 %v2801, %v2879
    %v2896 = vmul.f32 %v2803, %v2880
    %v2897 = vmul.f32 %v2805, %v2881
    %v2898 = vmul.f32 %v2807, %v2882
    %v2899 = vmul.f32 %v2809, %v2883
    %v2900 = vmul.f32 %v2811, %v2884
    %v2901 = vmul.f32 %v2813, %v2885
    %v2902 = vmul.f32 %v2815, %v2886
    %v2903 = vmul.f32 %v2817, %v2887
    %v2904 = vmul.f32 %v2819, %v2888
    %v2905 = vmul.f32 %v2821, %v2889
    %v2906 = vmul.f32 %v2823, %v2890
    %v2907 = vmul.f32 %v2825, %v2891
    %v2908 = vmul.f32 %v2827, %v2892
    %v2909 = vmul.f32 %v2829, %v2893
    %v2910 = vpack.c.bf16 %v2895, %v2894
    %v2911 = vpack.c.bf16 %v2897, %v2896
    %v2912 = vpack.c.bf16 %v2899, %v2898
    %v2913 = vpack.c.bf16 %v2901, %v2900
    %v2914 = vpack.c.bf16 %v2903, %v2902
    %v2915 = vpack.c.bf16 %v2905, %v2904
    %v2916 = vpack.c.bf16 %v2907, %v2906
    %v2917 = vpack.c.bf16 %v2909, %v2908
    %v2918 = vpack.c.bf16 %v2089, %v2086
    %v2920 = vrot.slane %v2918, 3
    %v2922 = vsel %vm2241, %v2910, 0
    %v2925 = vsel %vm2241, %v2911, 0
    %v2928 = vsel %vm2241, %v2912, 0
    %v2931 = vsel %vm2241, %v2913, 0
    %v2934 = vsel %vm2241, %v2914, 0
    %v2937 = vsel %vm2241, %v2915, 0
    %v2940 = vsel %vm2241, %v2916, 0
    %v2943 = vsel %vm2241, %v2917, 0
    %v2946 = vsel %vm2451, %v2920, 0
    %2948 = vmatprep.subr.bf16.mxu0 0
    %2949 = vmatpush1.bf16.msra.mxu0 %v2946
    %2950 = vmatprep.subr.bf16.mxu0 0
    %2951 = vmatpush1.bf16.msra.mxu0 0
    %2952 = vmatprep.subr.bf16.mxu0 0
    %2953 = vmatpush1.bf16.msra.mxu0 0
    %2954 = vmatprep.subr.bf16.mxu0 0
    %2955 = vmatpush1.bf16.msra.mxu0 0
    %2956 = vmatprep.subr.bf16.mxu0 0
    %2957 = vmatpush1.bf16.msra.mxu0 0
    %2958 = vmatprep.subr.bf16.mxu0 0
    %2959 = vmatpush1.bf16.msra.mxu0 0
    %2960 = vmatprep.subr.bf16.mxu0 0
    %2961 = vmatpush1.bf16.msra.mxu0 0
    %2962 = vmatprep.subr.bf16.mxu0 0
    %2963 = vmatpush1.bf16.msra.mxu0 0
    %2964 = vmatprep.subr.bf16.mxu0 0
    %2965 = vmatpush1.bf16.msra.mxu0 0
    %2966 = vmatprep.subr.bf16.mxu0 0
    %2967 = vmatpush1.bf16.msra.mxu0 0
    %2968 = vmatprep.subr.bf16.mxu0 0
    %2969 = vmatpush1.bf16.msra.mxu0 0
    %2970 = vmatprep.subr.bf16.mxu0 0
    %2971 = vmatpush1.bf16.msra.mxu0 0
    %2972 = vmatprep.subr.bf16.mxu0 0
    %2973 = vmatpush1.bf16.msra.mxu0 0
    %2974 = vmatprep.subr.bf16.mxu0 0
    %2975 = vmatpush1.bf16.msra.mxu0 0
    %2976 = vmatprep.subr.bf16.mxu0 0
    %2977 = vmatpush1.bf16.msra.mxu0 0
    %2978 = vmatprep.subr.bf16.mxu0 0
    %2979 = vmatpush1.bf16.msra.mxu0 0
    %2980 = vmatprep.mubr.bf16.mxu0 0
    %2981 = vmatmul.mubr.bf16.gmra.mrb[0].mxu0 %v2922
    %v2982 = vpop.f32.mrb[0].mxu0
    %v2983 = vadd.f32 0.0, %v2982
    %v2984 = vpop.f32.mrb[0].mxu0
    %v2985 = vpop.f32.mrb[0].mxu0
    %v2986 = vadd.f32 0.0, %v2985
    %v2987 = vpop.f32.mrb[0].mxu0
    %2988 = vmatprep.mubr.bf16.mxu0 0
    %2989 = vmatmul.mubr.bf16.gmra.mrb[0].mxu0 %v2925
    %v2990 = vpop.f32.mrb[0].mxu0
    %v2991 = vadd.f32 0.0, %v2990
    %v2992 = vpop.f32.mrb[0].mxu0
    %v2993 = vpop.f32.mrb[0].mxu0
    %v2994 = vadd.f32 0.0, %v2993
    %v2995 = vpop.f32.mrb[0].mxu0
    %2996 = vmatprep.mubr.bf16.mxu0 0
    %2997 = vmatmul.mubr.bf16.gmra.mrb[0].mxu0 %v2928
    %v2998 = vpop.f32.mrb[0].mxu0
    %v2999 = vadd.f32 0.0, %v2998
    %v3000 = vpop.f32.mrb[0].mxu0
    %v3001 = vpop.f32.mrb[0].mxu0
    %v3002 = vadd.f32 0.0, %v3001
    %v3003 = vpop.f32.mrb[0].mxu0
    %3004 = vmatprep.mubr.bf16.mxu0 0
    %3005 = vmatmul.mubr.bf16.gmra.mrb[0].mxu0 %v2931
    %v3006 = vpop.f32.mrb[0].mxu0
    %v3007 = vadd.f32 0.0, %v3006
    %v3008 = vpop.f32.mrb[0].mxu0
    %v3009 = vpop.f32.mrb[0].mxu0
    %v3010 = vadd.f32 0.0, %v3009
    %v3011 = vpop.f32.mrb[0].mxu0
    %3012 = vmatprep.mubr.bf16.mxu0 0
    %3013 = vmatmul.mubr.bf16.gmra.mrb[0].mxu0 %v2934
    %v3014 = vpop.f32.mrb[0].mxu0
    %v3015 = vadd.f32 0.0, %v3014
    %v3016 = vpop.f32.mrb[0].mxu0
    %v3017 = vpop.f32.mrb[0].mxu0
    %v3018 = vadd.f32 0.0, %v3017
    %v3019 = vpop.f32.mrb[0].mxu0
    %3020 = vmatprep.mubr.bf16.mxu0 0
    %3021 = vmatmul.mubr.bf16.gmra.mrb[0].mxu0 %v2937
    %v3022 = vpop.f32.mrb[0].mxu0
    %v3023 = vadd.f32 0.0, %v3022
    %v3024 = vpop.f32.mrb[0].mxu0
    %v3025 = vpop.f32.mrb[0].mxu0
    %v3026 = vadd.f32 0.0, %v3025
    %v3027 = vpop.f32.mrb[0].mxu0
    %3028 = vmatprep.mubr.bf16.mxu0 0
    %3029 = vmatmul.mubr.bf16.gmra.mrb[0].mxu0 %v2940
    %v3030 = vpop.f32.mrb[0].mxu0
    %v3031 = vadd.f32 0.0, %v3030
    %v3032 = vpop.f32.mrb[0].mxu0
    %v3033 = vpop.f32.mrb[0].mxu0
    %v3034 = vadd.f32 0.0, %v3033
    %v3035 = vpop.f32.mrb[0].mxu0
    %3036 = vmatprep.mubr.bf16.mxu0 0
    %3037 = vmatmul.mubr.bf16.gmra.mrb[0].mxu0 %v2943
    %v3038 = vpop.f32.mrb[0].mxu0
    %v3039 = vadd.f32 0.0, %v3038
    %v3040 = vpop.f32.mrb[0].mxu0
    %v3041 = vpop.f32.mrb[0].mxu0
    %v3042 = vadd.f32 0.0, %v3041
    %v3043 = vpop.f32.mrb[0].mxu0
    %3044 = vdwg.mxu0
    %v3045 = vmul.f32 %v2983, %v33
    %v3046 = vmul.f32 %v2986, %v34
    %v3047 = vmul.f32 %v2991, %v35
    %v3048 = vmul.f32 %v2994, %v36
    %v3049 = vmul.f32 %v2999, %v37
    %v3050 = vmul.f32 %v3002, %v38
    %v3051 = vmul.f32 %v3007, %v39
    %v3052 = vmul.f32 %v3010, %v40
    %v3053 = vmul.f32 %v3015, %v41
    %v3054 = vmul.f32 %v3018, %v42
    %v3055 = vmul.f32 %v3023, %v43
    %v3056 = vmul.f32 %v3026, %v44
    %v3057 = vmul.f32 %v3031, %v45
    %v3058 = vmul.f32 %v3034, %v46
    %v3059 = vmul.f32 %v3039, %v47
    %v3060 = vmul.f32 %v3042, %v48
    %v3061 = vadd.f32 %v3045, %v3046
    %v3062 = vadd.f32 %v3047, %v3048
    %v3063 = vadd.f32 %v3049, %v3050
    %v3064 = vadd.f32 %v3051, %v3052
    %v3065 = vadd.f32 %v3053, %v3054
    %v3066 = vadd.f32 %v3055, %v3056
    %v3067 = vadd.f32 %v3057, %v3058
    %v3068 = vadd.f32 %v3059, %v3060
    %v3069 = vadd.f32 %v3061, %v3062
    %v3070 = vadd.f32 %v3063, %v3064
    %v3071 = vadd.f32 %v3065, %v3066
    %v3072 = vadd.f32 %v3067, %v3068
    %v3073 = vadd.f32 %v3069, %v3070
    %v3074 = vadd.f32 %v3071, %v3072
    %v3075 = vadd.f32 %v3073, %v3074
    %v3076 = vpack.c.bf16 %v3075, %v2582
    %v3085 = vunpack.c.l.b16 %v89
    %v3086 = vunpack.c.l.b16 %v90
    %v3087 = vunpack.c.l.b16 %v91
    %v3088 = vunpack.c.l.b16 %v92
    %v3089 = vunpack.c.l.b16 %v93
    %v3090 = vunpack.c.l.b16 %v94
    %v3091 = vunpack.c.l.b16 %v95
    %v3092 = vunpack.c.l.b16 %v96
    %v3093 = vpack.c.b16 %v3086, %v3085
    %v3094 = vpack.c.b16 %v3088, %v3087
    %v3095 = vpack.c.b16 %v3090, %v3089
    %v3096 = vpack.c.b16 %v3092, %v3091
    %v3102 = vsel %vm309, %v3076, 0
    %3104 = vmatprep.subr.bf16.mxu0 0
    %3105 = vmatpush1.bf16.msra.mxu0 %v3093
    %3106 = vmatprep.subr.bf16.mxu0 0
    %3107 = vmatpush1.bf16.msra.mxu0 %v3094
    %3108 = vmatprep.subr.bf16.mxu0 0
    %3109 = vmatpush1.bf16.msra.mxu0 %v3095
    %3110 = vmatprep.subr.bf16.mxu0 0
    %3111 = vmatpush1.bf16.msra.mxu0 %v3096
    %3112 = vmatprep.subr.bf16.mxu0 0
    %3113 = vmatpush1.bf16.msra.mxu0 0
    %3114 = vmatprep.subr.bf16.mxu0 0
    %3115 = vmatpush1.bf16.msra.mxu0 0
    %3116 = vmatprep.subr.bf16.mxu0 0
    %3117 = vmatpush1.bf16.msra.mxu0 0
    %3118 = vmatprep.subr.bf16.mxu0 0
    %3119 = vmatpush1.bf16.msra.mxu0 0
    %3120 = vmatprep.subr.bf16.mxu0 0
    %3121 = vmatpush1.bf16.msra.mxu0 0
    %3122 = vmatprep.subr.bf16.mxu0 0
    %3123 = vmatpush1.bf16.msra.mxu0 0
    %3124 = vmatprep.subr.bf16.mxu0 0
    %3125 = vmatpush1.bf16.msra.mxu0 0
    %3126 = vmatprep.subr.bf16.mxu0 0
    %3127 = vmatpush1.bf16.msra.mxu0 0
    %3128 = vmatprep.subr.bf16.mxu0 0
    %3129 = vmatpush1.bf16.msra.mxu0 0
    %3130 = vmatprep.subr.bf16.mxu0 0
    %3131 = vmatpush1.bf16.msra.mxu0 0
    %3132 = vmatprep.subr.bf16.mxu0 0
    %3133 = vmatpush1.bf16.msra.mxu0 0
    %3134 = vmatprep.subr.bf16.mxu0 0
    %3135 = vmatpush1.bf16.msra.mxu0 0
    %3136 = vmatprep.mubr.bf16.mxu0 0
    %3137 = vmatmul.mubr.bf16.gmra.mrb[0].mxu0 %v3102
    %v3138 = vpop.f32.mrb[0].mxu0
    %v3139 = vadd.f32 %v249, %v3138
    %v3140 = vpop.f32.mrb[0].mxu0
    %v3141 = vpop.f32.mrb[0].mxu0
    %v3142 = vadd.f32 %v249, %v3141
    %v3143 = vpop.f32.mrb[0].mxu0
    %3144 = vdwg.mxu0
    %v3145 = vadd.f32 %v1444, %v3139
    %v3146 = vadd.f32 %v1445, %v3142
    %v3147 = vsel %vm309, %v3145, 0.0
    %3148 = vadd.xlane.f32.xlu0 %v3147
    %v3149 = vpop.xlane.xlu0 %3148
    %v3150 = vsel %vm309, %v3146, 0.0
    %3151 = vadd.xlane.f32.xlu0 %v3150
    %v3152 = vpop.xlane.xlu0 %3151
    %v3153 = vmul.f32 %v3149, %v1421
    %v3154 = vmul.f32 %v3152, %v1421
    %v3155 = vsub.f32 %v3145, %v3153
    %v3156 = vsub.f32 %v3146, %v3154
    %v3157 = vmul.f32 %v3155, %v3155
    %v3158 = vmul.f32 %v3156, %v3156
    %v3159 = vsel %vm309, %v3157, 0.0
    %3160 = vadd.xlane.f32.xlu0 %v3159
    %v3161 = vpop.xlane.xlu0 %3160
    %v3162 = vsel %vm309, %v3158, 0.0
    %3163 = vadd.xlane.f32.xlu0 %v3162
    %v3164 = vpop.xlane.xlu0 %3163
    %v3165 = vmul.f32 %v3161, %v1421
    %v3166 = vmul.f32 %v3164, %v1421
    %v3167 = vadd.f32 %v3165, 1e-05
    %v3168 = vadd.f32 %v3166, 1e-05
    %v3169 = vrsqrt.pop %v3167
    %v3170 = vrsqrt.pop %v3168
    %v3171 = vmul.f32 %v3155, %v3169
    %v3172 = vmul.f32 %v3156, %v3170
    %v3173 = vmul.f32 %v3171, %v250
    %v3174 = vmul.f32 %v3172, %v250
    %v3175 = vadd.f32 %v3173, %v251
    %v3176 = vadd.f32 %v3174, %v251
    %v3177 = vpack.c.bf16 %v3176, %v3175
    %v3179 = vlaneseq
    %v3180 = vshrl.u32 %v3179, 7
    %v3181 = vsub.s32 0, %v3180
    %v3182 = vrot.slane %v253, %v3181
    %v3183 = vlaneseq
    %v3184 = vshrl.u32 %v3183, 7
    %v3185 = vsub.s32 1, %v3184
    %v3186 = vrot.slane %v253, %v3185
    %v3197 = vunpack.c.l.b16 %v97
    %v3198 = vunpack.c.h.b16 %v97
    %v3199 = vunpack.c.l.b16 %v98
    %v3200 = vunpack.c.h.b16 %v98
    %v3201 = vunpack.c.l.b16 %v99
    %v3202 = vunpack.c.h.b16 %v99
    %v3203 = vunpack.c.l.b16 %v100
    %v3204 = vunpack.c.h.b16 %v100
    %v3205 = vunpack.c.l.b16 %v101
    %v3206 = vunpack.c.h.b16 %v101
    %v3207 = vunpack.c.l.b16 %v102
    %v3208 = vunpack.c.h.b16 %v102
    %v3209 = vunpack.c.l.b16 %v103
    %v3210 = vunpack.c.h.b16 %v103
    %v3211 = vunpack.c.l.b16 %v104
    %v3212 = vunpack.c.h.b16 %v104
    %v3213 = vpack.c.b16 %v3199, %v3197
    %v3214 = vpack.c.b16 %v3200, %v3198
    %v3215 = vpack.c.b16 %v3203, %v3201
    %v3216 = vpack.c.b16 %v3204, %v3202
    %v3217 = vpack.c.b16 %v3207, %v3205
    %v3218 = vpack.c.b16 %v3208, %v3206
    %v3219 = vpack.c.b16 %v3211, %v3209
    %v3220 = vpack.c.b16 %v3212, %v3210
    %v3230 = vsel %vm309, %v3177, 0
    %3232 = vmatprep.subr.bf16.mxu0 %v3214
    %3233 = vmatpush1.bf16.msra.mxu0 %v3213
    %3234 = vmatprep.subr.bf16.mxu0 %v3216
    %3235 = vmatpush1.bf16.msra.mxu0 %v3215
    %3236 = vmatprep.subr.bf16.mxu0 %v3218
    %3237 = vmatpush1.bf16.msra.mxu0 %v3217
    %3238 = vmatprep.subr.bf16.mxu0 %v3220
    %3239 = vmatpush1.bf16.msra.mxu0 %v3219
    %3240 = vmatprep.subr.bf16.mxu0 0
    %3241 = vmatpush1.bf16.msra.mxu0 0
    %3242 = vmatprep.subr.bf16.mxu0 0
    %3243 = vmatpush1.bf16.msra.mxu0 0
    %3244 = vmatprep.subr.bf16.mxu0 0
    %3245 = vmatpush1.bf16.msra.mxu0 0
    %3246 = vmatprep.subr.bf16.mxu0 0
    %3247 = vmatpush1.bf16.msra.mxu0 0
    %3248 = vmatprep.subr.bf16.mxu0 0
    %3249 = vmatpush1.bf16.msra.mxu0 0
    %3250 = vmatprep.subr.bf16.mxu0 0
    %3251 = vmatpush1.bf16.msra.mxu0 0
    %3252 = vmatprep.subr.bf16.mxu0 0
    %3253 = vmatpush1.bf16.msra.mxu0 0
    %3254 = vmatprep.subr.bf16.mxu0 0
    %3255 = vmatpush1.bf16.msra.mxu0 0
    %3256 = vmatprep.subr.bf16.mxu0 0
    %3257 = vmatpush1.bf16.msra.mxu0 0
    %3258 = vmatprep.subr.bf16.mxu0 0
    %3259 = vmatpush1.bf16.msra.mxu0 0
    %3260 = vmatprep.subr.bf16.mxu0 0
    %3261 = vmatpush1.bf16.msra.mxu0 0
    %3262 = vmatprep.subr.bf16.mxu0 0
    %3263 = vmatpush1.bf16.msra.mxu0 0
    %3264 = vmatprep.mubr.bf16.mxu0 0
    %3265 = vmatmul.mubr.bf16.gmra.mrb[0].mxu0 %v3230
    %v3266 = vpop.f32.mrb[0].mxu0
    %v3267 = vadd.f32 %v3182, %v3266
    %v3268 = vpop.f32.mrb[0].mxu0
    %v3269 = vadd.f32 %v3186, %v3268
    %v3270 = vpop.f32.mrb[0].mxu0
    %v3271 = vadd.f32 %v3182, %v3270
    %v3272 = vpop.f32.mrb[0].mxu0
    %v3273 = vadd.f32 %v3186, %v3272
    %3274 = vdwg.mxu0
    %v3275 = vmul.f32 %v3267, 0.5
    %v3276 = vmul.f32 %v3269, 0.5
    %v3277 = vmul.f32 %v3271, 0.5
    %v3278 = vmul.f32 %v3273, 0.5
    %v3279 = vmul.f32 %v3267, 0.70710677
    %v3280 = vmul.f32 %v3269, 0.70710677
    %v3281 = vmul.f32 %v3271, 0.70710677
    %v3282 = vmul.f32 %v3273, 0.70710677
    %vm3283 = vcmp.ge.f32.partialorder %v3279, 0.0
    %vm3284 = vcmp.ge.f32.partialorder %v3280, 0.0
    %vm3285 = vcmp.ge.f32.partialorder %v3281, 0.0
    %vm3286 = vcmp.ge.f32.partialorder %v3282, 0.0
    %v3287 = vsel %vm3283, 1.0, -1.0
    %v3288 = vsel %vm3284, 1.0, -1.0
    %v3289 = vsel %vm3285, 1.0, -1.0
    %v3290 = vsel %vm3286, 1.0, -1.0
    %v3291 = vand.u32 2147483647, %v3279
    %v3292 = vand.u32 2147483647, %v3280
    %v3293 = vand.u32 2147483647, %v3281
    %v3294 = vand.u32 2147483647, %v3282
    %v3295 = vmul.f32 %v3291, 0.3275911
    %v3296 = vmul.f32 %v3292, 0.3275911
    %v3297 = vmul.f32 %v3293, 0.3275911
    %v3298 = vmul.f32 %v3294, 0.3275911
    %v3299 = vadd.f32 %v3295, 1.0
    %v3300 = vadd.f32 %v3296, 1.0
    %v3301 = vadd.f32 %v3297, 1.0
    %v3302 = vadd.f32 %v3298, 1.0
    %v3303 = vrcp.pop %v3299
    %v3304 = vmul.f32 1.0, %v3303
    %v3305 = vrcp.pop %v3300
    %v3306 = vmul.f32 1.0, %v3305
    %v3307 = vrcp.pop %v3301
    %v3308 = vmul.f32 1.0, %v3307
    %v3309 = vrcp.pop %v3302
    %v3310 = vmul.f32 1.0, %v3309
    %v3311 = vmul.f32 %v3304, 1.0614054
    %v3312 = vmul.f32 %v3306, 1.0614054
    %v3313 = vmul.f32 %v3308, 1.0614054
    %v3314 = vmul.f32 %v3310, 1.0614054
    %v3315 = vadd.f32 %v3311, -1.4531521
    %v3316 = vadd.f32 %v3312, -1.4531521
    %v3317 = vadd.f32 %v3313, -1.4531521
    %v3318 = vadd.f32 %v3314, -1.4531521
    %v3319 = vmul.f32 %v3315, %v3304
    %v3320 = vmul.f32 %v3316, %v3306
    %v3321 = vmul.f32 %v3317, %v3308
    %v3322 = vmul.f32 %v3318, %v3310
    %v3323 = vadd.f32 %v3319, 1.4214138
    %v3324 = vadd.f32 %v3320, 1.4214138
    %v3325 = vadd.f32 %v3321, 1.4214138
    %v3326 = vadd.f32 %v3322, 1.4214138
    %v3327 = vmul.f32 %v3323, %v3304
    %v3328 = vmul.f32 %v3324, %v3306
    %v3329 = vmul.f32 %v3325, %v3308
    %v3330 = vmul.f32 %v3326, %v3310
    %v3331 = vadd.f32 %v3327, -0.28449672
    %v3332 = vadd.f32 %v3328, -0.28449672
    %v3333 = vadd.f32 %v3329, -0.28449672
    %v3334 = vadd.f32 %v3330, -0.28449672
    %v3335 = vmul.f32 %v3331, %v3304
    %v3336 = vmul.f32 %v3332, %v3306
    %v3337 = vmul.f32 %v3333, %v3308
    %v3338 = vmul.f32 %v3334, %v3310
    %v3339 = vadd.f32 %v3335, 0.2548296
    %v3340 = vadd.f32 %v3336, 0.2548296
    %v3341 = vadd.f32 %v3337, 0.2548296
    %v3342 = vadd.f32 %v3338, 0.2548296
    %v3343 = vmul.f32 %v3339, %v3304
    %v3344 = vmul.f32 %v3340, %v3306
    %v3345 = vmul.f32 %v3341, %v3308
    %v3346 = vmul.f32 %v3342, %v3310
    %v3347 = vsub.f32 0.0, %v3291
    %v3348 = vsub.f32 0.0, %v3292
    %v3349 = vsub.f32 0.0, %v3293
    %v3350 = vsub.f32 0.0, %v3294
    %v3351 = vmul.f32 %v3347, %v3291
    %v3352 = vmul.f32 %v3348, %v3292
    %v3353 = vmul.f32 %v3349, %v3293
    %v3354 = vmul.f32 %v3350, %v3294
    %v3355 = vmul.f32 %v3351, 1.442695
    %v3356 = vpow.pop %v3355
    %v3357 = vmul.f32 %v3352, 1.442695
    %v3358 = vpow.pop %v3357
    %v3359 = vmul.f32 %v3353, 1.442695
    %v3360 = vpow.pop %v3359
    %v3361 = vmul.f32 %v3354, 1.442695
    %v3362 = vpow.pop %v3361
    %v3363 = vmul.f32 %v3343, %v3356
    %v3364 = vmul.f32 %v3344, %v3358
    %v3365 = vmul.f32 %v3345, %v3360
    %v3366 = vmul.f32 %v3346, %v3362
    %v3367 = vsub.f32 1.0, %v3363
    %v3368 = vsub.f32 1.0, %v3364
    %v3369 = vsub.f32 1.0, %v3365
    %v3370 = vsub.f32 1.0, %v3366
    %v3371 = vmul.f32 %v3287, %v3367
    %v3372 = vmul.f32 %v3288, %v3368
    %v3373 = vmul.f32 %v3289, %v3369
    %v3374 = vmul.f32 %v3290, %v3370
    %v3375 = vadd.f32 %v3371, 1.0
    %v3376 = vadd.f32 %v3372, 1.0
    %v3377 = vadd.f32 %v3373, 1.0
    %v3378 = vadd.f32 %v3374, 1.0
    %v3379 = vmul.f32 %v3275, %v3375
    %v3380 = vmul.f32 %v3276, %v3376
    %v3381 = vmul.f32 %v3277, %v3377
    %v3382 = vmul.f32 %v3278, %v3378
    %v3383 = vpack.c.bf16 %v3381, %v3379
    %v3384 = vpack.c.bf16 %v3382, %v3380
    %v3417 = vunpack.c.l.b16 %v209
    %v3418 = vunpack.c.l.b16 %v210
    %v3419 = vunpack.c.l.b16 %v211
    %v3420 = vunpack.c.l.b16 %v212
    %v3421 = vunpack.c.l.b16 %v213
    %v3422 = vunpack.c.l.b16 %v214
    %v3423 = vunpack.c.l.b16 %v215
    %v3424 = vunpack.c.l.b16 %v216
    %v3425 = vunpack.c.l.b16 %v217
    %v3426 = vunpack.c.l.b16 %v218
    %v3427 = vunpack.c.l.b16 %v219
    %v3428 = vunpack.c.l.b16 %v220
    %v3429 = vunpack.c.l.b16 %v221
    %v3430 = vunpack.c.l.b16 %v222
    %v3431 = vunpack.c.l.b16 %v223
    %v3432 = vunpack.c.l.b16 %v224
    %v3433 = vunpack.c.l.b16 %v225
    %v3434 = vunpack.c.l.b16 %v226
    %v3435 = vunpack.c.l.b16 %v227
    %v3436 = vunpack.c.l.b16 %v228
    %v3437 = vunpack.c.l.b16 %v229
    %v3438 = vunpack.c.l.b16 %v230
    %v3439 = vunpack.c.l.b16 %v231
    %v3440 = vunpack.c.l.b16 %v232
    %v3441 = vunpack.c.l.b16 %v233
    %v3442 = vunpack.c.l.b16 %v234
    %v3443 = vunpack.c.l.b16 %v235
    %v3444 = vunpack.c.l.b16 %v236
    %v3445 = vunpack.c.l.b16 %v237
    %v3446 = vunpack.c.l.b16 %v238
    %v3447 = vunpack.c.l.b16 %v239
    %v3448 = vunpack.c.l.b16 %v240
    %v3449 = vpack.c.b16 %v3418, %v3417
    %v3450 = vpack.c.b16 %v3420, %v3419
    %v3451 = vpack.c.b16 %v3422, %v3421
    %v3452 = vpack.c.b16 %v3424, %v3423
    %v3453 = vpack.c.b16 %v3426, %v3425
    %v3454 = vpack.c.b16 %v3428, %v3427
    %v3455 = vpack.c.b16 %v3430, %v3429
    %v3456 = vpack.c.b16 %v3432, %v3431
    %v3457 = vpack.c.b16 %v3434, %v3433
    %v3458 = vpack.c.b16 %v3436, %v3435
    %v3459 = vpack.c.b16 %v3438, %v3437
    %v3460 = vpack.c.b16 %v3440, %v3439
    %v3461 = vpack.c.b16 %v3442, %v3441
    %v3462 = vpack.c.b16 %v3444, %v3443
    %v3463 = vpack.c.b16 %v3446, %v3445
    %v3464 = vpack.c.b16 %v3448, %v3447
    %3481 = vmatprep.subr.bf16.mxu0 0
    %3482 = vmatpush1.bf16.msra.mxu0 %v3449
    %3483 = vmatprep.subr.bf16.mxu0 0
    %3484 = vmatpush1.bf16.msra.mxu0 %v3450
    %3485 = vmatprep.subr.bf16.mxu0 0
    %3486 = vmatpush1.bf16.msra.mxu0 %v3451
    %3487 = vmatprep.subr.bf16.mxu0 0
    %3488 = vmatpush1.bf16.msra.mxu0 %v3452
    %3489 = vmatprep.subr.bf16.mxu0 0
    %3490 = vmatpush1.bf16.msra.mxu0 %v3453
    %3491 = vmatprep.subr.bf16.mxu0 0
    %3492 = vmatpush1.bf16.msra.mxu0 %v3454
    %3493 = vmatprep.subr.bf16.mxu0 0
    %3494 = vmatpush1.bf16.msra.mxu0 %v3455
    %3495 = vmatprep.subr.bf16.mxu0 0
    %3496 = vmatpush1.bf16.msra.mxu0 %v3456
    %3497 = vmatprep.subr.bf16.mxu0 0
    %3498 = vmatpush1.bf16.msra.mxu0 %v3457
    %3499 = vmatprep.subr.bf16.mxu0 0
    %3500 = vmatpush1.bf16.msra.mxu0 %v3458
    %3501 = vmatprep.subr.bf16.mxu0 0
    %3502 = vmatpush1.bf16.msra.mxu0 %v3459
    %3503 = vmatprep.subr.bf16.mxu0 0
    %3504 = vmatpush1.bf16.msra.mxu0 %v3460
    %3505 = vmatprep.subr.bf16.mxu0 0
    %3506 = vmatpush1.bf16.msra.mxu0 %v3461
    %3507 = vmatprep.subr.bf16.mxu0 0
    %3508 = vmatpush1.bf16.msra.mxu0 %v3462
    %3509 = vmatprep.subr.bf16.mxu0 0
    %3510 = vmatpush1.bf16.msra.mxu0 %v3463
    %3511 = vmatprep.subr.bf16.mxu0 0
    %3512 = vmatpush1.bf16.msra.mxu0 %v3464
    %3513 = vmatprep.mubr.bf16.mxu0 %v3384
    %3514 = vmatmul.mubr.bf16.gmra.mrb[0].mxu0 %v3383
    %v3515 = vpop.f32.mrb[0].mxu0
    %v3516 = vadd.f32 %v254, %v3515
    %v3517 = vpop.f32.mrb[0].mxu0
    %v3518 = vpop.f32.mrb[0].mxu0
    %v3519 = vadd.f32 %v254, %v3518
    %v3520 = vpop.f32.mrb[0].mxu0
    %3521 = vdwg.mxu0
    %v3530 = vunpack.c.l.b16 %v105
    %v3531 = vunpack.c.l.b16 %v106
    %v3532 = vunpack.c.l.b16 %v107
    %v3533 = vunpack.c.l.b16 %v108
    %v3534 = vunpack.c.l.b16 %v109
    %v3535 = vunpack.c.l.b16 %v110
    %v3536 = vunpack.c.l.b16 %v111
    %v3537 = vunpack.c.l.b16 %v112
    %v3538 = vpack.c.b16 %v3531, %v3530
    %v3539 = vpack.c.b16 %v3533, %v3532
    %v3540 = vpack.c.b16 %v3535, %v3534
    %v3541 = vpack.c.b16 %v3537, %v3536
    %3546 = vmatprep.subr.bf16.mxu0 0
    %3547 = vmatpush1.bf16.msra.mxu0 %v3538
    %3548 = vmatprep.subr.bf16.mxu0 0
    %3549 = vmatpush1.bf16.msra.mxu0 %v3539
    %3550 = vmatprep.subr.bf16.mxu0 0
    %3551 = vmatpush1.bf16.msra.mxu0 %v3540
    %3552 = vmatprep.subr.bf16.mxu0 0
    %3553 = vmatpush1.bf16.msra.mxu0 %v3541
    %3554 = vmatprep.subr.bf16.mxu0 0
    %3555 = vmatpush1.bf16.msra.mxu0 0
    %3556 = vmatprep.subr.bf16.mxu0 0
    %3557 = vmatpush1.bf16.msra.mxu0 0
    %3558 = vmatprep.subr.bf16.mxu0 0
    %3559 = vmatpush1.bf16.msra.mxu0 0
    %3560 = vmatprep.subr.bf16.mxu0 0
    %3561 = vmatpush1.bf16.msra.mxu0 0
    %3562 = vmatprep.subr.bf16.mxu0 0
    %3563 = vmatpush1.bf16.msra.mxu0 0
    %3564 = vmatprep.subr.bf16.mxu0 0
    %3565 = vmatpush1.bf16.msra.mxu0 0
    %3566 = vmatprep.subr.bf16.mxu0 0
    %3567 = vmatpush1.bf16.msra.mxu0 0
    %3568 = vmatprep.subr.bf16.mxu0 0
    %3569 = vmatpush1.bf16.msra.mxu0 0
    %3570 = vmatprep.subr.bf16.mxu0 0
    %3571 = vmatpush1.bf16.msra.mxu0 0
    %3572 = vmatprep.subr.bf16.mxu0 0
    %3573 = vmatpush1.bf16.msra.mxu0 0
    %3574 = vmatprep.subr.bf16.mxu0 0
    %3575 = vmatpush1.bf16.msra.mxu0 0
    %3576 = vmatprep.subr.bf16.mxu0 0
    %3577 = vmatpush1.bf16.msra.mxu0 0
    %3578 = vmatprep.mubr.bf16.mxu0 0
    %3579 = vmatmul.mubr.bf16.gmra.mrb[0].mxu0 %v3230
    %v3580 = vpop.f32.mrb[0].mxu0
    %v3581 = vadd.f32 0.0, %v3580
    %v3582 = vpop.f32.mrb[0].mxu0
    %v3583 = vpop.f32.mrb[0].mxu0
    %v3584 = vadd.f32 0.0, %v3583
    %v3585 = vpop.f32.mrb[0].mxu0
    %3586 = vdwg.mxu0
    %v3587 = vadd.f32 %v3175, %v3581
    %v3588 = vadd.f32 %v3176, %v3584
    %v3589 = vadd.f32 %v3175, %v3516
    %v3590 = vadd.f32 %v3176, %v3519
    %v3591 = vadd.f32 %v3589, %v3587
    %v3592 = vadd.f32 %v3590, %v3588
    %v3593 = vsel %vm309, %v3591, 0.0
    %3594 = vadd.xlane.f32.xlu0 %v3593
    %v3595 = vpop.xlane.xlu0 %3594
    %v3596 = vsel %vm309, %v3592, 0.0
    %3597 = vadd.xlane.f32.xlu0 %v3596
    %v3598 = vpop.xlane.xlu0 %3597
    %v3599 = vmul.f32 %v3595, %v1421
    %v3600 = vmul.f32 %v3598, %v1421
    %v3601 = vsub.f32 %v3591, %v3599
    %v3602 = vsub.f32 %v3592, %v3600
    %v3603 = vmul.f32 %v3601, %v3601
    %v3604 = vmul.f32 %v3602, %v3602
    %v3605 = vsel %vm309, %v3603, 0.0
    %3606 = vadd.xlane.f32.xlu0 %v3605
    %v3607 = vpop.xlane.xlu0 %3606
    %v3608 = vsel %vm309, %v3604, 0.0
    %3609 = vadd.xlane.f32.xlu0 %v3608
    %v3610 = vpop.xlane.xlu0 %3609
    %v3611 = vmul.f32 %v3607, %v1421
    %v3612 = vmul.f32 %v3610, %v1421
    %v3613 = vadd.f32 %v3611, 1e-05
    %v3614 = vadd.f32 %v3612, 1e-05
    %v3615 = vrsqrt.pop %v3613
    %v3616 = vrsqrt.pop %v3614
    %v3617 = vmul.f32 %v3601, %v3615
    %v3618 = vmul.f32 %v3602, %v3616
    %v3619 = vmul.f32 %v3617, %v255
    %v3620 = vmul.f32 %v3618, %v255
    %v3621 = vadd.f32 %v3619, %v256
    %v3622 = vadd.f32 %v3620, %v256
    %3623 = vst.msk [vmem:[#allocation2] sm:$0xff] %vm309, %v3621
    %3624 = vst.msk [vmem:[#allocation2 + $0x8] sm:$0xff] %vm309, %v3622
    // Predicated region
    $region26: #{tpu_custom_call.1} parent=1 // pred_check
      _
    $region27: #{tpu_custom_call.1} parent=1 // pred_check_branch
      %3626 = sbr.rel (0) target = $region29
    $region28: #{tpu_custom_call.1} parent=1 // pred_region
      %s3628 = ssub.s32 256, 256
      %3629 = vsyncadd [#allocation3], %s3628
      %s3630 = sshll.u32 [#allocation2], 4
      %s3631 = int_to_ptr.vmem [resolvable:$true] %s3630
      %3636 = dma.vmem_to_hbm [thread:$0]  %s3631, 256, %s6, [#allocation3], 128, 128, 8
    $region29: #{tpu_custom_call.1} parent=1 // pred_fallthru
      _
    // Predicated region
    $region30: #{tpu_custom_call.1} parent=1 // pred_check
      _
    $region31: #{tpu_custom_call.1} parent=1 // pred_check_branch
      %3638 = sbr.rel (0) target = $region33
    $region32: #{tpu_custom_call.1} parent=1 // pred_region
      %3639 = dma.done [#allocation3], 256
    $region33: #{tpu_custom_call.1} parent=1 // pred_fallthru
      _
    %3640 = vsyncpa [#allocation3], 1

</llo_original>
